<compile_context>
chip_gen: v7x
topology: tpu7x:2x2x1
jax: 0.10.0
libtpu: 0.0.40
codegen_flags: <defaults>
</compile_context>

<pallas_src>
import functools

import jax
import jax.numpy as jnp
from jax import lax
from jax.experimental import pallas as pl


# ----------------------------------------------------------------------------
# Fused Pallas kernel (all layers + linear head, single invocation, no grid)
# ----------------------------------------------------------------------------
def _make_fused_lstm_kernel(num_layers, B, T, D, H):
    """Kernel ref layout (all whole-array VMEM blocks):

      x_ref               : (B, T*D)  batch-first input, lanes [t*D:(t+1)*D] = x_t
      per layer l:
        wih_ref           : (D_l, 4H) input->hidden weight (transposed)
        whh_ref           : (H,  4H)  hidden->hidden weight (transposed)
        b_ref             : (1,  4H)  combined bias (b_ih + b_hh)
      wlin_ref            : (H, O)    linear weight (transposed)
      blin_ref            : (1, O)    linear bias
      out_ref             : (B, O)    predictions
    """

    def kernel(x_ref, *refs):
        layer_w = [
            (refs[3 * l][...], refs[3 * l + 1][...], refs[3 * l + 2][...])
            for l in range(num_layers)
        ]
        wlin = refs[3 * num_layers][...]
        blin = refs[3 * num_layers + 1][...]
        out_ref = refs[3 * num_layers + 2]

        x2 = x_ref[...]                                    # (B, T*D)

        # Lane mask selecting the 'g' (cell candidate) block — hoisted once.
        lane = lax.broadcasted_iota(jnp.int32, (B, 4 * H), 1)
        g_blk = (lane >= 2 * H) & (lane < 3 * H)

        def lstm_cell(gates, c):
            # One sigmoid pass (tanh identity) + one tanh pass over the full
            # (B, 4H) vreg, blended by the lane mask: 2 EUP issues instead of
            # 4 quarter-populated ones on the dependent path.
            sg = 0.5 * jnp.tanh(0.5 * gates) + 0.5         # sigmoid(gates)
            th = jnp.tanh(gates)
            act = jnp.where(g_blk, th, sg)
            # PyTorch gate order: input, forget, cell(g), output.
            i_g = act[:, 0 * H:1 * H]
            f_g = act[:, 1 * H:2 * H]
            g_g = act[:, 2 * H:3 * H]
            o_g = act[:, 3 * H:4 * H]
            c_new = f_g * c + i_g * g_g
            h_new = o_g * jnp.tanh(c_new)
            return h_new, c_new

        zero = jnp.zeros((B, H), jnp.float32)
        h = [zero] * num_layers
        c = [zero] * num_layers

        # Statically unrolled wavefront: layer l at step t depends only on
        # h[l-1] at step t and h[l]/c[l] at step t-1, so (inside this single
        # basic block) layer-1 step t+1 overlaps with layer-2 step t.  The
        # x_t @ Wih matmuls have no h-dependence and are scheduled off the
        # recurrent critical path.
        for t in range(T):
            inp = x2[:, t * D:(t + 1) * D]                 # (B, D) lane slice
            for l in range(num_layers):
                wih, whh, b = layer_w[l]
                gates = (jnp.dot(inp, wih, preferred_element_type=jnp.float32)
                         + b
                         + jnp.dot(h[l], whh,
                                   preferred_element_type=jnp.float32))
                h[l], c[l] = lstm_cell(gates, c[l])
                inp = h[l]

        # Linear head on the last layer's final hidden state.
        out_ref[...] = (jnp.dot(h[-1], wlin,
                                preferred_element_type=jnp.float32) + blin)

    return kernel


# ----------------------------------------------------------------------------
# Wrapper (equivalent of LSTMModel.forward, batch_first inputs)
# ----------------------------------------------------------------------------
@jax.jit
def lstm_model_forward(x, params):
    """x: (B, T, input_size) batch_first, like the PyTorch module."""
    B, T, D = x.shape
    layers = params["lstm_layers"]
    num_layers = len(layers)
    H = layers[0][1].shape[0]
    O = params["w_lin_t"].shape[1]

    # Pure metadata reshape (bitcast) — no transpose / pad / copy before the
    # kernel; full-array blocks are exempt from the (8,128) divisibility rule.
    x2 = x.reshape(B, T * D)

    flat_weights = []
    for (wih_t, whh_t, b) in layers:
        flat_weights += [wih_t, whh_t, b]

    kernel = _make_fused_lstm_kernel(num_layers, B, T, D, H)
    return pl.pallas_call(
        kernel,
        out_shape=jax.ShapeDtypeStruct((B, O), jnp.float32),
    )(x2, *flat_weights, params["w_lin_t"], params["b_lin"])


# ----------------------------------------------------------------------------
# Deterministic parameter init (PyTorch-default shapes, U(-1/sqrt(H), 1/sqrt(H)))
# ----------------------------------------------------------------------------
def init_params(key, input_size, hidden_size, num_layers, output_size):
    bound = 1.0 / jnp.sqrt(hidden_size)
    layers = []
    for layer in range(num_layers):
        in_dim = input_size if layer == 0 else hidden_size
        key, k1, k2, k3, k4 = jax.random.split(key, 5)
        w_ih = jax.random.uniform(k1, (4 * hidden_size, in_dim),
                                  minval=-bound, maxval=bound, dtype=jnp.float32)
        w_hh = jax.random.uniform(k2, (4 * hidden_size, hidden_size),
                                  minval=-bound, maxval=bound, dtype=jnp.float32)
        b_ih = jax.random.uniform(k3, (4 * hidden_size,),
                                  minval=-bound, maxval=bound, dtype=jnp.float32)
        b_hh = jax.random.uniform(k4, (4 * hidden_size,),
                                  minval=-bound, maxval=bound, dtype=jnp.float32)
        layers.append((w_ih.T, w_hh.T, (b_ih + b_hh).reshape(1, -1)))
    key, k5, k6 = jax.random.split(key, 3)
    lin_bound = 1.0 / jnp.sqrt(hidden_size)
    w_lin = jax.random.uniform(k5, (output_size, hidden_size),
                               minval=-lin_bound, maxval=lin_bound,
                               dtype=jnp.float32)
    b_lin = jax.random.uniform(k6, (output_size,),
                               minval=-lin_bound, maxval=lin_bound,
                               dtype=jnp.float32)
    return {"lstm_layers": layers,
            "w_lin_t": w_lin.T,
            "b_lin": b_lin.reshape(1, -1)}


# ----------------------------------------------------------------------------
# Pure-JAX reference (lax.scan) for correctness checking
# ----------------------------------------------------------------------------
def ref_forward(x, params):
    B = x.shape[0]
    h_seq = jnp.transpose(x, (1, 0, 2))
    for (wih_t, whh_t, b) in params["lstm_layers"]:
        H = whh_t.shape[0]

        def step(carry, x_t):
            h, c = carry
            gates = x_t @ wih_t + h @ whh_t + b
            i_g = jax.nn.sigmoid(gates[:, 0 * H:1 * H])
            f_g = jax.nn.sigmoid(gates[:, 1 * H:2 * H])
            g_g = jnp.tanh(gates[:, 2 * H:3 * H])
            o_g = jax.nn.sigmoid(gates[:, 3 * H:4 * H])
            c_new = f_g * c + i_g * g_g
            h_new = o_g * jnp.tanh(c_new)
            return (h_new, c_new), h_new

        init = (jnp.zeros((B, H), jnp.float32), jnp.zeros((B, H), jnp.float32))
        _, h_seq = lax.scan(step, init, h_seq)
    return h_seq[-1] @ params["w_lin_t"] + params["b_lin"]


# ----------------------------------------------------------------------------
if __name__ == "__main__":
    INPUT_SIZE = 8
    HIDDEN = 32
    NUM_LAYERS = 2
    OUTPUT = 1
    B, T = 4, 8

    key = jax.random.PRNGKey(0)
    k_x, k_p = jax.random.split(key)
    x = jax.random.normal(k_x, (B, T, INPUT_SIZE), dtype=jnp.float32)
    params = init_params(k_p, INPUT_SIZE, HIDDEN, NUM_LAYERS, OUTPUT)

    out = lstm_model_forward(x, params)
    out = jax.block_until_ready(out)

    ref = jax.block_until_ready(ref_forward(x, params))
    assert out.shape == (B, OUTPUT), out.shape
    assert jnp.allclose(out, ref, atol=1e-4, rtol=1e-4), (out, ref)

    print("KERNEL_OK")
</pallas_src>

<mosaic_0001>
module attributes {stable_mosaic.version = 11 : i64} {
  func.func @kernel(%arg0: memref<4x64xf32, #tpu.memory_space<vmem>>, %arg1: memref<8x128xf32, #tpu.memory_space<vmem>>, %arg2: memref<32x128xf32, #tpu.memory_space<vmem>>, %arg3: memref<1x128xf32, #tpu.memory_space<vmem>>, %arg4: memref<32x128xf32, #tpu.memory_space<vmem>>, %arg5: memref<32x128xf32, #tpu.memory_space<vmem>>, %arg6: memref<1x128xf32, #tpu.memory_space<vmem>>, %arg7: memref<32x1xf32, #tpu.memory_space<vmem>>, %arg8: memref<1x1xf32, #tpu.memory_space<vmem>>, %arg9: memref<4x1xf32, #tpu.memory_space<vmem>>) attributes {dimension_semantics = [], scalar_prefetch = 0 : i64, scratch_operands = 0 : i64, tpu.core_type = #tpu.core_type<tc>} {
    %c0 = arith.constant 0 : index
    %c0_0 = arith.constant 0 : index
    %0 = vector.load %arg1[%c0, %c0_0] : memref<8x128xf32, #tpu.memory_space<vmem>>, vector<8x128xf32>
    %c0_1 = arith.constant 0 : index
    %c0_2 = arith.constant 0 : index
    %1 = vector.load %arg2[%c0_1, %c0_2] : memref<32x128xf32, #tpu.memory_space<vmem>>, vector<32x128xf32>
    %c0_3 = arith.constant 0 : index
    %c0_4 = arith.constant 0 : index
    %2 = vector.load %arg3[%c0_3, %c0_4] : memref<1x128xf32, #tpu.memory_space<vmem>>, vector<1x128xf32>
    %c0_5 = arith.constant 0 : index
    %c0_6 = arith.constant 0 : index
    %3 = vector.load %arg4[%c0_5, %c0_6] : memref<32x128xf32, #tpu.memory_space<vmem>>, vector<32x128xf32>
    %c0_7 = arith.constant 0 : index
    %c0_8 = arith.constant 0 : index
    %4 = vector.load %arg5[%c0_7, %c0_8] : memref<32x128xf32, #tpu.memory_space<vmem>>, vector<32x128xf32>
    %c0_9 = arith.constant 0 : index
    %c0_10 = arith.constant 0 : index
    %5 = vector.load %arg6[%c0_9, %c0_10] : memref<1x128xf32, #tpu.memory_space<vmem>>, vector<1x128xf32>
    %c0_11 = arith.constant 0 : index
    %c0_12 = arith.constant 0 : index
    %6 = vector.load %arg7[%c0_11, %c0_12] : memref<32x1xf32, #tpu.memory_space<vmem>>, vector<32x1xf32>
    %c0_13 = arith.constant 0 : index
    %c0_14 = arith.constant 0 : index
    %7 = vector.load %arg8[%c0_13, %c0_14] : memref<1x1xf32, #tpu.memory_space<vmem>>, vector<1x1xf32>
    %c0_15 = arith.constant 0 : index
    %c0_16 = arith.constant 0 : index
    %8 = vector.load %arg0[%c0_15, %c0_16] : memref<4x64xf32, #tpu.memory_space<vmem>>, vector<4x64xf32>
    %9 = tpu.iota {dimensions = array<i32: 1>} : vector<4x128xi32>
    %c64_i32 = arith.constant 64 : i32
    %10 = vector.broadcast %c64_i32 : i32 to vector<4x128xi32>
    %11 = arith.cmpi sge, %9, %10 : vector<4x128xi32>
    %c96_i32 = arith.constant 96 : i32
    %12 = vector.broadcast %c96_i32 : i32 to vector<4x128xi32>
    %13 = arith.cmpi slt, %9, %12 : vector<4x128xi32>
    %14 = arith.andi %11, %13 : vector<4x128xi1>
    %cst = arith.constant 0.000000e+00 : f32
    %15 = vector.broadcast %cst : f32 to vector<4x32xf32>
    %16 = vector.extract_strided_slice %8 {offsets = [0, 0], sizes = [4, 8], strides = [1, 1]} : vector<4x64xf32> to vector<4x8xf32>
    %cst_17 = arith.constant dense<0.000000e+00> : vector<4x128xf32>
    %17 = tpu.matmul %16, %0, %cst_17 {dimension_numbers = #tpu.dot_dimension_numbers<[1], [0], [0], [1], [0, 0, 1, 1], [], []>} : vector<4x8xf32>, vector<8x128xf32>, vector<4x128xf32> -> vector<4x128xf32>
    %18 = vector.broadcast %2 : vector<1x128xf32> to vector<4x128xf32>
    %19 = arith.addf %17, %18 : vector<4x128xf32>
    %cst_18 = arith.constant dense<0.000000e+00> : vector<4x128xf32>
    %20 = tpu.matmul %15, %1, %cst_18 {dimension_numbers = #tpu.dot_dimension_numbers<[1], [0], [0], [1], [0, 0, 1, 1], [], []>} : vector<4x32xf32>, vector<32x128xf32>, vector<4x128xf32> -> vector<4x128xf32>
    %21 = arith.addf %19, %20 : vector<4x128xf32>
    %cst_19 = arith.constant 5.000000e-01 : f32
    %22 = vector.broadcast %cst_19 : f32 to vector<4x128xf32>
    %23 = arith.mulf %22, %21 : vector<4x128xf32>
    %24 = math.tanh %23 : vector<4x128xf32>
    %cst_20 = arith.constant 5.000000e-01 : f32
    %25 = vector.broadcast %cst_20 : f32 to vector<4x128xf32>
    %26 = arith.mulf %25, %24 : vector<4x128xf32>
    %cst_21 = arith.constant 5.000000e-01 : f32
    %27 = vector.broadcast %cst_21 : f32 to vector<4x128xf32>
    %28 = arith.addf %26, %27 : vector<4x128xf32>
    %29 = math.tanh %21 : vector<4x128xf32>
    %30 = arith.select %14, %29, %28 : vector<4x128xi1>, vector<4x128xf32>
    %31 = vector.extract_strided_slice %30 {offsets = [0, 0], sizes = [4, 32], strides = [1, 1]} : vector<4x128xf32> to vector<4x32xf32>
    %32 = vector.extract_strided_slice %30 {offsets = [0, 32], sizes = [4, 32], strides = [1, 1]} : vector<4x128xf32> to vector<4x32xf32>
    %33 = vector.extract_strided_slice %30 {offsets = [0, 64], sizes = [4, 32], strides = [1, 1]} : vector<4x128xf32> to vector<4x32xf32>
    %34 = vector.extract_strided_slice %30 {offsets = [0, 96], sizes = [4, 32], strides = [1, 1]} : vector<4x128xf32> to vector<4x32xf32>
    %35 = arith.mulf %32, %15 : vector<4x32xf32>
    %36 = arith.mulf %31, %33 : vector<4x32xf32>
    %37 = arith.addf %35, %36 : vector<4x32xf32>
    %38 = math.tanh %37 : vector<4x32xf32>
    %39 = arith.mulf %34, %38 : vector<4x32xf32>
    %cst_22 = arith.constant dense<0.000000e+00> : vector<4x128xf32>
    %40 = tpu.matmul %39, %3, %cst_22 {dimension_numbers = #tpu.dot_dimension_numbers<[1], [0], [0], [1], [0, 0, 1, 1], [], []>} : vector<4x32xf32>, vector<32x128xf32>, vector<4x128xf32> -> vector<4x128xf32>
    %41 = vector.broadcast %5 : vector<1x128xf32> to vector<4x128xf32>
    %42 = arith.addf %40, %41 : vector<4x128xf32>
    %cst_23 = arith.constant dense<0.000000e+00> : vector<4x128xf32>
    %43 = tpu.matmul %15, %4, %cst_23 {dimension_numbers = #tpu.dot_dimension_numbers<[1], [0], [0], [1], [0, 0, 1, 1], [], []>} : vector<4x32xf32>, vector<32x128xf32>, vector<4x128xf32> -> vector<4x128xf32>
    %44 = arith.addf %42, %43 : vector<4x128xf32>
    %cst_24 = arith.constant 5.000000e-01 : f32
    %45 = vector.broadcast %cst_24 : f32 to vector<4x128xf32>
    %46 = arith.mulf %45, %44 : vector<4x128xf32>
    %47 = math.tanh %46 : vector<4x128xf32>
    %cst_25 = arith.constant 5.000000e-01 : f32
    %48 = vector.broadcast %cst_25 : f32 to vector<4x128xf32>
    %49 = arith.mulf %48, %47 : vector<4x128xf32>
    %cst_26 = arith.constant 5.000000e-01 : f32
    %50 = vector.broadcast %cst_26 : f32 to vector<4x128xf32>
    %51 = arith.addf %49, %50 : vector<4x128xf32>
    %52 = math.tanh %44 : vector<4x128xf32>
    %53 = arith.select %14, %52, %51 : vector<4x128xi1>, vector<4x128xf32>
    %54 = vector.extract_strided_slice %53 {offsets = [0, 0], sizes = [4, 32], strides = [1, 1]} : vector<4x128xf32> to vector<4x32xf32>
    %55 = vector.extract_strided_slice %53 {offsets = [0, 32], sizes = [4, 32], strides = [1, 1]} : vector<4x128xf32> to vector<4x32xf32>
    %56 = vector.extract_strided_slice %53 {offsets = [0, 64], sizes = [4, 32], strides = [1, 1]} : vector<4x128xf32> to vector<4x32xf32>
    %57 = vector.extract_strided_slice %53 {offsets = [0, 96], sizes = [4, 32], strides = [1, 1]} : vector<4x128xf32> to vector<4x32xf32>
    %58 = arith.mulf %55, %15 : vector<4x32xf32>
    %59 = arith.mulf %54, %56 : vector<4x32xf32>
    %60 = arith.addf %58, %59 : vector<4x32xf32>
    %61 = math.tanh %60 : vector<4x32xf32>
    %62 = arith.mulf %57, %61 : vector<4x32xf32>
    %63 = vector.extract_strided_slice %8 {offsets = [0, 8], sizes = [4, 8], strides = [1, 1]} : vector<4x64xf32> to vector<4x8xf32>
    %cst_27 = arith.constant dense<0.000000e+00> : vector<4x128xf32>
    %64 = tpu.matmul %63, %0, %cst_27 {dimension_numbers = #tpu.dot_dimension_numbers<[1], [0], [0], [1], [0, 0, 1, 1], [], []>} : vector<4x8xf32>, vector<8x128xf32>, vector<4x128xf32> -> vector<4x128xf32>
    %65 = vector.broadcast %2 : vector<1x128xf32> to vector<4x128xf32>
    %66 = arith.addf %64, %65 : vector<4x128xf32>
    %cst_28 = arith.constant dense<0.000000e+00> : vector<4x128xf32>
    %67 = tpu.matmul %39, %1, %cst_28 {dimension_numbers = #tpu.dot_dimension_numbers<[1], [0], [0], [1], [0, 0, 1, 1], [], []>} : vector<4x32xf32>, vector<32x128xf32>, vector<4x128xf32> -> vector<4x128xf32>
    %68 = arith.addf %66, %67 : vector<4x128xf32>
    %cst_29 = arith.constant 5.000000e-01 : f32
    %69 = vector.broadcast %cst_29 : f32 to vector<4x128xf32>
    %70 = arith.mulf %69, %68 : vector<4x128xf32>
    %71 = math.tanh %70 : vector<4x128xf32>
    %cst_30 = arith.constant 5.000000e-01 : f32
    %72 = vector.broadcast %cst_30 : f32 to vector<4x128xf32>
    %73 = arith.mulf %72, %71 : vector<4x128xf32>
    %cst_31 = arith.constant 5.000000e-01 : f32
    %74 = vector.broadcast %cst_31 : f32 to vector<4x128xf32>
    %75 = arith.addf %73, %74 : vector<4x128xf32>
    %76 = math.tanh %68 : vector<4x128xf32>
    %77 = arith.select %14, %76, %75 : vector<4x128xi1>, vector<4x128xf32>
    %78 = vector.extract_strided_slice %77 {offsets = [0, 0], sizes = [4, 32], strides = [1, 1]} : vector<4x128xf32> to vector<4x32xf32>
    %79 = vector.extract_strided_slice %77 {offsets = [0, 32], sizes = [4, 32], strides = [1, 1]} : vector<4x128xf32> to vector<4x32xf32>
    %80 = vector.extract_strided_slice %77 {offsets = [0, 64], sizes = [4, 32], strides = [1, 1]} : vector<4x128xf32> to vector<4x32xf32>
    %81 = vector.extract_strided_slice %77 {offsets = [0, 96], sizes = [4, 32], strides = [1, 1]} : vector<4x128xf32> to vector<4x32xf32>
    %82 = arith.mulf %79, %37 : vector<4x32xf32>
    %83 = arith.mulf %78, %80 : vector<4x32xf32>
    %84 = arith.addf %82, %83 : vector<4x32xf32>
    %85 = math.tanh %84 : vector<4x32xf32>
    %86 = arith.mulf %81, %85 : vector<4x32xf32>
    %cst_32 = arith.constant dense<0.000000e+00> : vector<4x128xf32>
    %87 = tpu.matmul %86, %3, %cst_32 {dimension_numbers = #tpu.dot_dimension_numbers<[1], [0], [0], [1], [0, 0, 1, 1], [], []>} : vector<4x32xf32>, vector<32x128xf32>, vector<4x128xf32> -> vector<4x128xf32>
    %88 = vector.broadcast %5 : vector<1x128xf32> to vector<4x128xf32>
    %89 = arith.addf %87, %88 : vector<4x128xf32>
    %cst_33 = arith.constant dense<0.000000e+00> : vector<4x128xf32>
    %90 = tpu.matmul %62, %4, %cst_33 {dimension_numbers = #tpu.dot_dimension_numbers<[1], [0], [0], [1], [0, 0, 1, 1], [], []>} : vector<4x32xf32>, vector<32x128xf32>, vector<4x128xf32> -> vector<4x128xf32>
    %91 = arith.addf %89, %90 : vector<4x128xf32>
    %cst_34 = arith.constant 5.000000e-01 : f32
    %92 = vector.broadcast %cst_34 : f32 to vector<4x128xf32>
    %93 = arith.mulf %92, %91 : vector<4x128xf32>
    %94 = math.tanh %93 : vector<4x128xf32>
    %cst_35 = arith.constant 5.000000e-01 : f32
    %95 = vector.broadcast %cst_35 : f32 to vector<4x128xf32>
    %96 = arith.mulf %95, %94 : vector<4x128xf32>
    %cst_36 = arith.constant 5.000000e-01 : f32
    %97 = vector.broadcast %cst_36 : f32 to vector<4x128xf32>
    %98 = arith.addf %96, %97 : vector<4x128xf32>
    %99 = math.tanh %91 : vector<4x128xf32>
    %100 = arith.select %14, %99, %98 : vector<4x128xi1>, vector<4x128xf32>
    %101 = vector.extract_strided_slice %100 {offsets = [0, 0], sizes = [4, 32], strides = [1, 1]} : vector<4x128xf32> to vector<4x32xf32>
    %102 = vector.extract_strided_slice %100 {offsets = [0, 32], sizes = [4, 32], strides = [1, 1]} : vector<4x128xf32> to vector<4x32xf32>
    %103 = vector.extract_strided_slice %100 {offsets = [0, 64], sizes = [4, 32], strides = [1, 1]} : vector<4x128xf32> to vector<4x32xf32>
    %104 = vector.extract_strided_slice %100 {offsets = [0, 96], sizes = [4, 32], strides = [1, 1]} : vector<4x128xf32> to vector<4x32xf32>
    %105 = arith.mulf %102, %60 : vector<4x32xf32>
    %106 = arith.mulf %101, %103 : vector<4x32xf32>
    %107 = arith.addf %105, %106 : vector<4x32xf32>
    %108 = math.tanh %107 : vector<4x32xf32>
    %109 = arith.mulf %104, %108 : vector<4x32xf32>
    %110 = vector.extract_strided_slice %8 {offsets = [0, 16], sizes = [4, 8], strides = [1, 1]} : vector<4x64xf32> to vector<4x8xf32>
    %cst_37 = arith.constant dense<0.000000e+00> : vector<4x128xf32>
    %111 = tpu.matmul %110, %0, %cst_37 {dimension_numbers = #tpu.dot_dimension_numbers<[1], [0], [0], [1], [0, 0, 1, 1], [], []>} : vector<4x8xf32>, vector<8x128xf32>, vector<4x128xf32> -> vector<4x128xf32>
    %112 = vector.broadcast %2 : vector<1x128xf32> to vector<4x128xf32>
    %113 = arith.addf %111, %112 : vector<4x128xf32>
    %cst_38 = arith.constant dense<0.000000e+00> : vector<4x128xf32>
    %114 = tpu.matmul %86, %1, %cst_38 {dimension_numbers = #tpu.dot_dimension_numbers<[1], [0], [0], [1], [0, 0, 1, 1], [], []>} : vector<4x32xf32>, vector<32x128xf32>, vector<4x128xf32> -> vector<4x128xf32>
    %115 = arith.addf %113, %114 : vector<4x128xf32>
    %cst_39 = arith.constant 5.000000e-01 : f32
    %116 = vector.broadcast %cst_39 : f32 to vector<4x128xf32>
    %117 = arith.mulf %116, %115 : vector<4x128xf32>
    %118 = math.tanh %117 : vector<4x128xf32>
    %cst_40 = arith.constant 5.000000e-01 : f32
    %119 = vector.broadcast %cst_40 : f32 to vector<4x128xf32>
    %120 = arith.mulf %119, %118 : vector<4x128xf32>
    %cst_41 = arith.constant 5.000000e-01 : f32
    %121 = vector.broadcast %cst_41 : f32 to vector<4x128xf32>
    %122 = arith.addf %120, %121 : vector<4x128xf32>
    %123 = math.tanh %115 : vector<4x128xf32>
    %124 = arith.select %14, %123, %122 : vector<4x128xi1>, vector<4x128xf32>
    %125 = vector.extract_strided_slice %124 {offsets = [0, 0], sizes = [4, 32], strides = [1, 1]} : vector<4x128xf32> to vector<4x32xf32>
    %126 = vector.extract_strided_slice %124 {offsets = [0, 32], sizes = [4, 32], strides = [1, 1]} : vector<4x128xf32> to vector<4x32xf32>
    %127 = vector.extract_strided_slice %124 {offsets = [0, 64], sizes = [4, 32], strides = [1, 1]} : vector<4x128xf32> to vector<4x32xf32>
    %128 = vector.extract_strided_slice %124 {offsets = [0, 96], sizes = [4, 32], strides = [1, 1]} : vector<4x128xf32> to vector<4x32xf32>
    %129 = arith.mulf %126, %84 : vector<4x32xf32>
    %130 = arith.mulf %125, %127 : vector<4x32xf32>
    %131 = arith.addf %129, %130 : vector<4x32xf32>
    %132 = math.tanh %131 : vector<4x32xf32>
    %133 = arith.mulf %128, %132 : vector<4x32xf32>
    %cst_42 = arith.constant dense<0.000000e+00> : vector<4x128xf32>
    %134 = tpu.matmul %133, %3, %cst_42 {dimension_numbers = #tpu.dot_dimension_numbers<[1], [0], [0], [1], [0, 0, 1, 1], [], []>} : vector<4x32xf32>, vector<32x128xf32>, vector<4x128xf32> -> vector<4x128xf32>
    %135 = vector.broadcast %5 : vector<1x128xf32> to vector<4x128xf32>
    %136 = arith.addf %134, %135 : vector<4x128xf32>
    %cst_43 = arith.constant dense<0.000000e+00> : vector<4x128xf32>
    %137 = tpu.matmul %109, %4, %cst_43 {dimension_numbers = #tpu.dot_dimension_numbers<[1], [0], [0], [1], [0, 0, 1, 1], [], []>} : vector<4x32xf32>, vector<32x128xf32>, vector<4x128xf32> -> vector<4x128xf32>
    %138 = arith.addf %136, %137 : vector<4x128xf32>
    %cst_44 = arith.constant 5.000000e-01 : f32
    %139 = vector.broadcast %cst_44 : f32 to vector<4x128xf32>
    %140 = arith.mulf %139, %138 : vector<4x128xf32>
    %141 = math.tanh %140 : vector<4x128xf32>
    %cst_45 = arith.constant 5.000000e-01 : f32
    %142 = vector.broadcast %cst_45 : f32 to vector<4x128xf32>
    %143 = arith.mulf %142, %141 : vector<4x128xf32>
    %cst_46 = arith.constant 5.000000e-01 : f32
    %144 = vector.broadcast %cst_46 : f32 to vector<4x128xf32>
    %145 = arith.addf %143, %144 : vector<4x128xf32>
    %146 = math.tanh %138 : vector<4x128xf32>
    %147 = arith.select %14, %146, %145 : vector<4x128xi1>, vector<4x128xf32>
    %148 = vector.extract_strided_slice %147 {offsets = [0, 0], sizes = [4, 32], strides = [1, 1]} : vector<4x128xf32> to vector<4x32xf32>
    %149 = vector.extract_strided_slice %147 {offsets = [0, 32], sizes = [4, 32], strides = [1, 1]} : vector<4x128xf32> to vector<4x32xf32>
    %150 = vector.extract_strided_slice %147 {offsets = [0, 64], sizes = [4, 32], strides = [1, 1]} : vector<4x128xf32> to vector<4x32xf32>
    %151 = vector.extract_strided_slice %147 {offsets = [0, 96], sizes = [4, 32], strides = [1, 1]} : vector<4x128xf32> to vector<4x32xf32>
    %152 = arith.mulf %149, %107 : vector<4x32xf32>
    %153 = arith.mulf %148, %150 : vector<4x32xf32>
    %154 = arith.addf %152, %153 : vector<4x32xf32>
    %155 = math.tanh %154 : vector<4x32xf32>
    %156 = arith.mulf %151, %155 : vector<4x32xf32>
    %157 = vector.extract_strided_slice %8 {offsets = [0, 24], sizes = [4, 8], strides = [1, 1]} : vector<4x64xf32> to vector<4x8xf32>
    %cst_47 = arith.constant dense<0.000000e+00> : vector<4x128xf32>
    %158 = tpu.matmul %157, %0, %cst_47 {dimension_numbers = #tpu.dot_dimension_numbers<[1], [0], [0], [1], [0, 0, 1, 1], [], []>} : vector<4x8xf32>, vector<8x128xf32>, vector<4x128xf32> -> vector<4x128xf32>
    %159 = vector.broadcast %2 : vector<1x128xf32> to vector<4x128xf32>
    %160 = arith.addf %158, %159 : vector<4x128xf32>
    %cst_48 = arith.constant dense<0.000000e+00> : vector<4x128xf32>
    %161 = tpu.matmul %133, %1, %cst_48 {dimension_numbers = #tpu.dot_dimension_numbers<[1], [0], [0], [1], [0, 0, 1, 1], [], []>} : vector<4x32xf32>, vector<32x128xf32>, vector<4x128xf32> -> vector<4x128xf32>
    %162 = arith.addf %160, %161 : vector<4x128xf32>
    %cst_49 = arith.constant 5.000000e-01 : f32
    %163 = vector.broadcast %cst_49 : f32 to vector<4x128xf32>
    %164 = arith.mulf %163, %162 : vector<4x128xf32>
    %165 = math.tanh %164 : vector<4x128xf32>
    %cst_50 = arith.constant 5.000000e-01 : f32
    %166 = vector.broadcast %cst_50 : f32 to vector<4x128xf32>
    %167 = arith.mulf %166, %165 : vector<4x128xf32>
    %cst_51 = arith.constant 5.000000e-01 : f32
    %168 = vector.broadcast %cst_51 : f32 to vector<4x128xf32>
    %169 = arith.addf %167, %168 : vector<4x128xf32>
    %170 = math.tanh %162 : vector<4x128xf32>
    %171 = arith.select %14, %170, %169 : vector<4x128xi1>, vector<4x128xf32>
    %172 = vector.extract_strided_slice %171 {offsets = [0, 0], sizes = [4, 32], strides = [1, 1]} : vector<4x128xf32> to vector<4x32xf32>
    %173 = vector.extract_strided_slice %171 {offsets = [0, 32], sizes = [4, 32], strides = [1, 1]} : vector<4x128xf32> to vector<4x32xf32>
    %174 = vector.extract_strided_slice %171 {offsets = [0, 64], sizes = [4, 32], strides = [1, 1]} : vector<4x128xf32> to vector<4x32xf32>
    %175 = vector.extract_strided_slice %171 {offsets = [0, 96], sizes = [4, 32], strides = [1, 1]} : vector<4x128xf32> to vector<4x32xf32>
    %176 = arith.mulf %173, %131 : vector<4x32xf32>
    %177 = arith.mulf %172, %174 : vector<4x32xf32>
    %178 = arith.addf %176, %177 : vector<4x32xf32>
    %179 = math.tanh %178 : vector<4x32xf32>
    %180 = arith.mulf %175, %179 : vector<4x32xf32>
    %cst_52 = arith.constant dense<0.000000e+00> : vector<4x128xf32>
    %181 = tpu.matmul %180, %3, %cst_52 {dimension_numbers = #tpu.dot_dimension_numbers<[1], [0], [0], [1], [0, 0, 1, 1], [], []>} : vector<4x32xf32>, vector<32x128xf32>, vector<4x128xf32> -> vector<4x128xf32>
    %182 = vector.broadcast %5 : vector<1x128xf32> to vector<4x128xf32>
    %183 = arith.addf %181, %182 : vector<4x128xf32>
    %cst_53 = arith.constant dense<0.000000e+00> : vector<4x128xf32>
    %184 = tpu.matmul %156, %4, %cst_53 {dimension_numbers = #tpu.dot_dimension_numbers<[1], [0], [0], [1], [0, 0, 1, 1], [], []>} : vector<4x32xf32>, vector<32x128xf32>, vector<4x128xf32> -> vector<4x128xf32>
    %185 = arith.addf %183, %184 : vector<4x128xf32>
    %cst_54 = arith.constant 5.000000e-01 : f32
    %186 = vector.broadcast %cst_54 : f32 to vector<4x128xf32>
    %187 = arith.mulf %186, %185 : vector<4x128xf32>
    %188 = math.tanh %187 : vector<4x128xf32>
    %cst_55 = arith.constant 5.000000e-01 : f32
    %189 = vector.broadcast %cst_55 : f32 to vector<4x128xf32>
    %190 = arith.mulf %189, %188 : vector<4x128xf32>
    %cst_56 = arith.constant 5.000000e-01 : f32
    %191 = vector.broadcast %cst_56 : f32 to vector<4x128xf32>
    %192 = arith.addf %190, %191 : vector<4x128xf32>
    %193 = math.tanh %185 : vector<4x128xf32>
    %194 = arith.select %14, %193, %192 : vector<4x128xi1>, vector<4x128xf32>
    %195 = vector.extract_strided_slice %194 {offsets = [0, 0], sizes = [4, 32], strides = [1, 1]} : vector<4x128xf32> to vector<4x32xf32>
    %196 = vector.extract_strided_slice %194 {offsets = [0, 32], sizes = [4, 32], strides = [1, 1]} : vector<4x128xf32> to vector<4x32xf32>
    %197 = vector.extract_strided_slice %194 {offsets = [0, 64], sizes = [4, 32], strides = [1, 1]} : vector<4x128xf32> to vector<4x32xf32>
    %198 = vector.extract_strided_slice %194 {offsets = [0, 96], sizes = [4, 32], strides = [1, 1]} : vector<4x128xf32> to vector<4x32xf32>
    %199 = arith.mulf %196, %154 : vector<4x32xf32>
    %200 = arith.mulf %195, %197 : vector<4x32xf32>
    %201 = arith.addf %199, %200 : vector<4x32xf32>
    %202 = math.tanh %201 : vector<4x32xf32>
    %203 = arith.mulf %198, %202 : vector<4x32xf32>
    %204 = vector.extract_strided_slice %8 {offsets = [0, 32], sizes = [4, 8], strides = [1, 1]} : vector<4x64xf32> to vector<4x8xf32>
    %cst_57 = arith.constant dense<0.000000e+00> : vector<4x128xf32>
    %205 = tpu.matmul %204, %0, %cst_57 {dimension_numbers = #tpu.dot_dimension_numbers<[1], [0], [0], [1], [0, 0, 1, 1], [], []>} : vector<4x8xf32>, vector<8x128xf32>, vector<4x128xf32> -> vector<4x128xf32>
    %206 = vector.broadcast %2 : vector<1x128xf32> to vector<4x128xf32>
    %207 = arith.addf %205, %206 : vector<4x128xf32>
    %cst_58 = arith.constant dense<0.000000e+00> : vector<4x128xf32>
    %208 = tpu.matmul %180, %1, %cst_58 {dimension_numbers = #tpu.dot_dimension_numbers<[1], [0], [0], [1], [0, 0, 1, 1], [], []>} : vector<4x32xf32>, vector<32x128xf32>, vector<4x128xf32> -> vector<4x128xf32>
    %209 = arith.addf %207, %208 : vector<4x128xf32>
    %cst_59 = arith.constant 5.000000e-01 : f32
    %210 = vector.broadcast %cst_59 : f32 to vector<4x128xf32>
    %211 = arith.mulf %210, %209 : vector<4x128xf32>
    %212 = math.tanh %211 : vector<4x128xf32>
    %cst_60 = arith.constant 5.000000e-01 : f32
    %213 = vector.broadcast %cst_60 : f32 to vector<4x128xf32>
    %214 = arith.mulf %213, %212 : vector<4x128xf32>
    %cst_61 = arith.constant 5.000000e-01 : f32
    %215 = vector.broadcast %cst_61 : f32 to vector<4x128xf32>
    %216 = arith.addf %214, %215 : vector<4x128xf32>
    %217 = math.tanh %209 : vector<4x128xf32>
    %218 = arith.select %14, %217, %216 : vector<4x128xi1>, vector<4x128xf32>
    %219 = vector.extract_strided_slice %218 {offsets = [0, 0], sizes = [4, 32], strides = [1, 1]} : vector<4x128xf32> to vector<4x32xf32>
    %220 = vector.extract_strided_slice %218 {offsets = [0, 32], sizes = [4, 32], strides = [1, 1]} : vector<4x128xf32> to vector<4x32xf32>
    %221 = vector.extract_strided_slice %218 {offsets = [0, 64], sizes = [4, 32], strides = [1, 1]} : vector<4x128xf32> to vector<4x32xf32>
    %222 = vector.extract_strided_slice %218 {offsets = [0, 96], sizes = [4, 32], strides = [1, 1]} : vector<4x128xf32> to vector<4x32xf32>
    %223 = arith.mulf %220, %178 : vector<4x32xf32>
    %224 = arith.mulf %219, %221 : vector<4x32xf32>
    %225 = arith.addf %223, %224 : vector<4x32xf32>
    %226 = math.tanh %225 : vector<4x32xf32>
    %227 = arith.mulf %222, %226 : vector<4x32xf32>
    %cst_62 = arith.constant dense<0.000000e+00> : vector<4x128xf32>
    %228 = tpu.matmul %227, %3, %cst_62 {dimension_numbers = #tpu.dot_dimension_numbers<[1], [0], [0], [1], [0, 0, 1, 1], [], []>} : vector<4x32xf32>, vector<32x128xf32>, vector<4x128xf32> -> vector<4x128xf32>
    %229 = vector.broadcast %5 : vector<1x128xf32> to vector<4x128xf32>
    %230 = arith.addf %228, %229 : vector<4x128xf32>
    %cst_63 = arith.constant dense<0.000000e+00> : vector<4x128xf32>
    %231 = tpu.matmul %203, %4, %cst_63 {dimension_numbers = #tpu.dot_dimension_numbers<[1], [0], [0], [1], [0, 0, 1, 1], [], []>} : vector<4x32xf32>, vector<32x128xf32>, vector<4x128xf32> -> vector<4x128xf32>
    %232 = arith.addf %230, %231 : vector<4x128xf32>
    %cst_64 = arith.constant 5.000000e-01 : f32
    %233 = vector.broadcast %cst_64 : f32 to vector<4x128xf32>
    %234 = arith.mulf %233, %232 : vector<4x128xf32>
    %235 = math.tanh %234 : vector<4x128xf32>
    %cst_65 = arith.constant 5.000000e-01 : f32
    %236 = vector.broadcast %cst_65 : f32 to vector<4x128xf32>
    %237 = arith.mulf %236, %235 : vector<4x128xf32>
    %cst_66 = arith.constant 5.000000e-01 : f32
    %238 = vector.broadcast %cst_66 : f32 to vector<4x128xf32>
    %239 = arith.addf %237, %238 : vector<4x128xf32>
    %240 = math.tanh %232 : vector<4x128xf32>
    %241 = arith.select %14, %240, %239 : vector<4x128xi1>, vector<4x128xf32>
    %242 = vector.extract_strided_slice %241 {offsets = [0, 0], sizes = [4, 32], strides = [1, 1]} : vector<4x128xf32> to vector<4x32xf32>
    %243 = vector.extract_strided_slice %241 {offsets = [0, 32], sizes = [4, 32], strides = [1, 1]} : vector<4x128xf32> to vector<4x32xf32>
    %244 = vector.extract_strided_slice %241 {offsets = [0, 64], sizes = [4, 32], strides = [1, 1]} : vector<4x128xf32> to vector<4x32xf32>
    %245 = vector.extract_strided_slice %241 {offsets = [0, 96], sizes = [4, 32], strides = [1, 1]} : vector<4x128xf32> to vector<4x32xf32>
    %246 = arith.mulf %243, %201 : vector<4x32xf32>
    %247 = arith.mulf %242, %244 : vector<4x32xf32>
    %248 = arith.addf %246, %247 : vector<4x32xf32>
    %249 = math.tanh %248 : vector<4x32xf32>
    %250 = arith.mulf %245, %249 : vector<4x32xf32>
    %251 = vector.extract_strided_slice %8 {offsets = [0, 40], sizes = [4, 8], strides = [1, 1]} : vector<4x64xf32> to vector<4x8xf32>
    %cst_67 = arith.constant dense<0.000000e+00> : vector<4x128xf32>
    %252 = tpu.matmul %251, %0, %cst_67 {dimension_numbers = #tpu.dot_dimension_numbers<[1], [0], [0], [1], [0, 0, 1, 1], [], []>} : vector<4x8xf32>, vector<8x128xf32>, vector<4x128xf32> -> vector<4x128xf32>
    %253 = vector.broadcast %2 : vector<1x128xf32> to vector<4x128xf32>
    %254 = arith.addf %252, %253 : vector<4x128xf32>
    %cst_68 = arith.constant dense<0.000000e+00> : vector<4x128xf32>
    %255 = tpu.matmul %227, %1, %cst_68 {dimension_numbers = #tpu.dot_dimension_numbers<[1], [0], [0], [1], [0, 0, 1, 1], [], []>} : vector<4x32xf32>, vector<32x128xf32>, vector<4x128xf32> -> vector<4x128xf32>
    %256 = arith.addf %254, %255 : vector<4x128xf32>
    %cst_69 = arith.constant 5.000000e-01 : f32
    %257 = vector.broadcast %cst_69 : f32 to vector<4x128xf32>
    %258 = arith.mulf %257, %256 : vector<4x128xf32>
    %259 = math.tanh %258 : vector<4x128xf32>
    %cst_70 = arith.constant 5.000000e-01 : f32
    %260 = vector.broadcast %cst_70 : f32 to vector<4x128xf32>
    %261 = arith.mulf %260, %259 : vector<4x128xf32>
    %cst_71 = arith.constant 5.000000e-01 : f32
    %262 = vector.broadcast %cst_71 : f32 to vector<4x128xf32>
    %263 = arith.addf %261, %262 : vector<4x128xf32>
    %264 = math.tanh %256 : vector<4x128xf32>
    %265 = arith.select %14, %264, %263 : vector<4x128xi1>, vector<4x128xf32>
    %266 = vector.extract_strided_slice %265 {offsets = [0, 0], sizes = [4, 32], strides = [1, 1]} : vector<4x128xf32> to vector<4x32xf32>
    %267 = vector.extract_strided_slice %265 {offsets = [0, 32], sizes = [4, 32], strides = [1, 1]} : vector<4x128xf32> to vector<4x32xf32>
    %268 = vector.extract_strided_slice %265 {offsets = [0, 64], sizes = [4, 32], strides = [1, 1]} : vector<4x128xf32> to vector<4x32xf32>
    %269 = vector.extract_strided_slice %265 {offsets = [0, 96], sizes = [4, 32], strides = [1, 1]} : vector<4x128xf32> to vector<4x32xf32>
    %270 = arith.mulf %267, %225 : vector<4x32xf32>
    %271 = arith.mulf %266, %268 : vector<4x32xf32>
    %272 = arith.addf %270, %271 : vector<4x32xf32>
    %273 = math.tanh %272 : vector<4x32xf32>
    %274 = arith.mulf %269, %273 : vector<4x32xf32>
    %cst_72 = arith.constant dense<0.000000e+00> : vector<4x128xf32>
    %275 = tpu.matmul %274, %3, %cst_72 {dimension_numbers = #tpu.dot_dimension_numbers<[1], [0], [0], [1], [0, 0, 1, 1], [], []>} : vector<4x32xf32>, vector<32x128xf32>, vector<4x128xf32> -> vector<4x128xf32>
    %276 = vector.broadcast %5 : vector<1x128xf32> to vector<4x128xf32>
    %277 = arith.addf %275, %276 : vector<4x128xf32>
    %cst_73 = arith.constant dense<0.000000e+00> : vector<4x128xf32>
    %278 = tpu.matmul %250, %4, %cst_73 {dimension_numbers = #tpu.dot_dimension_numbers<[1], [0], [0], [1], [0, 0, 1, 1], [], []>} : vector<4x32xf32>, vector<32x128xf32>, vector<4x128xf32> -> vector<4x128xf32>
    %279 = arith.addf %277, %278 : vector<4x128xf32>
    %cst_74 = arith.constant 5.000000e-01 : f32
    %280 = vector.broadcast %cst_74 : f32 to vector<4x128xf32>
    %281 = arith.mulf %280, %279 : vector<4x128xf32>
    %282 = math.tanh %281 : vector<4x128xf32>
    %cst_75 = arith.constant 5.000000e-01 : f32
    %283 = vector.broadcast %cst_75 : f32 to vector<4x128xf32>
    %284 = arith.mulf %283, %282 : vector<4x128xf32>
    %cst_76 = arith.constant 5.000000e-01 : f32
    %285 = vector.broadcast %cst_76 : f32 to vector<4x128xf32>
    %286 = arith.addf %284, %285 : vector<4x128xf32>
    %287 = math.tanh %279 : vector<4x128xf32>
    %288 = arith.select %14, %287, %286 : vector<4x128xi1>, vector<4x128xf32>
    %289 = vector.extract_strided_slice %288 {offsets = [0, 0], sizes = [4, 32], strides = [1, 1]} : vector<4x128xf32> to vector<4x32xf32>
    %290 = vector.extract_strided_slice %288 {offsets = [0, 32], sizes = [4, 32], strides = [1, 1]} : vector<4x128xf32> to vector<4x32xf32>
    %291 = vector.extract_strided_slice %288 {offsets = [0, 64], sizes = [4, 32], strides = [1, 1]} : vector<4x128xf32> to vector<4x32xf32>
    %292 = vector.extract_strided_slice %288 {offsets = [0, 96], sizes = [4, 32], strides = [1, 1]} : vector<4x128xf32> to vector<4x32xf32>
    %293 = arith.mulf %290, %248 : vector<4x32xf32>
    %294 = arith.mulf %289, %291 : vector<4x32xf32>
    %295 = arith.addf %293, %294 : vector<4x32xf32>
    %296 = math.tanh %295 : vector<4x32xf32>
    %297 = arith.mulf %292, %296 : vector<4x32xf32>
    %298 = vector.extract_strided_slice %8 {offsets = [0, 48], sizes = [4, 8], strides = [1, 1]} : vector<4x64xf32> to vector<4x8xf32>
    %cst_77 = arith.constant dense<0.000000e+00> : vector<4x128xf32>
    %299 = tpu.matmul %298, %0, %cst_77 {dimension_numbers = #tpu.dot_dimension_numbers<[1], [0], [0], [1], [0, 0, 1, 1], [], []>} : vector<4x8xf32>, vector<8x128xf32>, vector<4x128xf32> -> vector<4x128xf32>
    %300 = vector.broadcast %2 : vector<1x128xf32> to vector<4x128xf32>
    %301 = arith.addf %299, %300 : vector<4x128xf32>
    %cst_78 = arith.constant dense<0.000000e+00> : vector<4x128xf32>
    %302 = tpu.matmul %274, %1, %cst_78 {dimension_numbers = #tpu.dot_dimension_numbers<[1], [0], [0], [1], [0, 0, 1, 1], [], []>} : vector<4x32xf32>, vector<32x128xf32>, vector<4x128xf32> -> vector<4x128xf32>
    %303 = arith.addf %301, %302 : vector<4x128xf32>
    %cst_79 = arith.constant 5.000000e-01 : f32
    %304 = vector.broadcast %cst_79 : f32 to vector<4x128xf32>
    %305 = arith.mulf %304, %303 : vector<4x128xf32>
    %306 = math.tanh %305 : vector<4x128xf32>
    %cst_80 = arith.constant 5.000000e-01 : f32
    %307 = vector.broadcast %cst_80 : f32 to vector<4x128xf32>
    %308 = arith.mulf %307, %306 : vector<4x128xf32>
    %cst_81 = arith.constant 5.000000e-01 : f32
    %309 = vector.broadcast %cst_81 : f32 to vector<4x128xf32>
    %310 = arith.addf %308, %309 : vector<4x128xf32>
    %311 = math.tanh %303 : vector<4x128xf32>
    %312 = arith.select %14, %311, %310 : vector<4x128xi1>, vector<4x128xf32>
    %313 = vector.extract_strided_slice %312 {offsets = [0, 0], sizes = [4, 32], strides = [1, 1]} : vector<4x128xf32> to vector<4x32xf32>
    %314 = vector.extract_strided_slice %312 {offsets = [0, 32], sizes = [4, 32], strides = [1, 1]} : vector<4x128xf32> to vector<4x32xf32>
    %315 = vector.extract_strided_slice %312 {offsets = [0, 64], sizes = [4, 32], strides = [1, 1]} : vector<4x128xf32> to vector<4x32xf32>
    %316 = vector.extract_strided_slice %312 {offsets = [0, 96], sizes = [4, 32], strides = [1, 1]} : vector<4x128xf32> to vector<4x32xf32>
    %317 = arith.mulf %314, %272 : vector<4x32xf32>
    %318 = arith.mulf %313, %315 : vector<4x32xf32>
    %319 = arith.addf %317, %318 : vector<4x32xf32>
    %320 = math.tanh %319 : vector<4x32xf32>
    %321 = arith.mulf %316, %320 : vector<4x32xf32>
    %cst_82 = arith.constant dense<0.000000e+00> : vector<4x128xf32>
    %322 = tpu.matmul %321, %3, %cst_82 {dimension_numbers = #tpu.dot_dimension_numbers<[1], [0], [0], [1], [0, 0, 1, 1], [], []>} : vector<4x32xf32>, vector<32x128xf32>, vector<4x128xf32> -> vector<4x128xf32>
    %323 = vector.broadcast %5 : vector<1x128xf32> to vector<4x128xf32>
    %324 = arith.addf %322, %323 : vector<4x128xf32>
    %cst_83 = arith.constant dense<0.000000e+00> : vector<4x128xf32>
    %325 = tpu.matmul %297, %4, %cst_83 {dimension_numbers = #tpu.dot_dimension_numbers<[1], [0], [0], [1], [0, 0, 1, 1], [], []>} : vector<4x32xf32>, vector<32x128xf32>, vector<4x128xf32> -> vector<4x128xf32>
    %326 = arith.addf %324, %325 : vector<4x128xf32>
    %cst_84 = arith.constant 5.000000e-01 : f32
    %327 = vector.broadcast %cst_84 : f32 to vector<4x128xf32>
    %328 = arith.mulf %327, %326 : vector<4x128xf32>
    %329 = math.tanh %328 : vector<4x128xf32>
    %cst_85 = arith.constant 5.000000e-01 : f32
    %330 = vector.broadcast %cst_85 : f32 to vector<4x128xf32>
    %331 = arith.mulf %330, %329 : vector<4x128xf32>
    %cst_86 = arith.constant 5.000000e-01 : f32
    %332 = vector.broadcast %cst_86 : f32 to vector<4x128xf32>
    %333 = arith.addf %331, %332 : vector<4x128xf32>
    %334 = math.tanh %326 : vector<4x128xf32>
    %335 = arith.select %14, %334, %333 : vector<4x128xi1>, vector<4x128xf32>
    %336 = vector.extract_strided_slice %335 {offsets = [0, 0], sizes = [4, 32], strides = [1, 1]} : vector<4x128xf32> to vector<4x32xf32>
    %337 = vector.extract_strided_slice %335 {offsets = [0, 32], sizes = [4, 32], strides = [1, 1]} : vector<4x128xf32> to vector<4x32xf32>
    %338 = vector.extract_strided_slice %335 {offsets = [0, 64], sizes = [4, 32], strides = [1, 1]} : vector<4x128xf32> to vector<4x32xf32>
    %339 = vector.extract_strided_slice %335 {offsets = [0, 96], sizes = [4, 32], strides = [1, 1]} : vector<4x128xf32> to vector<4x32xf32>
    %340 = arith.mulf %337, %295 : vector<4x32xf32>
    %341 = arith.mulf %336, %338 : vector<4x32xf32>
    %342 = arith.addf %340, %341 : vector<4x32xf32>
    %343 = math.tanh %342 : vector<4x32xf32>
    %344 = arith.mulf %339, %343 : vector<4x32xf32>
    %345 = vector.extract_strided_slice %8 {offsets = [0, 56], sizes = [4, 8], strides = [1, 1]} : vector<4x64xf32> to vector<4x8xf32>
    %cst_87 = arith.constant dense<0.000000e+00> : vector<4x128xf32>
    %346 = tpu.matmul %345, %0, %cst_87 {dimension_numbers = #tpu.dot_dimension_numbers<[1], [0], [0], [1], [0, 0, 1, 1], [], []>} : vector<4x8xf32>, vector<8x128xf32>, vector<4x128xf32> -> vector<4x128xf32>
    %347 = vector.broadcast %2 : vector<1x128xf32> to vector<4x128xf32>
    %348 = arith.addf %346, %347 : vector<4x128xf32>
    %cst_88 = arith.constant dense<0.000000e+00> : vector<4x128xf32>
    %349 = tpu.matmul %321, %1, %cst_88 {dimension_numbers = #tpu.dot_dimension_numbers<[1], [0], [0], [1], [0, 0, 1, 1], [], []>} : vector<4x32xf32>, vector<32x128xf32>, vector<4x128xf32> -> vector<4x128xf32>
    %350 = arith.addf %348, %349 : vector<4x128xf32>
    %cst_89 = arith.constant 5.000000e-01 : f32
    %351 = vector.broadcast %cst_89 : f32 to vector<4x128xf32>
    %352 = arith.mulf %351, %350 : vector<4x128xf32>
    %353 = math.tanh %352 : vector<4x128xf32>
    %cst_90 = arith.constant 5.000000e-01 : f32
    %354 = vector.broadcast %cst_90 : f32 to vector<4x128xf32>
    %355 = arith.mulf %354, %353 : vector<4x128xf32>
    %cst_91 = arith.constant 5.000000e-01 : f32
    %356 = vector.broadcast %cst_91 : f32 to vector<4x128xf32>
    %357 = arith.addf %355, %356 : vector<4x128xf32>
    %358 = math.tanh %350 : vector<4x128xf32>
    %359 = arith.select %14, %358, %357 : vector<4x128xi1>, vector<4x128xf32>
    %360 = vector.extract_strided_slice %359 {offsets = [0, 0], sizes = [4, 32], strides = [1, 1]} : vector<4x128xf32> to vector<4x32xf32>
    %361 = vector.extract_strided_slice %359 {offsets = [0, 32], sizes = [4, 32], strides = [1, 1]} : vector<4x128xf32> to vector<4x32xf32>
    %362 = vector.extract_strided_slice %359 {offsets = [0, 64], sizes = [4, 32], strides = [1, 1]} : vector<4x128xf32> to vector<4x32xf32>
    %363 = vector.extract_strided_slice %359 {offsets = [0, 96], sizes = [4, 32], strides = [1, 1]} : vector<4x128xf32> to vector<4x32xf32>
    %364 = arith.mulf %361, %319 : vector<4x32xf32>
    %365 = arith.mulf %360, %362 : vector<4x32xf32>
    %366 = arith.addf %364, %365 : vector<4x32xf32>
    %367 = math.tanh %366 : vector<4x32xf32>
    %368 = arith.mulf %363, %367 : vector<4x32xf32>
    %cst_92 = arith.constant dense<0.000000e+00> : vector<4x128xf32>
    %369 = tpu.matmul %368, %3, %cst_92 {dimension_numbers = #tpu.dot_dimension_numbers<[1], [0], [0], [1], [0, 0, 1, 1], [], []>} : vector<4x32xf32>, vector<32x128xf32>, vector<4x128xf32> -> vector<4x128xf32>
    %370 = vector.broadcast %5 : vector<1x128xf32> to vector<4x128xf32>
    %371 = arith.addf %369, %370 : vector<4x128xf32>
    %cst_93 = arith.constant dense<0.000000e+00> : vector<4x128xf32>
    %372 = tpu.matmul %344, %4, %cst_93 {dimension_numbers = #tpu.dot_dimension_numbers<[1], [0], [0], [1], [0, 0, 1, 1], [], []>} : vector<4x32xf32>, vector<32x128xf32>, vector<4x128xf32> -> vector<4x128xf32>
    %373 = arith.addf %371, %372 : vector<4x128xf32>
    %cst_94 = arith.constant 5.000000e-01 : f32
    %374 = vector.broadcast %cst_94 : f32 to vector<4x128xf32>
    %375 = arith.mulf %374, %373 : vector<4x128xf32>
    %376 = math.tanh %375 : vector<4x128xf32>
    %cst_95 = arith.constant 5.000000e-01 : f32
    %377 = vector.broadcast %cst_95 : f32 to vector<4x128xf32>
    %378 = arith.mulf %377, %376 : vector<4x128xf32>
    %cst_96 = arith.constant 5.000000e-01 : f32
    %379 = vector.broadcast %cst_96 : f32 to vector<4x128xf32>
    %380 = arith.addf %378, %379 : vector<4x128xf32>
    %381 = math.tanh %373 : vector<4x128xf32>
    %382 = arith.select %14, %381, %380 : vector<4x128xi1>, vector<4x128xf32>
    %383 = vector.extract_strided_slice %382 {offsets = [0, 0], sizes = [4, 32], strides = [1, 1]} : vector<4x128xf32> to vector<4x32xf32>
    %384 = vector.extract_strided_slice %382 {offsets = [0, 32], sizes = [4, 32], strides = [1, 1]} : vector<4x128xf32> to vector<4x32xf32>
    %385 = vector.extract_strided_slice %382 {offsets = [0, 64], sizes = [4, 32], strides = [1, 1]} : vector<4x128xf32> to vector<4x32xf32>
    %386 = vector.extract_strided_slice %382 {offsets = [0, 96], sizes = [4, 32], strides = [1, 1]} : vector<4x128xf32> to vector<4x32xf32>
    %387 = arith.mulf %384, %342 : vector<4x32xf32>
    %388 = arith.mulf %383, %385 : vector<4x32xf32>
    %389 = arith.addf %387, %388 : vector<4x32xf32>
    %390 = math.tanh %389 : vector<4x32xf32>
    %391 = arith.mulf %386, %390 : vector<4x32xf32>
    %cst_97 = arith.constant dense<0.000000e+00> : vector<4x1xf32>
    %392 = tpu.matmul %391, %6, %cst_97 {dimension_numbers = #tpu.dot_dimension_numbers<[1], [0], [0], [1], [0, 0, 1, 1], [], []>} : vector<4x32xf32>, vector<32x1xf32>, vector<4x1xf32> -> vector<4x1xf32>
    %393 = vector.broadcast %7 : vector<1x1xf32> to vector<4x1xf32>
    %394 = arith.addf %392, %393 : vector<4x1xf32>
    %c0_98 = arith.constant 0 : index
    %c0_99 = arith.constant 0 : index
    %395 = vector.load %arg9[%c0_98, %c0_99] : memref<4x1xf32, #tpu.memory_space<vmem>>, vector<4x1xf32>
    tpu.vector_store %arg9[%c0_98, %c0_99], %394 {strides = array<i32>} : memref<4x1xf32, #tpu.memory_space<vmem>>, vector<4x1xf32>,
    return
  }
}

</mosaic_0001>

<llo_original>
// kernel: lstm_model_forward.1
$region0: #{lstm_model_forward.1}
  #allocation0 [shape = 'u32[]', space=smem, size = 0x4, offset = 0x4, fixed_abs, tag = 'smem constant byte address 0x4 - core index']
  #allocation1 [shape = 'u32[144,128]{1,0:T(1,128)}', space=vmem, size = 0x12000, scoped, tag = 'internal scratch']
  #allocation2 [shape = 'f32[1,1]{1,0:T(1,128)S(1)}', space=vmem, size = 0x200, scoped, tag = 'scoped memory for lstm_model_forward.1']
  %s0 = inlined_call_operand.vmem [shape: f32[4,64], index: 0, kind: input, shape index: {}]
  %s1 = inlined_call_operand.vmem [shape: f32[8,128], index: 1, kind: input, shape index: {}]
  %s2 = inlined_call_operand.vmem [shape: f32[32,128], index: 2, kind: input, shape index: {}]
  %s3 = inlined_call_operand.vmem [shape: f32[1,128], index: 3, kind: input, shape index: {}]
  %s4 = inlined_call_operand.vmem [shape: f32[32,128], index: 4, kind: input, shape index: {}]
  %s5 = inlined_call_operand.hbm [shape: f32[32,128], index: 5, kind: input, shape index: {}]
  %s6 = inlined_call_operand.vmem [shape: f32[1,128], index: 6, kind: input, shape index: {}]
  %s7 = inlined_call_operand.vmem [shape: f32[32,1], index: 7, kind: input, shape index: {}]
  %s8 = inlined_call_operand.<no memory space> [shape: f32[1,1], index: 8, kind: input, shape index: {}]
  %s9 = inlined_call_operand.vmem [shape: f32[4,1], index: 9, kind: output, shape index: {}]
  %s10 = sld [smem:[#allocation0]]
  $region50: #{lstm_model_forward.1} parent=0
    _
  %s12 = ssub.s32 1, %s10
  %s13 = scalar_select 0, %s12, %s10
  %v14 = vstv %s8
  %15 = vst [vmem:[#allocation2] sm:$0x1] %v14
  $region1: #{lstm_model_forward.1} parent=0
    #allocation3 [shape = 'u8[16384]{0}', space=vmem, size = 0x4000, scoped, tag = 'input window, operand 5, single buffered']
    #allocation4 [shape = 's32[1]{0}', space=sflag, size = 0x4, scoped, tag = 'scoped memory for lstm_model_forward.1']
    %16 = vsyncpa [#allocation4], 0
    // Predicated region
    $region2: #{lstm_model_forward.1} parent=1 // pred_check
      _
    $region3: #{lstm_model_forward.1} parent=1 // pred_check_branch
      %18 = sbr.rel (0) target = $region5
    $region4: #{lstm_model_forward.1} parent=1 // pred_region
      _
    $region5: #{lstm_model_forward.1} parent=1 // pred_fallthru
      _
    // Predicated region
    $region6: #{lstm_model_forward.1} parent=1 // pred_check
      _
    $region7: #{lstm_model_forward.1} parent=1 // pred_check_branch
      %20 = sbr.rel (0) target = $region9
    $region8: #{lstm_model_forward.1} parent=1 // pred_region
      _
    $region9: #{lstm_model_forward.1} parent=1 // pred_fallthru
      _
    // Predicated region
    $region10: #{lstm_model_forward.1} parent=1 // pred_check
      _
    $region11: #{lstm_model_forward.1} parent=1 // pred_check_branch
      %22 = sbr.rel (0) target = $region13
    $region12: #{lstm_model_forward.1} parent=1 // pred_region
      _
    $region13: #{lstm_model_forward.1} parent=1 // pred_fallthru
      _
    // Predicated region
    $region14: #{lstm_model_forward.1} parent=1 // pred_check
      _
    $region15: #{lstm_model_forward.1} parent=1 // pred_check_branch
      %24 = sbr.rel (0) target = $region17
    $region16: #{lstm_model_forward.1} parent=1 // pred_region
      _
    $region17: #{lstm_model_forward.1} parent=1 // pred_fallthru
      _
    // Predicated region
    $region18: #{lstm_model_forward.1} parent=1 // pred_check
      _
    $region19: #{lstm_model_forward.1} parent=1 // pred_check_branch
      %26 = sbr.rel (0) target = $region21
    $region20: #{lstm_model_forward.1} parent=1 // pred_region
      _
    $region21: #{lstm_model_forward.1} parent=1 // pred_fallthru
      _
    // Predicated region
    $region22: #{lstm_model_forward.1} parent=1 // pred_check
      _
    $region23: #{lstm_model_forward.1} parent=1 // pred_check_branch
      %28 = sbr.rel (0) target = $region25
    $region24: #{lstm_model_forward.1} parent=1 // pred_region
      %s30 = ssub.s32 512, 512
      %31 = vsyncadd [#allocation4], %s30
      %s32 = sshll.u32 [#allocation3], 4
      %s33 = int_to_ptr.vmem [resolvable:$true] %s32
      %38 = dma.hbm_to_vmem [thread:$0]  %s5, 512, %s33, [#allocation4], 128, 128, 8
    $region25: #{lstm_model_forward.1} parent=1 // pred_fallthru
      _
    // Predicated region
    $region26: #{lstm_model_forward.1} parent=1 // pred_check
      _
    $region27: #{lstm_model_forward.1} parent=1 // pred_check_branch
      %40 = sbr.rel (0) target = $region29
    $region28: #{lstm_model_forward.1} parent=1 // pred_region
      _
    $region29: #{lstm_model_forward.1} parent=1 // pred_fallthru
      _
    // Predicated region
    $region30: #{lstm_model_forward.1} parent=1 // pred_check
      _
    $region31: #{lstm_model_forward.1} parent=1 // pred_check_branch
      %42 = sbr.rel (0) target = $region33
    $region32: #{lstm_model_forward.1} parent=1 // pred_region
      _
    $region33: #{lstm_model_forward.1} parent=1 // pred_fallthru
      _
    // Predicated region
    $region34: #{lstm_model_forward.1} parent=1 // pred_check
      _
    $region35: #{lstm_model_forward.1} parent=1 // pred_check_branch
      %44 = sbr.rel (0) target = $region37
    $region36: #{lstm_model_forward.1} parent=1 // pred_region
      _
    $region37: #{lstm_model_forward.1} parent=1 // pred_fallthru
      _
    // Predicated region
    $region38: #{lstm_model_forward.1} parent=1 // pred_check
      _
    $region39: #{lstm_model_forward.1} parent=1 // pred_check_branch
      %46 = sbr.rel (0) target = $region41
    $region40: #{lstm_model_forward.1} parent=1 // pred_region
      %47 = dma.done [#allocation4], 512
    $region41: #{lstm_model_forward.1} parent=1 // pred_fallthru
      _
    %v48 = vld [vmem:[%s1] sm:$0xff]
    %v49 = vld [vmem:[%s2] sm:$0xff]
    %v50 = vld [vmem:[%s2 + $0x8] sm:$0xff]
    %v51 = vld [vmem:[%s2 + $0x10] sm:$0xff]
    %v52 = vld [vmem:[%s2 + $0x18] sm:$0xff]
    %v53 = vld [vmem:[%s3] sm:$0x1]
    %v54 = vld [vmem:[%s4] sm:$0xff]
    %v55 = vld [vmem:[%s4 + $0x8] sm:$0xff]
    %v56 = vld [vmem:[%s4 + $0x10] sm:$0xff]
    %v57 = vld [vmem:[%s4 + $0x18] sm:$0xff]
    %v58 = vld [vmem:[#allocation3] sm:$0xff]
    %v59 = vld [vmem:[#allocation3 + $0x8] sm:$0xff]
    %v60 = vld [vmem:[#allocation3 + $0x10] sm:$0xff]
    %v61 = vld [vmem:[#allocation3 + $0x18] sm:$0xff]
    %v62 = vld [vmem:[%s6] sm:$0x1]
    %v63 = vld [vmem:[%s7] sm:$0xff]
    %v64 = vld [vmem:[%s7 + $0x8] sm:$0xff]
    %v65 = vld [vmem:[%s7 + $0x10] sm:$0xff]
    %v66 = vld [vmem:[%s7 + $0x18] sm:$0xff]
    %v67 = vld [vmem:[#allocation2] sm:$0x1]
    %v68 = vld [vmem:[%s0] sm:$0xf]
    %v69 = vlaneseq
    %v70 = vand.u32 %v69, 127
    %vm71 = vcmp.ge.s32.totalorder %v70, 64
    %vm72 = vcmp.lt.s32.totalorder %v70, 96
    %vm73 = vmand %vm71, %vm72
    %v75 = vlaneseq
    %v76 = vshrl.u32 %v75, 7
    %v77 = vsub.s32 0, %v76
    %v78 = vrot.slane %v53, %v77
    %vm80 = vcmask 64512
    %v82 = vsel %vm80, %v68, 0
    %84 = vmatprep.subr.mxu0 0.0
    %85 = vmatpush1.msra.mxu0 %v48
    %86 = vmatprep.subr.mxu0 0.0
    %87 = vmatpush1.msra.mxu0 0.0
    %88 = vmatprep.subr.mxu0 0.0
    %89 = vmatpush1.msra.mxu0 0.0
    %90 = vmatprep.subr.mxu0 0.0
    %91 = vmatpush1.msra.mxu0 0.0
    %92 = vmatprep.subr.mxu0 0.0
    %93 = vmatpush1.msra.mxu0 0.0
    %94 = vmatprep.subr.mxu0 0.0
    %95 = vmatpush1.msra.mxu0 0.0
    %96 = vmatprep.subr.mxu0 0.0
    %97 = vmatpush1.msra.mxu0 0.0
    %98 = vmatprep.subr.mxu0 0.0
    %99 = vmatpush1.msra.mxu0 0.0
    %100 = vmatprep.subr.mxu0 0.0
    %101 = vmatpush1.msra.mxu0 0.0
    %102 = vmatprep.subr.mxu0 0.0
    %103 = vmatpush1.msra.mxu0 0.0
    %104 = vmatprep.subr.mxu0 0.0
    %105 = vmatpush1.msra.mxu0 0.0
    %106 = vmatprep.subr.mxu0 0.0
    %107 = vmatpush1.msra.mxu0 0.0
    %108 = vmatprep.subr.mxu0 0.0
    %109 = vmatpush1.msra.mxu0 0.0
    %110 = vmatprep.subr.mxu0 0.0
    %111 = vmatpush1.msra.mxu0 0.0
    %112 = vmatprep.subr.mxu0 0.0
    %113 = vmatpush1.msra.mxu0 0.0
    %114 = vmatprep.subr.mxu0 0.0
    %115 = vmatpush1.msra.mxu0 0.0
    %116 = vmatprep.subr.mxu0 0.0
    %117 = vmatpush1.msra.mxu0 0.0
    %118 = vmatprep.subr.mxu0 0.0
    %119 = vmatpush1.msra.mxu0 0.0
    %120 = vmatprep.subr.mxu0 0.0
    %121 = vmatpush1.msra.mxu0 0.0
    %122 = vmatprep.subr.mxu0 0.0
    %123 = vmatpush1.msra.mxu0 0.0
    %124 = vmatprep.subr.mxu0 0.0
    %125 = vmatpush1.msra.mxu0 0.0
    %126 = vmatprep.subr.mxu0 0.0
    %127 = vmatpush1.msra.mxu0 0.0
    %128 = vmatprep.subr.mxu0 0.0
    %129 = vmatpush1.msra.mxu0 0.0
    %130 = vmatprep.subr.mxu0 0.0
    %131 = vmatpush1.msra.mxu0 0.0
    %132 = vmatprep.subr.mxu0 0.0
    %133 = vmatpush1.msra.mxu0 0.0
    %134 = vmatprep.subr.mxu0 0.0
    %135 = vmatpush1.msra.mxu0 0.0
    %136 = vmatprep.subr.mxu0 0.0
    %137 = vmatpush1.msra.mxu0 0.0
    %138 = vmatprep.subr.mxu0 0.0
    %139 = vmatpush1.msra.mxu0 0.0
    %140 = vmatprep.subr.mxu0 0.0
    %141 = vmatpush1.msra.mxu0 0.0
    %142 = vmatprep.subr.mxu0 0.0
    %143 = vmatpush1.msra.mxu0 0.0
    %144 = vmatprep.subr.mxu0 0.0
    %145 = vmatpush1.msra.mxu0 0.0
    %146 = vmatprep.subr.mxu0 0.0
    %147 = vmatpush1.msra.mxu0 0.0
    %148 = vmatprep.mubr.f32.mxu0 0.0
    %149 = vmatmul.mubr.f32.gmra.mrb[0].mxu0 %v82
    %v150 = vpop.f32.mrb[0].mxu0
    %v151 = vadd.f32 %v78, %v150
    %v152 = vpop.f32.mrb[0].mxu0
    %153 = vdwg.mxu0
    %vm154 = vcmask 261120
    %v156 = vsel %vm154, 0.0, 0
    %158 = vmatprep.subr.mxu0 0.0
    %159 = vmatpush1.msra.mxu0 %v49
    %160 = vmatprep.subr.mxu0 0.0
    %161 = vmatpush1.msra.mxu0 %v50
    %162 = vmatprep.subr.mxu0 0.0
    %163 = vmatpush1.msra.mxu0 %v51
    %164 = vmatprep.subr.mxu0 0.0
    %165 = vmatpush1.msra.mxu0 %v52
    %166 = vmatprep.subr.mxu0 0.0
    %167 = vmatpush1.msra.mxu0 0.0
    %168 = vmatprep.subr.mxu0 0.0
    %169 = vmatpush1.msra.mxu0 0.0
    %170 = vmatprep.subr.mxu0 0.0
    %171 = vmatpush1.msra.mxu0 0.0
    %172 = vmatprep.subr.mxu0 0.0
    %173 = vmatpush1.msra.mxu0 0.0
    %174 = vmatprep.subr.mxu0 0.0
    %175 = vmatpush1.msra.mxu0 0.0
    %176 = vmatprep.subr.mxu0 0.0
    %177 = vmatpush1.msra.mxu0 0.0
    %178 = vmatprep.subr.mxu0 0.0
    %179 = vmatpush1.msra.mxu0 0.0
    %180 = vmatprep.subr.mxu0 0.0
    %181 = vmatpush1.msra.mxu0 0.0
    %182 = vmatprep.subr.mxu0 0.0
    %183 = vmatpush1.msra.mxu0 0.0
    %184 = vmatprep.subr.mxu0 0.0
    %185 = vmatpush1.msra.mxu0 0.0
    %186 = vmatprep.subr.mxu0 0.0
    %187 = vmatpush1.msra.mxu0 0.0
    %188 = vmatprep.subr.mxu0 0.0
    %189 = vmatpush1.msra.mxu0 0.0
    %190 = vmatprep.subr.mxu0 0.0
    %191 = vmatpush1.msra.mxu0 0.0
    %192 = vmatprep.subr.mxu0 0.0
    %193 = vmatpush1.msra.mxu0 0.0
    %194 = vmatprep.subr.mxu0 0.0
    %195 = vmatpush1.msra.mxu0 0.0
    %196 = vmatprep.subr.mxu0 0.0
    %197 = vmatpush1.msra.mxu0 0.0
    %198 = vmatprep.subr.mxu0 0.0
    %199 = vmatpush1.msra.mxu0 0.0
    %200 = vmatprep.subr.mxu0 0.0
    %201 = vmatpush1.msra.mxu0 0.0
    %202 = vmatprep.subr.mxu0 0.0
    %203 = vmatpush1.msra.mxu0 0.0
    %204 = vmatprep.subr.mxu0 0.0
    %205 = vmatpush1.msra.mxu0 0.0
    %206 = vmatprep.subr.mxu0 0.0
    %207 = vmatpush1.msra.mxu0 0.0
    %208 = vmatprep.subr.mxu0 0.0
    %209 = vmatpush1.msra.mxu0 0.0
    %210 = vmatprep.subr.mxu0 0.0
    %211 = vmatpush1.msra.mxu0 0.0
    %212 = vmatprep.subr.mxu0 0.0
    %213 = vmatpush1.msra.mxu0 0.0
    %214 = vmatprep.subr.mxu0 0.0
    %215 = vmatpush1.msra.mxu0 0.0
    %216 = vmatprep.subr.mxu0 0.0
    %217 = vmatpush1.msra.mxu0 0.0
    %218 = vmatprep.subr.mxu0 0.0
    %219 = vmatpush1.msra.mxu0 0.0
    %220 = vmatprep.subr.mxu0 0.0
    %221 = vmatpush1.msra.mxu0 0.0
    %222 = vmatprep.mubr.f32.mxu0 0.0
    %223 = vmatmul.mubr.f32.gmra.mrb[0].mxu0 %v156
    %v224 = vpop.f32.mrb[0].mxu0
    %v225 = vadd.f32 0.0, %v224
    %v226 = vpop.f32.mrb[0].mxu0
    %227 = vdwg.mxu0
    %v228 = vadd.f32 %v151, %v225
    %v229 = vmul.f32 %v228, 0.5
    %v230 = vtanh.pop %v229
    %v231 = vmul.f32 %v230, 0.5
    %v232 = vadd.f32 %v231, 0.5
    %v233 = vtanh.pop %v228
    %v234 = vsel %vm73, %v233, %v232
    %v235 = vmul.f32 %v234, 0.0
    %237 = vrot.lane.b32.xlu0 %v234, 64
    %v238 = vpop.permute.xlu0 %237
    %v240 = vmul.f32 %v234, %v238
    %242 = vrot.lane.b32.xlu0 %v240, 32
    %v243 = vpop.permute.xlu0 %242
    %v245 = vadd.f32 %v235, %v243
    %v246 = vtanh.pop %v245
    %248 = vrot.lane.b32.xlu0 %v246, 64
    %v249 = vpop.permute.xlu0 %248
    %v251 = vmul.f32 %v234, %v249
    %v253 = vlaneseq
    %v254 = vshrl.u32 %v253, 7
    %v255 = vsub.s32 0, %v254
    %v256 = vrot.slane %v62, %v255
    %259 = vrot.lane.b32.xlu0 %v251, 32
    %v260 = vpop.permute.xlu0 %259
    %v261 = vsel %vm154, %v260, 0
    %263 = vmatprep.subr.mxu0 0.0
    %264 = vmatpush1.msra.mxu0 %v54
    %265 = vmatprep.subr.mxu0 0.0
    %266 = vmatpush1.msra.mxu0 %v55
    %267 = vmatprep.subr.mxu0 0.0
    %268 = vmatpush1.msra.mxu0 %v56
    %269 = vmatprep.subr.mxu0 0.0
    %270 = vmatpush1.msra.mxu0 %v57
    %271 = vmatprep.subr.mxu0 0.0
    %272 = vmatpush1.msra.mxu0 0.0
    %273 = vmatprep.subr.mxu0 0.0
    %274 = vmatpush1.msra.mxu0 0.0
    %275 = vmatprep.subr.mxu0 0.0
    %276 = vmatpush1.msra.mxu0 0.0
    %277 = vmatprep.subr.mxu0 0.0
    %278 = vmatpush1.msra.mxu0 0.0
    %279 = vmatprep.subr.mxu0 0.0
    %280 = vmatpush1.msra.mxu0 0.0
    %281 = vmatprep.subr.mxu0 0.0
    %282 = vmatpush1.msra.mxu0 0.0
    %283 = vmatprep.subr.mxu0 0.0
    %284 = vmatpush1.msra.mxu0 0.0
    %285 = vmatprep.subr.mxu0 0.0
    %286 = vmatpush1.msra.mxu0 0.0
    %287 = vmatprep.subr.mxu0 0.0
    %288 = vmatpush1.msra.mxu0 0.0
    %289 = vmatprep.subr.mxu0 0.0
    %290 = vmatpush1.msra.mxu0 0.0
    %291 = vmatprep.subr.mxu0 0.0
    %292 = vmatpush1.msra.mxu0 0.0
    %293 = vmatprep.subr.mxu0 0.0
    %294 = vmatpush1.msra.mxu0 0.0
    %295 = vmatprep.subr.mxu0 0.0
    %296 = vmatpush1.msra.mxu0 0.0
    %297 = vmatprep.subr.mxu0 0.0
    %298 = vmatpush1.msra.mxu0 0.0
    %299 = vmatprep.subr.mxu0 0.0
    %300 = vmatpush1.msra.mxu0 0.0
    %301 = vmatprep.subr.mxu0 0.0
    %302 = vmatpush1.msra.mxu0 0.0
    %303 = vmatprep.subr.mxu0 0.0
    %304 = vmatpush1.msra.mxu0 0.0
    %305 = vmatprep.subr.mxu0 0.0
    %306 = vmatpush1.msra.mxu0 0.0
    %307 = vmatprep.subr.mxu0 0.0
    %308 = vmatpush1.msra.mxu0 0.0
    %309 = vmatprep.subr.mxu0 0.0
    %310 = vmatpush1.msra.mxu0 0.0
    %311 = vmatprep.subr.mxu0 0.0
    %312 = vmatpush1.msra.mxu0 0.0
    %313 = vmatprep.subr.mxu0 0.0
    %314 = vmatpush1.msra.mxu0 0.0
    %315 = vmatprep.subr.mxu0 0.0
    %316 = vmatpush1.msra.mxu0 0.0
    %317 = vmatprep.subr.mxu0 0.0
    %318 = vmatpush1.msra.mxu0 0.0
    %319 = vmatprep.subr.mxu0 0.0
    %320 = vmatpush1.msra.mxu0 0.0
    %321 = vmatprep.subr.mxu0 0.0
    %322 = vmatpush1.msra.mxu0 0.0
    %323 = vmatprep.subr.mxu0 0.0
    %324 = vmatpush1.msra.mxu0 0.0
    %325 = vmatprep.subr.mxu0 0.0
    %326 = vmatpush1.msra.mxu0 0.0
    %327 = vmatprep.mubr.f32.mxu0 0.0
    %328 = vmatmul.mubr.f32.gmra.mrb[0].mxu0 %v261
    %v329 = vpop.f32.mrb[0].mxu0
    %v330 = vadd.f32 %v256, %v329
    %v331 = vpop.f32.mrb[0].mxu0
    %332 = vdwg.mxu0
    %333 = vmatprep.subr.mxu0 0.0
    %334 = vmatpush1.msra.mxu0 %v58
    %335 = vmatprep.subr.mxu0 0.0
    %336 = vmatpush1.msra.mxu0 %v59
    %337 = vmatprep.subr.mxu0 0.0
    %338 = vmatpush1.msra.mxu0 %v60
    %339 = vmatprep.subr.mxu0 0.0
    %340 = vmatpush1.msra.mxu0 %v61
    %341 = vmatprep.subr.mxu0 0.0
    %342 = vmatpush1.msra.mxu0 0.0
    %343 = vmatprep.subr.mxu0 0.0
    %344 = vmatpush1.msra.mxu0 0.0
    %345 = vmatprep.subr.mxu0 0.0
    %346 = vmatpush1.msra.mxu0 0.0
    %347 = vmatprep.subr.mxu0 0.0
    %348 = vmatpush1.msra.mxu0 0.0
    %349 = vmatprep.subr.mxu0 0.0
    %350 = vmatpush1.msra.mxu0 0.0
    %351 = vmatprep.subr.mxu0 0.0
    %352 = vmatpush1.msra.mxu0 0.0
    %353 = vmatprep.subr.mxu0 0.0
    %354 = vmatpush1.msra.mxu0 0.0
    %355 = vmatprep.subr.mxu0 0.0
    %356 = vmatpush1.msra.mxu0 0.0
    %357 = vmatprep.subr.mxu0 0.0
    %358 = vmatpush1.msra.mxu0 0.0
    %359 = vmatprep.subr.mxu0 0.0
    %360 = vmatpush1.msra.mxu0 0.0
    %361 = vmatprep.subr.mxu0 0.0
    %362 = vmatpush1.msra.mxu0 0.0
    %363 = vmatprep.subr.mxu0 0.0
    %364 = vmatpush1.msra.mxu0 0.0
    %365 = vmatprep.subr.mxu0 0.0
    %366 = vmatpush1.msra.mxu0 0.0
    %367 = vmatprep.subr.mxu0 0.0
    %368 = vmatpush1.msra.mxu0 0.0
    %369 = vmatprep.subr.mxu0 0.0
    %370 = vmatpush1.msra.mxu0 0.0
    %371 = vmatprep.subr.mxu0 0.0
    %372 = vmatpush1.msra.mxu0 0.0
    %373 = vmatprep.subr.mxu0 0.0
    %374 = vmatpush1.msra.mxu0 0.0
    %375 = vmatprep.subr.mxu0 0.0
    %376 = vmatpush1.msra.mxu0 0.0
    %377 = vmatprep.subr.mxu0 0.0
    %378 = vmatpush1.msra.mxu0 0.0
    %379 = vmatprep.subr.mxu0 0.0
    %380 = vmatpush1.msra.mxu0 0.0
    %381 = vmatprep.subr.mxu0 0.0
    %382 = vmatpush1.msra.mxu0 0.0
    %383 = vmatprep.subr.mxu0 0.0
    %384 = vmatpush1.msra.mxu0 0.0
    %385 = vmatprep.subr.mxu0 0.0
    %386 = vmatpush1.msra.mxu0 0.0
    %387 = vmatprep.subr.mxu0 0.0
    %388 = vmatpush1.msra.mxu0 0.0
    %389 = vmatprep.subr.mxu0 0.0
    %390 = vmatpush1.msra.mxu0 0.0
    %391 = vmatprep.subr.mxu0 0.0
    %392 = vmatpush1.msra.mxu0 0.0
    %393 = vmatprep.subr.mxu0 0.0
    %394 = vmatpush1.msra.mxu0 0.0
    %395 = vmatprep.subr.mxu0 0.0
    %396 = vmatpush1.msra.mxu0 0.0
    %397 = vmatprep.mubr.f32.mxu0 0.0
    %398 = vmatmul.mubr.f32.gmra.mrb[0].mxu0 %v156
    %v399 = vpop.f32.mrb[0].mxu0
    %v400 = vadd.f32 0.0, %v399
    %v401 = vpop.f32.mrb[0].mxu0
    %402 = vdwg.mxu0
    %v403 = vadd.f32 %v330, %v400
    %v404 = vmul.f32 %v403, 0.5
    %v405 = vtanh.pop %v404
    %v406 = vmul.f32 %v405, 0.5
    %v407 = vadd.f32 %v406, 0.5
    %v408 = vtanh.pop %v403
    %v409 = vsel %vm73, %v408, %v407
    %v410 = vmul.f32 %v409, 0.0
    %412 = vrot.lane.b32.xlu0 %v409, 64
    %v413 = vpop.permute.xlu0 %412
    %v415 = vmul.f32 %v409, %v413
    %417 = vrot.lane.b32.xlu0 %v415, 32
    %v418 = vpop.permute.xlu0 %417
    %v420 = vadd.f32 %v410, %v418
    %v421 = vtanh.pop %v420
    %423 = vrot.lane.b32.xlu0 %v421, 64
    %v424 = vpop.permute.xlu0 %423
    %v426 = vmul.f32 %v409, %v424
    %427 = vrot.lane.b32.xlu0 %v68, 120
    %v428 = vpop.permute.xlu0 %427
    %v429 = vsel %vm80, %v428, 0
    %431 = vmatprep.subr.mxu0 0.0
    %432 = vmatpush1.msra.mxu0 %v48
    %433 = vmatprep.subr.mxu0 0.0
    %434 = vmatpush1.msra.mxu0 0.0
    %435 = vmatprep.subr.mxu0 0.0
    %436 = vmatpush1.msra.mxu0 0.0
    %437 = vmatprep.subr.mxu0 0.0
    %438 = vmatpush1.msra.mxu0 0.0
    %439 = vmatprep.subr.mxu0 0.0
    %440 = vmatpush1.msra.mxu0 0.0
    %441 = vmatprep.subr.mxu0 0.0
    %442 = vmatpush1.msra.mxu0 0.0
    %443 = vmatprep.subr.mxu0 0.0
    %444 = vmatpush1.msra.mxu0 0.0
    %445 = vmatprep.subr.mxu0 0.0
    %446 = vmatpush1.msra.mxu0 0.0
    %447 = vmatprep.subr.mxu0 0.0
    %448 = vmatpush1.msra.mxu0 0.0
    %449 = vmatprep.subr.mxu0 0.0
    %450 = vmatpush1.msra.mxu0 0.0
    %451 = vmatprep.subr.mxu0 0.0
    %452 = vmatpush1.msra.mxu0 0.0
    %453 = vmatprep.subr.mxu0 0.0
    %454 = vmatpush1.msra.mxu0 0.0
    %455 = vmatprep.subr.mxu0 0.0
    %456 = vmatpush1.msra.mxu0 0.0
    %457 = vmatprep.subr.mxu0 0.0
    %458 = vmatpush1.msra.mxu0 0.0
    %459 = vmatprep.subr.mxu0 0.0
    %460 = vmatpush1.msra.mxu0 0.0
    %461 = vmatprep.subr.mxu0 0.0
    %462 = vmatpush1.msra.mxu0 0.0
    %463 = vmatprep.subr.mxu0 0.0
    %464 = vmatpush1.msra.mxu0 0.0
    %465 = vmatprep.subr.mxu0 0.0
    %466 = vmatpush1.msra.mxu0 0.0
    %467 = vmatprep.subr.mxu0 0.0
    %468 = vmatpush1.msra.mxu0 0.0
    %469 = vmatprep.subr.mxu0 0.0
    %470 = vmatpush1.msra.mxu0 0.0
    %471 = vmatprep.subr.mxu0 0.0
    %472 = vmatpush1.msra.mxu0 0.0
    %473 = vmatprep.subr.mxu0 0.0
    %474 = vmatpush1.msra.mxu0 0.0
    %475 = vmatprep.subr.mxu0 0.0
    %476 = vmatpush1.msra.mxu0 0.0
    %477 = vmatprep.subr.mxu0 0.0
    %478 = vmatpush1.msra.mxu0 0.0
    %479 = vmatprep.subr.mxu0 0.0
    %480 = vmatpush1.msra.mxu0 0.0
    %481 = vmatprep.subr.mxu0 0.0
    %482 = vmatpush1.msra.mxu0 0.0
    %483 = vmatprep.subr.mxu0 0.0
    %484 = vmatpush1.msra.mxu0 0.0
    %485 = vmatprep.subr.mxu0 0.0
    %486 = vmatpush1.msra.mxu0 0.0
    %487 = vmatprep.subr.mxu0 0.0
    %488 = vmatpush1.msra.mxu0 0.0
    %489 = vmatprep.subr.mxu0 0.0
    %490 = vmatpush1.msra.mxu0 0.0
    %491 = vmatprep.subr.mxu0 0.0
    %492 = vmatpush1.msra.mxu0 0.0
    %493 = vmatprep.subr.mxu0 0.0
    %494 = vmatpush1.msra.mxu0 0.0
    %495 = vmatprep.mubr.f32.mxu0 0.0
    %496 = vmatmul.mubr.f32.gmra.mrb[0].mxu0 %v429
    %v497 = vpop.f32.mrb[0].mxu0
    %v498 = vadd.f32 %v78, %v497
    %v499 = vpop.f32.mrb[0].mxu0
    %500 = vdwg.mxu0
    %501 = vmatprep.subr.mxu0 0.0
    %502 = vmatpush1.msra.mxu0 %v49
    %503 = vmatprep.subr.mxu0 0.0
    %504 = vmatpush1.msra.mxu0 %v50
    %505 = vmatprep.subr.mxu0 0.0
    %506 = vmatpush1.msra.mxu0 %v51
    %507 = vmatprep.subr.mxu0 0.0
    %508 = vmatpush1.msra.mxu0 %v52
    %509 = vmatprep.subr.mxu0 0.0
    %510 = vmatpush1.msra.mxu0 0.0
    %511 = vmatprep.subr.mxu0 0.0
    %512 = vmatpush1.msra.mxu0 0.0
    %513 = vmatprep.subr.mxu0 0.0
    %514 = vmatpush1.msra.mxu0 0.0
    %515 = vmatprep.subr.mxu0 0.0
    %516 = vmatpush1.msra.mxu0 0.0
    %517 = vmatprep.subr.mxu0 0.0
    %518 = vmatpush1.msra.mxu0 0.0
    %519 = vmatprep.subr.mxu0 0.0
    %520 = vmatpush1.msra.mxu0 0.0
    %521 = vmatprep.subr.mxu0 0.0
    %522 = vmatpush1.msra.mxu0 0.0
    %523 = vmatprep.subr.mxu0 0.0
    %524 = vmatpush1.msra.mxu0 0.0
    %525 = vmatprep.subr.mxu0 0.0
    %526 = vmatpush1.msra.mxu0 0.0
    %527 = vmatprep.subr.mxu0 0.0
    %528 = vmatpush1.msra.mxu0 0.0
    %529 = vmatprep.subr.mxu0 0.0
    %530 = vmatpush1.msra.mxu0 0.0
    %531 = vmatprep.subr.mxu0 0.0
    %532 = vmatpush1.msra.mxu0 0.0
    %533 = vmatprep.subr.mxu0 0.0
    %534 = vmatpush1.msra.mxu0 0.0
    %535 = vmatprep.subr.mxu0 0.0
    %536 = vmatpush1.msra.mxu0 0.0
    %537 = vmatprep.subr.mxu0 0.0
    %538 = vmatpush1.msra.mxu0 0.0
    %539 = vmatprep.subr.mxu0 0.0
    %540 = vmatpush1.msra.mxu0 0.0
    %541 = vmatprep.subr.mxu0 0.0
    %542 = vmatpush1.msra.mxu0 0.0
    %543 = vmatprep.subr.mxu0 0.0
    %544 = vmatpush1.msra.mxu0 0.0
    %545 = vmatprep.subr.mxu0 0.0
    %546 = vmatpush1.msra.mxu0 0.0
    %547 = vmatprep.subr.mxu0 0.0
    %548 = vmatpush1.msra.mxu0 0.0
    %549 = vmatprep.subr.mxu0 0.0
    %550 = vmatpush1.msra.mxu0 0.0
    %551 = vmatprep.subr.mxu0 0.0
    %552 = vmatpush1.msra.mxu0 0.0
    %553 = vmatprep.subr.mxu0 0.0
    %554 = vmatpush1.msra.mxu0 0.0
    %555 = vmatprep.subr.mxu0 0.0
    %556 = vmatpush1.msra.mxu0 0.0
    %557 = vmatprep.subr.mxu0 0.0
    %558 = vmatpush1.msra.mxu0 0.0
    %559 = vmatprep.subr.mxu0 0.0
    %560 = vmatpush1.msra.mxu0 0.0
    %561 = vmatprep.subr.mxu0 0.0
    %562 = vmatpush1.msra.mxu0 0.0
    %563 = vmatprep.subr.mxu0 0.0
    %564 = vmatpush1.msra.mxu0 0.0
    %565 = vmatprep.mubr.f32.mxu0 0.0
    %566 = vmatmul.mubr.f32.gmra.mrb[0].mxu0 %v261
    %v567 = vpop.f32.mrb[0].mxu0
    %v568 = vadd.f32 0.0, %v567
    %v569 = vpop.f32.mrb[0].mxu0
    %570 = vdwg.mxu0
    %v571 = vadd.f32 %v498, %v568
    %v572 = vmul.f32 %v571, 0.5
    %v573 = vtanh.pop %v572
    %v574 = vmul.f32 %v573, 0.5
    %v575 = vadd.f32 %v574, 0.5
    %v576 = vtanh.pop %v571
    %v577 = vsel %vm73, %v576, %v575
    %v578 = vmul.f32 %v577, %v245
    %580 = vrot.lane.b32.xlu0 %v577, 64
    %v581 = vpop.permute.xlu0 %580
    %v583 = vmul.f32 %v577, %v581
    %585 = vrot.lane.b32.xlu0 %v583, 32
    %v586 = vpop.permute.xlu0 %585
    %v588 = vadd.f32 %v578, %v586
    %v589 = vtanh.pop %v588
    %591 = vrot.lane.b32.xlu0 %v589, 64
    %v592 = vpop.permute.xlu0 %591
    %v594 = vmul.f32 %v577, %v592
    %596 = vrot.lane.b32.xlu0 %v594, 32
    %v597 = vpop.permute.xlu0 %596
    %v598 = vsel %vm154, %v597, 0
    %600 = vmatprep.subr.mxu0 0.0
    %601 = vmatpush1.msra.mxu0 %v54
    %602 = vmatprep.subr.mxu0 0.0
    %603 = vmatpush1.msra.mxu0 %v55
    %604 = vmatprep.subr.mxu0 0.0
    %605 = vmatpush1.msra.mxu0 %v56
    %606 = vmatprep.subr.mxu0 0.0
    %607 = vmatpush1.msra.mxu0 %v57
    %608 = vmatprep.subr.mxu0 0.0
    %609 = vmatpush1.msra.mxu0 0.0
    %610 = vmatprep.subr.mxu0 0.0
    %611 = vmatpush1.msra.mxu0 0.0
    %612 = vmatprep.subr.mxu0 0.0
    %613 = vmatpush1.msra.mxu0 0.0
    %614 = vmatprep.subr.mxu0 0.0
    %615 = vmatpush1.msra.mxu0 0.0
    %616 = vmatprep.subr.mxu0 0.0
    %617 = vmatpush1.msra.mxu0 0.0
    %618 = vmatprep.subr.mxu0 0.0
    %619 = vmatpush1.msra.mxu0 0.0
    %620 = vmatprep.subr.mxu0 0.0
    %621 = vmatpush1.msra.mxu0 0.0
    %622 = vmatprep.subr.mxu0 0.0
    %623 = vmatpush1.msra.mxu0 0.0
    %624 = vmatprep.subr.mxu0 0.0
    %625 = vmatpush1.msra.mxu0 0.0
    %626 = vmatprep.subr.mxu0 0.0
    %627 = vmatpush1.msra.mxu0 0.0
    %628 = vmatprep.subr.mxu0 0.0
    %629 = vmatpush1.msra.mxu0 0.0
    %630 = vmatprep.subr.mxu0 0.0
    %631 = vmatpush1.msra.mxu0 0.0
    %632 = vmatprep.subr.mxu0 0.0
    %633 = vmatpush1.msra.mxu0 0.0
    %634 = vmatprep.subr.mxu0 0.0
    %635 = vmatpush1.msra.mxu0 0.0
    %636 = vmatprep.subr.mxu0 0.0
    %637 = vmatpush1.msra.mxu0 0.0
    %638 = vmatprep.subr.mxu0 0.0
    %639 = vmatpush1.msra.mxu0 0.0
    %640 = vmatprep.subr.mxu0 0.0
    %641 = vmatpush1.msra.mxu0 0.0
    %642 = vmatprep.subr.mxu0 0.0
    %643 = vmatpush1.msra.mxu0 0.0
    %644 = vmatprep.subr.mxu0 0.0
    %645 = vmatpush1.msra.mxu0 0.0
    %646 = vmatprep.subr.mxu0 0.0
    %647 = vmatpush1.msra.mxu0 0.0
    %648 = vmatprep.subr.mxu0 0.0
    %649 = vmatpush1.msra.mxu0 0.0
    %650 = vmatprep.subr.mxu0 0.0
    %651 = vmatpush1.msra.mxu0 0.0
    %652 = vmatprep.subr.mxu0 0.0
    %653 = vmatpush1.msra.mxu0 0.0
    %654 = vmatprep.subr.mxu0 0.0
    %655 = vmatpush1.msra.mxu0 0.0
    %656 = vmatprep.subr.mxu0 0.0
    %657 = vmatpush1.msra.mxu0 0.0
    %658 = vmatprep.subr.mxu0 0.0
    %659 = vmatpush1.msra.mxu0 0.0
    %660 = vmatprep.subr.mxu0 0.0
    %661 = vmatpush1.msra.mxu0 0.0
    %662 = vmatprep.subr.mxu0 0.0
    %663 = vmatpush1.msra.mxu0 0.0
    %664 = vmatprep.mubr.f32.mxu0 0.0
    %665 = vmatmul.mubr.f32.gmra.mrb[0].mxu0 %v598
    %v666 = vpop.f32.mrb[0].mxu0
    %v667 = vadd.f32 %v256, %v666
    %v668 = vpop.f32.mrb[0].mxu0
    %669 = vdwg.mxu0
    %671 = vrot.lane.b32.xlu0 %v426, 32
    %v672 = vpop.permute.xlu0 %671
    %v673 = vsel %vm154, %v672, 0
    %675 = vmatprep.subr.mxu0 0.0
    %676 = vmatpush1.msra.mxu0 %v58
    %677 = vmatprep.subr.mxu0 0.0
    %678 = vmatpush1.msra.mxu0 %v59
    %679 = vmatprep.subr.mxu0 0.0
    %680 = vmatpush1.msra.mxu0 %v60
    %681 = vmatprep.subr.mxu0 0.0
    %682 = vmatpush1.msra.mxu0 %v61
    %683 = vmatprep.subr.mxu0 0.0
    %684 = vmatpush1.msra.mxu0 0.0
    %685 = vmatprep.subr.mxu0 0.0
    %686 = vmatpush1.msra.mxu0 0.0
    %687 = vmatprep.subr.mxu0 0.0
    %688 = vmatpush1.msra.mxu0 0.0
    %689 = vmatprep.subr.mxu0 0.0
    %690 = vmatpush1.msra.mxu0 0.0
    %691 = vmatprep.subr.mxu0 0.0
    %692 = vmatpush1.msra.mxu0 0.0
    %693 = vmatprep.subr.mxu0 0.0
    %694 = vmatpush1.msra.mxu0 0.0
    %695 = vmatprep.subr.mxu0 0.0
    %696 = vmatpush1.msra.mxu0 0.0
    %697 = vmatprep.subr.mxu0 0.0
    %698 = vmatpush1.msra.mxu0 0.0
    %699 = vmatprep.subr.mxu0 0.0
    %700 = vmatpush1.msra.mxu0 0.0
    %701 = vmatprep.subr.mxu0 0.0
    %702 = vmatpush1.msra.mxu0 0.0
    %703 = vmatprep.subr.mxu0 0.0
    %704 = vmatpush1.msra.mxu0 0.0
    %705 = vmatprep.subr.mxu0 0.0
    %706 = vmatpush1.msra.mxu0 0.0
    %707 = vmatprep.subr.mxu0 0.0
    %708 = vmatpush1.msra.mxu0 0.0
    %709 = vmatprep.subr.mxu0 0.0
    %710 = vmatpush1.msra.mxu0 0.0
    %711 = vmatprep.subr.mxu0 0.0
    %712 = vmatpush1.msra.mxu0 0.0
    %713 = vmatprep.subr.mxu0 0.0
    %714 = vmatpush1.msra.mxu0 0.0
    %715 = vmatprep.subr.mxu0 0.0
    %716 = vmatpush1.msra.mxu0 0.0
    %717 = vmatprep.subr.mxu0 0.0
    %718 = vmatpush1.msra.mxu0 0.0
    %719 = vmatprep.subr.mxu0 0.0
    %720 = vmatpush1.msra.mxu0 0.0
    %721 = vmatprep.subr.mxu0 0.0
    %722 = vmatpush1.msra.mxu0 0.0
    %723 = vmatprep.subr.mxu0 0.0
    %724 = vmatpush1.msra.mxu0 0.0
    %725 = vmatprep.subr.mxu0 0.0
    %726 = vmatpush1.msra.mxu0 0.0
    %727 = vmatprep.subr.mxu0 0.0
    %728 = vmatpush1.msra.mxu0 0.0
    %729 = vmatprep.subr.mxu0 0.0
    %730 = vmatpush1.msra.mxu0 0.0
    %731 = vmatprep.subr.mxu0 0.0
    %732 = vmatpush1.msra.mxu0 0.0
    %733 = vmatprep.subr.mxu0 0.0
    %734 = vmatpush1.msra.mxu0 0.0
    %735 = vmatprep.subr.mxu0 0.0
    %736 = vmatpush1.msra.mxu0 0.0
    %737 = vmatprep.subr.mxu0 0.0
    %738 = vmatpush1.msra.mxu0 0.0
    %739 = vmatprep.mubr.f32.mxu0 0.0
    %740 = vmatmul.mubr.f32.gmra.mrb[0].mxu0 %v673
    %v741 = vpop.f32.mrb[0].mxu0
    %v742 = vadd.f32 0.0, %v741
    %v743 = vpop.f32.mrb[0].mxu0
    %744 = vdwg.mxu0
    %v745 = vadd.f32 %v667, %v742
    %v746 = vmul.f32 %v745, 0.5
    %v747 = vtanh.pop %v746
    %v748 = vmul.f32 %v747, 0.5
    %v749 = vadd.f32 %v748, 0.5
    %v750 = vtanh.pop %v745
    %v751 = vsel %vm73, %v750, %v749
    %v752 = vmul.f32 %v751, %v420
    %754 = vrot.lane.b32.xlu0 %v751, 64
    %v755 = vpop.permute.xlu0 %754
    %v757 = vmul.f32 %v751, %v755
    %759 = vrot.lane.b32.xlu0 %v757, 32
    %v760 = vpop.permute.xlu0 %759
    %v762 = vadd.f32 %v752, %v760
    %v763 = vtanh.pop %v762
    %765 = vrot.lane.b32.xlu0 %v763, 64
    %v766 = vpop.permute.xlu0 %765
    %v768 = vmul.f32 %v751, %v766
    %769 = vrot.lane.b32.xlu0 %v68, 112
    %v770 = vpop.permute.xlu0 %769
    %v771 = vsel %vm80, %v770, 0
    %773 = vmatprep.subr.mxu0 0.0
    %774 = vmatpush1.msra.mxu0 %v48
    %775 = vmatprep.subr.mxu0 0.0
    %776 = vmatpush1.msra.mxu0 0.0
    %777 = vmatprep.subr.mxu0 0.0
    %778 = vmatpush1.msra.mxu0 0.0
    %779 = vmatprep.subr.mxu0 0.0
    %780 = vmatpush1.msra.mxu0 0.0
    %781 = vmatprep.subr.mxu0 0.0
    %782 = vmatpush1.msra.mxu0 0.0
    %783 = vmatprep.subr.mxu0 0.0
    %784 = vmatpush1.msra.mxu0 0.0
    %785 = vmatprep.subr.mxu0 0.0
    %786 = vmatpush1.msra.mxu0 0.0
    %787 = vmatprep.subr.mxu0 0.0
    %788 = vmatpush1.msra.mxu0 0.0
    %789 = vmatprep.subr.mxu0 0.0
    %790 = vmatpush1.msra.mxu0 0.0
    %791 = vmatprep.subr.mxu0 0.0
    %792 = vmatpush1.msra.mxu0 0.0
    %793 = vmatprep.subr.mxu0 0.0
    %794 = vmatpush1.msra.mxu0 0.0
    %795 = vmatprep.subr.mxu0 0.0
    %796 = vmatpush1.msra.mxu0 0.0
    %797 = vmatprep.subr.mxu0 0.0
    %798 = vmatpush1.msra.mxu0 0.0
    %799 = vmatprep.subr.mxu0 0.0
    %800 = vmatpush1.msra.mxu0 0.0
    %801 = vmatprep.subr.mxu0 0.0
    %802 = vmatpush1.msra.mxu0 0.0
    %803 = vmatprep.subr.mxu0 0.0
    %804 = vmatpush1.msra.mxu0 0.0
    %805 = vmatprep.subr.mxu0 0.0
    %806 = vmatpush1.msra.mxu0 0.0
    %807 = vmatprep.subr.mxu0 0.0
    %808 = vmatpush1.msra.mxu0 0.0
    %809 = vmatprep.subr.mxu0 0.0
    %810 = vmatpush1.msra.mxu0 0.0
    %811 = vmatprep.subr.mxu0 0.0
    %812 = vmatpush1.msra.mxu0 0.0
    %813 = vmatprep.subr.mxu0 0.0
    %814 = vmatpush1.msra.mxu0 0.0
    %815 = vmatprep.subr.mxu0 0.0
    %816 = vmatpush1.msra.mxu0 0.0
    %817 = vmatprep.subr.mxu0 0.0
    %818 = vmatpush1.msra.mxu0 0.0
    %819 = vmatprep.subr.mxu0 0.0
    %820 = vmatpush1.msra.mxu0 0.0
    %821 = vmatprep.subr.mxu0 0.0
    %822 = vmatpush1.msra.mxu0 0.0
    %823 = vmatprep.subr.mxu0 0.0
    %824 = vmatpush1.msra.mxu0 0.0
    %825 = vmatprep.subr.mxu0 0.0
    %826 = vmatpush1.msra.mxu0 0.0
    %827 = vmatprep.subr.mxu0 0.0
    %828 = vmatpush1.msra.mxu0 0.0
    %829 = vmatprep.subr.mxu0 0.0
    %830 = vmatpush1.msra.mxu0 0.0
    %831 = vmatprep.subr.mxu0 0.0
    %832 = vmatpush1.msra.mxu0 0.0
    %833 = vmatprep.subr.mxu0 0.0
    %834 = vmatpush1.msra.mxu0 0.0
    %835 = vmatprep.subr.mxu0 0.0
    %836 = vmatpush1.msra.mxu0 0.0
    %837 = vmatprep.mubr.f32.mxu0 0.0
    %838 = vmatmul.mubr.f32.gmra.mrb[0].mxu0 %v771
    %v839 = vpop.f32.mrb[0].mxu0
    %v840 = vadd.f32 %v78, %v839
    %v841 = vpop.f32.mrb[0].mxu0
    %842 = vdwg.mxu0
    %843 = vmatprep.subr.mxu0 0.0
    %844 = vmatpush1.msra.mxu0 %v49
    %845 = vmatprep.subr.mxu0 0.0
    %846 = vmatpush1.msra.mxu0 %v50
    %847 = vmatprep.subr.mxu0 0.0
    %848 = vmatpush1.msra.mxu0 %v51
    %849 = vmatprep.subr.mxu0 0.0
    %850 = vmatpush1.msra.mxu0 %v52
    %851 = vmatprep.subr.mxu0 0.0
    %852 = vmatpush1.msra.mxu0 0.0
    %853 = vmatprep.subr.mxu0 0.0
    %854 = vmatpush1.msra.mxu0 0.0
    %855 = vmatprep.subr.mxu0 0.0
    %856 = vmatpush1.msra.mxu0 0.0
    %857 = vmatprep.subr.mxu0 0.0
    %858 = vmatpush1.msra.mxu0 0.0
    %859 = vmatprep.subr.mxu0 0.0
    %860 = vmatpush1.msra.mxu0 0.0
    %861 = vmatprep.subr.mxu0 0.0
    %862 = vmatpush1.msra.mxu0 0.0
    %863 = vmatprep.subr.mxu0 0.0
    %864 = vmatpush1.msra.mxu0 0.0
    %865 = vmatprep.subr.mxu0 0.0
    %866 = vmatpush1.msra.mxu0 0.0
    %867 = vmatprep.subr.mxu0 0.0
    %868 = vmatpush1.msra.mxu0 0.0
    %869 = vmatprep.subr.mxu0 0.0
    %870 = vmatpush1.msra.mxu0 0.0
    %871 = vmatprep.subr.mxu0 0.0
    %872 = vmatpush1.msra.mxu0 0.0
    %873 = vmatprep.subr.mxu0 0.0
    %874 = vmatpush1.msra.mxu0 0.0
    %875 = vmatprep.subr.mxu0 0.0
    %876 = vmatpush1.msra.mxu0 0.0
    %877 = vmatprep.subr.mxu0 0.0
    %878 = vmatpush1.msra.mxu0 0.0
    %879 = vmatprep.subr.mxu0 0.0
    %880 = vmatpush1.msra.mxu0 0.0
    %881 = vmatprep.subr.mxu0 0.0
    %882 = vmatpush1.msra.mxu0 0.0
    %883 = vmatprep.subr.mxu0 0.0
    %884 = vmatpush1.msra.mxu0 0.0
    %885 = vmatprep.subr.mxu0 0.0
    %886 = vmatpush1.msra.mxu0 0.0
    %887 = vmatprep.subr.mxu0 0.0
    %888 = vmatpush1.msra.mxu0 0.0
    %889 = vmatprep.subr.mxu0 0.0
    %890 = vmatpush1.msra.mxu0 0.0
    %891 = vmatprep.subr.mxu0 0.0
    %892 = vmatpush1.msra.mxu0 0.0
    %893 = vmatprep.subr.mxu0 0.0
    %894 = vmatpush1.msra.mxu0 0.0
    %895 = vmatprep.subr.mxu0 0.0
    %896 = vmatpush1.msra.mxu0 0.0
    %897 = vmatprep.subr.mxu0 0.0
    %898 = vmatpush1.msra.mxu0 0.0
    %899 = vmatprep.subr.mxu0 0.0
    %900 = vmatpush1.msra.mxu0 0.0
    %901 = vmatprep.subr.mxu0 0.0
    %902 = vmatpush1.msra.mxu0 0.0
    %903 = vmatprep.subr.mxu0 0.0
    %904 = vmatpush1.msra.mxu0 0.0
    %905 = vmatprep.subr.mxu0 0.0
    %906 = vmatpush1.msra.mxu0 0.0
    %907 = vmatprep.mubr.f32.mxu0 0.0
    %908 = vmatmul.mubr.f32.gmra.mrb[0].mxu0 %v598
    %v909 = vpop.f32.mrb[0].mxu0
    %v910 = vadd.f32 0.0, %v909
    %v911 = vpop.f32.mrb[0].mxu0
    %912 = vdwg.mxu0
    %v913 = vadd.f32 %v840, %v910
    %v914 = vmul.f32 %v913, 0.5
    %v915 = vtanh.pop %v914
    %v916 = vmul.f32 %v915, 0.5
    %v917 = vadd.f32 %v916, 0.5
    %v918 = vtanh.pop %v913
    %v919 = vsel %vm73, %v918, %v917
    %v920 = vmul.f32 %v919, %v588
    %922 = vrot.lane.b32.xlu0 %v919, 64
    %v923 = vpop.permute.xlu0 %922
    %v925 = vmul.f32 %v919, %v923
    %927 = vrot.lane.b32.xlu0 %v925, 32
    %v928 = vpop.permute.xlu0 %927
    %v930 = vadd.f32 %v920, %v928
    %v931 = vtanh.pop %v930
    %933 = vrot.lane.b32.xlu0 %v931, 64
    %v934 = vpop.permute.xlu0 %933
    %v936 = vmul.f32 %v919, %v934
    %938 = vrot.lane.b32.xlu0 %v936, 32
    %v939 = vpop.permute.xlu0 %938
    %v940 = vsel %vm154, %v939, 0
    %942 = vmatprep.subr.mxu0 0.0
    %943 = vmatpush1.msra.mxu0 %v54
    %944 = vmatprep.subr.mxu0 0.0
    %945 = vmatpush1.msra.mxu0 %v55
    %946 = vmatprep.subr.mxu0 0.0
    %947 = vmatpush1.msra.mxu0 %v56
    %948 = vmatprep.subr.mxu0 0.0
    %949 = vmatpush1.msra.mxu0 %v57
    %950 = vmatprep.subr.mxu0 0.0
    %951 = vmatpush1.msra.mxu0 0.0
    %952 = vmatprep.subr.mxu0 0.0
    %953 = vmatpush1.msra.mxu0 0.0
    %954 = vmatprep.subr.mxu0 0.0
    %955 = vmatpush1.msra.mxu0 0.0
    %956 = vmatprep.subr.mxu0 0.0
    %957 = vmatpush1.msra.mxu0 0.0
    %958 = vmatprep.subr.mxu0 0.0
    %959 = vmatpush1.msra.mxu0 0.0
    %960 = vmatprep.subr.mxu0 0.0
    %961 = vmatpush1.msra.mxu0 0.0
    %962 = vmatprep.subr.mxu0 0.0
    %963 = vmatpush1.msra.mxu0 0.0
    %964 = vmatprep.subr.mxu0 0.0
    %965 = vmatpush1.msra.mxu0 0.0
    %966 = vmatprep.subr.mxu0 0.0
    %967 = vmatpush1.msra.mxu0 0.0
    %968 = vmatprep.subr.mxu0 0.0
    %969 = vmatpush1.msra.mxu0 0.0
    %970 = vmatprep.subr.mxu0 0.0
    %971 = vmatpush1.msra.mxu0 0.0
    %972 = vmatprep.subr.mxu0 0.0
    %973 = vmatpush1.msra.mxu0 0.0
    %974 = vmatprep.subr.mxu0 0.0
    %975 = vmatpush1.msra.mxu0 0.0
    %976 = vmatprep.subr.mxu0 0.0
    %977 = vmatpush1.msra.mxu0 0.0
    %978 = vmatprep.subr.mxu0 0.0
    %979 = vmatpush1.msra.mxu0 0.0
    %980 = vmatprep.subr.mxu0 0.0
    %981 = vmatpush1.msra.mxu0 0.0
    %982 = vmatprep.subr.mxu0 0.0
    %983 = vmatpush1.msra.mxu0 0.0
    %984 = vmatprep.subr.mxu0 0.0
    %985 = vmatpush1.msra.mxu0 0.0
    %986 = vmatprep.subr.mxu0 0.0
    %987 = vmatpush1.msra.mxu0 0.0
    %988 = vmatprep.subr.mxu0 0.0
    %989 = vmatpush1.msra.mxu0 0.0
    %990 = vmatprep.subr.mxu0 0.0
    %991 = vmatpush1.msra.mxu0 0.0
    %992 = vmatprep.subr.mxu0 0.0
    %993 = vmatpush1.msra.mxu0 0.0
    %994 = vmatprep.subr.mxu0 0.0
    %995 = vmatpush1.msra.mxu0 0.0
    %996 = vmatprep.subr.mxu0 0.0
    %997 = vmatpush1.msra.mxu0 0.0
    %998 = vmatprep.subr.mxu0 0.0
    %999 = vmatpush1.msra.mxu0 0.0
    %1000 = vmatprep.subr.mxu0 0.0
    %1001 = vmatpush1.msra.mxu0 0.0
    %1002 = vmatprep.subr.mxu0 0.0
    %1003 = vmatpush1.msra.mxu0 0.0
    %1004 = vmatprep.subr.mxu0 0.0
    %1005 = vmatpush1.msra.mxu0 0.0
    %1006 = vmatprep.mubr.f32.mxu0 0.0
    %1007 = vmatmul.mubr.f32.gmra.mrb[0].mxu0 %v940
    %v1008 = vpop.f32.mrb[0].mxu0
    %v1009 = vadd.f32 %v256, %v1008
    %v1010 = vpop.f32.mrb[0].mxu0
    %1011 = vdwg.mxu0
    %1013 = vrot.lane.b32.xlu0 %v768, 32
    %v1014 = vpop.permute.xlu0 %1013
    %v1015 = vsel %vm154, %v1014, 0
    %1017 = vmatprep.subr.mxu0 0.0
    %1018 = vmatpush1.msra.mxu0 %v58
    %1019 = vmatprep.subr.mxu0 0.0
    %1020 = vmatpush1.msra.mxu0 %v59
    %1021 = vmatprep.subr.mxu0 0.0
    %1022 = vmatpush1.msra.mxu0 %v60
    %1023 = vmatprep.subr.mxu0 0.0
    %1024 = vmatpush1.msra.mxu0 %v61
    %1025 = vmatprep.subr.mxu0 0.0
    %1026 = vmatpush1.msra.mxu0 0.0
    %1027 = vmatprep.subr.mxu0 0.0
    %1028 = vmatpush1.msra.mxu0 0.0
    %1029 = vmatprep.subr.mxu0 0.0
    %1030 = vmatpush1.msra.mxu0 0.0
    %1031 = vmatprep.subr.mxu0 0.0
    %1032 = vmatpush1.msra.mxu0 0.0
    %1033 = vmatprep.subr.mxu0 0.0
    %1034 = vmatpush1.msra.mxu0 0.0
    %1035 = vmatprep.subr.mxu0 0.0
    %1036 = vmatpush1.msra.mxu0 0.0
    %1037 = vmatprep.subr.mxu0 0.0
    %1038 = vmatpush1.msra.mxu0 0.0
    %1039 = vmatprep.subr.mxu0 0.0
    %1040 = vmatpush1.msra.mxu0 0.0
    %1041 = vmatprep.subr.mxu0 0.0
    %1042 = vmatpush1.msra.mxu0 0.0
    %1043 = vmatprep.subr.mxu0 0.0
    %1044 = vmatpush1.msra.mxu0 0.0
    %1045 = vmatprep.subr.mxu0 0.0
    %1046 = vmatpush1.msra.mxu0 0.0
    %1047 = vmatprep.subr.mxu0 0.0
    %1048 = vmatpush1.msra.mxu0 0.0
    %1049 = vmatprep.subr.mxu0 0.0
    %1050 = vmatpush1.msra.mxu0 0.0
    %1051 = vmatprep.subr.mxu0 0.0
    %1052 = vmatpush1.msra.mxu0 0.0
    %1053 = vmatprep.subr.mxu0 0.0
    %1054 = vmatpush1.msra.mxu0 0.0
    %1055 = vmatprep.subr.mxu0 0.0
    %1056 = vmatpush1.msra.mxu0 0.0
    %1057 = vmatprep.subr.mxu0 0.0
    %1058 = vmatpush1.msra.mxu0 0.0
    %1059 = vmatprep.subr.mxu0 0.0
    %1060 = vmatpush1.msra.mxu0 0.0
    %1061 = vmatprep.subr.mxu0 0.0
    %1062 = vmatpush1.msra.mxu0 0.0
    %1063 = vmatprep.subr.mxu0 0.0
    %1064 = vmatpush1.msra.mxu0 0.0
    %1065 = vmatprep.subr.mxu0 0.0
    %1066 = vmatpush1.msra.mxu0 0.0
    %1067 = vmatprep.subr.mxu0 0.0
    %1068 = vmatpush1.msra.mxu0 0.0
    %1069 = vmatprep.subr.mxu0 0.0
    %1070 = vmatpush1.msra.mxu0 0.0
    %1071 = vmatprep.subr.mxu0 0.0
    %1072 = vmatpush1.msra.mxu0 0.0
    %1073 = vmatprep.subr.mxu0 0.0
    %1074 = vmatpush1.msra.mxu0 0.0
    %1075 = vmatprep.subr.mxu0 0.0
    %1076 = vmatpush1.msra.mxu0 0.0
    %1077 = vmatprep.subr.mxu0 0.0
    %1078 = vmatpush1.msra.mxu0 0.0
    %1079 = vmatprep.subr.mxu0 0.0
    %1080 = vmatpush1.msra.mxu0 0.0
    %1081 = vmatprep.mubr.f32.mxu0 0.0
    %1082 = vmatmul.mubr.f32.gmra.mrb[0].mxu0 %v1015
    %v1083 = vpop.f32.mrb[0].mxu0
    %v1084 = vadd.f32 0.0, %v1083
    %v1085 = vpop.f32.mrb[0].mxu0
    %1086 = vdwg.mxu0
    %v1087 = vadd.f32 %v1009, %v1084
    %v1088 = vmul.f32 %v1087, 0.5
    %v1089 = vtanh.pop %v1088
    %v1090 = vmul.f32 %v1089, 0.5
    %v1091 = vadd.f32 %v1090, 0.5
    %v1092 = vtanh.pop %v1087
    %v1093 = vsel %vm73, %v1092, %v1091
    %v1094 = vmul.f32 %v1093, %v762
    %1096 = vrot.lane.b32.xlu0 %v1093, 64
    %v1097 = vpop.permute.xlu0 %1096
    %v1099 = vmul.f32 %v1093, %v1097
    %1101 = vrot.lane.b32.xlu0 %v1099, 32
    %v1102 = vpop.permute.xlu0 %1101
    %v1104 = vadd.f32 %v1094, %v1102
    %v1105 = vtanh.pop %v1104
    %1107 = vrot.lane.b32.xlu0 %v1105, 64
    %v1108 = vpop.permute.xlu0 %1107
    %v1110 = vmul.f32 %v1093, %v1108
    %1111 = vrot.lane.b32.xlu0 %v68, 104
    %v1112 = vpop.permute.xlu0 %1111
    %v1113 = vsel %vm80, %v1112, 0
    %1115 = vmatprep.subr.mxu0 0.0
    %1116 = vmatpush1.msra.mxu0 %v48
    %1117 = vmatprep.subr.mxu0 0.0
    %1118 = vmatpush1.msra.mxu0 0.0
    %1119 = vmatprep.subr.mxu0 0.0
    %1120 = vmatpush1.msra.mxu0 0.0
    %1121 = vmatprep.subr.mxu0 0.0
    %1122 = vmatpush1.msra.mxu0 0.0
    %1123 = vmatprep.subr.mxu0 0.0
    %1124 = vmatpush1.msra.mxu0 0.0
    %1125 = vmatprep.subr.mxu0 0.0
    %1126 = vmatpush1.msra.mxu0 0.0
    %1127 = vmatprep.subr.mxu0 0.0
    %1128 = vmatpush1.msra.mxu0 0.0
    %1129 = vmatprep.subr.mxu0 0.0
    %1130 = vmatpush1.msra.mxu0 0.0
    %1131 = vmatprep.subr.mxu0 0.0
    %1132 = vmatpush1.msra.mxu0 0.0
    %1133 = vmatprep.subr.mxu0 0.0
    %1134 = vmatpush1.msra.mxu0 0.0
    %1135 = vmatprep.subr.mxu0 0.0
    %1136 = vmatpush1.msra.mxu0 0.0
    %1137 = vmatprep.subr.mxu0 0.0
    %1138 = vmatpush1.msra.mxu0 0.0
    %1139 = vmatprep.subr.mxu0 0.0
    %1140 = vmatpush1.msra.mxu0 0.0
    %1141 = vmatprep.subr.mxu0 0.0
    %1142 = vmatpush1.msra.mxu0 0.0
    %1143 = vmatprep.subr.mxu0 0.0
    %1144 = vmatpush1.msra.mxu0 0.0
    %1145 = vmatprep.subr.mxu0 0.0
    %1146 = vmatpush1.msra.mxu0 0.0
    %1147 = vmatprep.subr.mxu0 0.0
    %1148 = vmatpush1.msra.mxu0 0.0
    %1149 = vmatprep.subr.mxu0 0.0
    %1150 = vmatpush1.msra.mxu0 0.0
    %1151 = vmatprep.subr.mxu0 0.0
    %1152 = vmatpush1.msra.mxu0 0.0
    %1153 = vmatprep.subr.mxu0 0.0
    %1154 = vmatpush1.msra.mxu0 0.0
    %1155 = vmatprep.subr.mxu0 0.0
    %1156 = vmatpush1.msra.mxu0 0.0
    %1157 = vmatprep.subr.mxu0 0.0
    %1158 = vmatpush1.msra.mxu0 0.0
    %1159 = vmatprep.subr.mxu0 0.0
    %1160 = vmatpush1.msra.mxu0 0.0
    %1161 = vmatprep.subr.mxu0 0.0
    %1162 = vmatpush1.msra.mxu0 0.0
    %1163 = vmatprep.subr.mxu0 0.0
    %1164 = vmatpush1.msra.mxu0 0.0
    %1165 = vmatprep.subr.mxu0 0.0
    %1166 = vmatpush1.msra.mxu0 0.0
    %1167 = vmatprep.subr.mxu0 0.0
    %1168 = vmatpush1.msra.mxu0 0.0
    %1169 = vmatprep.subr.mxu0 0.0
    %1170 = vmatpush1.msra.mxu0 0.0
    %1171 = vmatprep.subr.mxu0 0.0
    %1172 = vmatpush1.msra.mxu0 0.0
    %1173 = vmatprep.subr.mxu0 0.0
    %1174 = vmatpush1.msra.mxu0 0.0
    %1175 = vmatprep.subr.mxu0 0.0
    %1176 = vmatpush1.msra.mxu0 0.0
    %1177 = vmatprep.subr.mxu0 0.0
    %1178 = vmatpush1.msra.mxu0 0.0
    %1179 = vmatprep.mubr.f32.mxu0 0.0
    %1180 = vmatmul.mubr.f32.gmra.mrb[0].mxu0 %v1113
    %v1181 = vpop.f32.mrb[0].mxu0
    %v1182 = vadd.f32 %v78, %v1181
    %v1183 = vpop.f32.mrb[0].mxu0
    %1184 = vdwg.mxu0
    %1185 = vmatprep.subr.mxu0 0.0
    %1186 = vmatpush1.msra.mxu0 %v49
    %1187 = vmatprep.subr.mxu0 0.0
    %1188 = vmatpush1.msra.mxu0 %v50
    %1189 = vmatprep.subr.mxu0 0.0
    %1190 = vmatpush1.msra.mxu0 %v51
    %1191 = vmatprep.subr.mxu0 0.0
    %1192 = vmatpush1.msra.mxu0 %v52
    %1193 = vmatprep.subr.mxu0 0.0
    %1194 = vmatpush1.msra.mxu0 0.0
    %1195 = vmatprep.subr.mxu0 0.0
    %1196 = vmatpush1.msra.mxu0 0.0
    %1197 = vmatprep.subr.mxu0 0.0
    %1198 = vmatpush1.msra.mxu0 0.0
    %1199 = vmatprep.subr.mxu0 0.0
    %1200 = vmatpush1.msra.mxu0 0.0
    %1201 = vmatprep.subr.mxu0 0.0
    %1202 = vmatpush1.msra.mxu0 0.0
    %1203 = vmatprep.subr.mxu0 0.0
    %1204 = vmatpush1.msra.mxu0 0.0
    %1205 = vmatprep.subr.mxu0 0.0
    %1206 = vmatpush1.msra.mxu0 0.0
    %1207 = vmatprep.subr.mxu0 0.0
    %1208 = vmatpush1.msra.mxu0 0.0
    %1209 = vmatprep.subr.mxu0 0.0
    %1210 = vmatpush1.msra.mxu0 0.0
    %1211 = vmatprep.subr.mxu0 0.0
    %1212 = vmatpush1.msra.mxu0 0.0
    %1213 = vmatprep.subr.mxu0 0.0
    %1214 = vmatpush1.msra.mxu0 0.0
    %1215 = vmatprep.subr.mxu0 0.0
    %1216 = vmatpush1.msra.mxu0 0.0
    %1217 = vmatprep.subr.mxu0 0.0
    %1218 = vmatpush1.msra.mxu0 0.0
    %1219 = vmatprep.subr.mxu0 0.0
    %1220 = vmatpush1.msra.mxu0 0.0
    %1221 = vmatprep.subr.mxu0 0.0
    %1222 = vmatpush1.msra.mxu0 0.0
    %1223 = vmatprep.subr.mxu0 0.0
    %1224 = vmatpush1.msra.mxu0 0.0
    %1225 = vmatprep.subr.mxu0 0.0
    %1226 = vmatpush1.msra.mxu0 0.0
    %1227 = vmatprep.subr.mxu0 0.0
    %1228 = vmatpush1.msra.mxu0 0.0
    %1229 = vmatprep.subr.mxu0 0.0
    %1230 = vmatpush1.msra.mxu0 0.0
    %1231 = vmatprep.subr.mxu0 0.0
    %1232 = vmatpush1.msra.mxu0 0.0
    %1233 = vmatprep.subr.mxu0 0.0
    %1234 = vmatpush1.msra.mxu0 0.0
    %1235 = vmatprep.subr.mxu0 0.0
    %1236 = vmatpush1.msra.mxu0 0.0
    %1237 = vmatprep.subr.mxu0 0.0
    %1238 = vmatpush1.msra.mxu0 0.0
    %1239 = vmatprep.subr.mxu0 0.0
    %1240 = vmatpush1.msra.mxu0 0.0
    %1241 = vmatprep.subr.mxu0 0.0
    %1242 = vmatpush1.msra.mxu0 0.0
    %1243 = vmatprep.subr.mxu0 0.0
    %1244 = vmatpush1.msra.mxu0 0.0
    %1245 = vmatprep.subr.mxu0 0.0
    %1246 = vmatpush1.msra.mxu0 0.0
    %1247 = vmatprep.subr.mxu0 0.0
    %1248 = vmatpush1.msra.mxu0 0.0
    %1249 = vmatprep.mubr.f32.mxu0 0.0
    %1250 = vmatmul.mubr.f32.gmra.mrb[0].mxu0 %v940
    %v1251 = vpop.f32.mrb[0].mxu0
    %v1252 = vadd.f32 0.0, %v1251
    %v1253 = vpop.f32.mrb[0].mxu0
    %1254 = vdwg.mxu0
    %v1255 = vadd.f32 %v1182, %v1252
    %v1256 = vmul.f32 %v1255, 0.5
    %v1257 = vtanh.pop %v1256
    %v1258 = vmul.f32 %v1257, 0.5
    %v1259 = vadd.f32 %v1258, 0.5
    %v1260 = vtanh.pop %v1255
    %v1261 = vsel %vm73, %v1260, %v1259
    %v1262 = vmul.f32 %v1261, %v930
    %1264 = vrot.lane.b32.xlu0 %v1261, 64
    %v1265 = vpop.permute.xlu0 %1264
    %v1267 = vmul.f32 %v1261, %v1265
    %1269 = vrot.lane.b32.xlu0 %v1267, 32
    %v1270 = vpop.permute.xlu0 %1269
    %v1272 = vadd.f32 %v1262, %v1270
    %v1273 = vtanh.pop %v1272
    %1275 = vrot.lane.b32.xlu0 %v1273, 64
    %v1276 = vpop.permute.xlu0 %1275
    %v1278 = vmul.f32 %v1261, %v1276
    %1280 = vrot.lane.b32.xlu0 %v1278, 32
    %v1281 = vpop.permute.xlu0 %1280
    %v1282 = vsel %vm154, %v1281, 0
    %1284 = vmatprep.subr.mxu0 0.0
    %1285 = vmatpush1.msra.mxu0 %v54
    %1286 = vmatprep.subr.mxu0 0.0
    %1287 = vmatpush1.msra.mxu0 %v55
    %1288 = vmatprep.subr.mxu0 0.0
    %1289 = vmatpush1.msra.mxu0 %v56
    %1290 = vmatprep.subr.mxu0 0.0
    %1291 = vmatpush1.msra.mxu0 %v57
    %1292 = vmatprep.subr.mxu0 0.0
    %1293 = vmatpush1.msra.mxu0 0.0
    %1294 = vmatprep.subr.mxu0 0.0
    %1295 = vmatpush1.msra.mxu0 0.0
    %1296 = vmatprep.subr.mxu0 0.0
    %1297 = vmatpush1.msra.mxu0 0.0
    %1298 = vmatprep.subr.mxu0 0.0
    %1299 = vmatpush1.msra.mxu0 0.0
    %1300 = vmatprep.subr.mxu0 0.0
    %1301 = vmatpush1.msra.mxu0 0.0
    %1302 = vmatprep.subr.mxu0 0.0
    %1303 = vmatpush1.msra.mxu0 0.0
    %1304 = vmatprep.subr.mxu0 0.0
    %1305 = vmatpush1.msra.mxu0 0.0
    %1306 = vmatprep.subr.mxu0 0.0
    %1307 = vmatpush1.msra.mxu0 0.0
    %1308 = vmatprep.subr.mxu0 0.0
    %1309 = vmatpush1.msra.mxu0 0.0
    %1310 = vmatprep.subr.mxu0 0.0
    %1311 = vmatpush1.msra.mxu0 0.0
    %1312 = vmatprep.subr.mxu0 0.0
    %1313 = vmatpush1.msra.mxu0 0.0
    %1314 = vmatprep.subr.mxu0 0.0
    %1315 = vmatpush1.msra.mxu0 0.0
    %1316 = vmatprep.subr.mxu0 0.0
    %1317 = vmatpush1.msra.mxu0 0.0
    %1318 = vmatprep.subr.mxu0 0.0
    %1319 = vmatpush1.msra.mxu0 0.0
    %1320 = vmatprep.subr.mxu0 0.0
    %1321 = vmatpush1.msra.mxu0 0.0
    %1322 = vmatprep.subr.mxu0 0.0
    %1323 = vmatpush1.msra.mxu0 0.0
    %1324 = vmatprep.subr.mxu0 0.0
    %1325 = vmatpush1.msra.mxu0 0.0
    %1326 = vmatprep.subr.mxu0 0.0
    %1327 = vmatpush1.msra.mxu0 0.0
    %1328 = vmatprep.subr.mxu0 0.0
    %1329 = vmatpush1.msra.mxu0 0.0
    %1330 = vmatprep.subr.mxu0 0.0
    %1331 = vmatpush1.msra.mxu0 0.0
    %1332 = vmatprep.subr.mxu0 0.0
    %1333 = vmatpush1.msra.mxu0 0.0
    %1334 = vmatprep.subr.mxu0 0.0
    %1335 = vmatpush1.msra.mxu0 0.0
    %1336 = vmatprep.subr.mxu0 0.0
    %1337 = vmatpush1.msra.mxu0 0.0
    %1338 = vmatprep.subr.mxu0 0.0
    %1339 = vmatpush1.msra.mxu0 0.0
    %1340 = vmatprep.subr.mxu0 0.0
    %1341 = vmatpush1.msra.mxu0 0.0
    %1342 = vmatprep.subr.mxu0 0.0
    %1343 = vmatpush1.msra.mxu0 0.0
    %1344 = vmatprep.subr.mxu0 0.0
    %1345 = vmatpush1.msra.mxu0 0.0
    %1346 = vmatprep.subr.mxu0 0.0
    %1347 = vmatpush1.msra.mxu0 0.0
    %1348 = vmatprep.mubr.f32.mxu0 0.0
    %1349 = vmatmul.mubr.f32.gmra.mrb[0].mxu0 %v1282
    %v1350 = vpop.f32.mrb[0].mxu0
    %v1351 = vadd.f32 %v256, %v1350
    %v1352 = vpop.f32.mrb[0].mxu0
    %1353 = vdwg.mxu0
    %1355 = vrot.lane.b32.xlu0 %v1110, 32
    %v1356 = vpop.permute.xlu0 %1355
    %v1357 = vsel %vm154, %v1356, 0
    %1359 = vmatprep.subr.mxu0 0.0
    %1360 = vmatpush1.msra.mxu0 %v58
    %1361 = vmatprep.subr.mxu0 0.0
    %1362 = vmatpush1.msra.mxu0 %v59
    %1363 = vmatprep.subr.mxu0 0.0
    %1364 = vmatpush1.msra.mxu0 %v60
    %1365 = vmatprep.subr.mxu0 0.0
    %1366 = vmatpush1.msra.mxu0 %v61
    %1367 = vmatprep.subr.mxu0 0.0
    %1368 = vmatpush1.msra.mxu0 0.0
    %1369 = vmatprep.subr.mxu0 0.0
    %1370 = vmatpush1.msra.mxu0 0.0
    %1371 = vmatprep.subr.mxu0 0.0
    %1372 = vmatpush1.msra.mxu0 0.0
    %1373 = vmatprep.subr.mxu0 0.0
    %1374 = vmatpush1.msra.mxu0 0.0
    %1375 = vmatprep.subr.mxu0 0.0
    %1376 = vmatpush1.msra.mxu0 0.0
    %1377 = vmatprep.subr.mxu0 0.0
    %1378 = vmatpush1.msra.mxu0 0.0
    %1379 = vmatprep.subr.mxu0 0.0
    %1380 = vmatpush1.msra.mxu0 0.0
    %1381 = vmatprep.subr.mxu0 0.0
    %1382 = vmatpush1.msra.mxu0 0.0
    %1383 = vmatprep.subr.mxu0 0.0
    %1384 = vmatpush1.msra.mxu0 0.0
    %1385 = vmatprep.subr.mxu0 0.0
    %1386 = vmatpush1.msra.mxu0 0.0
    %1387 = vmatprep.subr.mxu0 0.0
    %1388 = vmatpush1.msra.mxu0 0.0
    %1389 = vmatprep.subr.mxu0 0.0
    %1390 = vmatpush1.msra.mxu0 0.0
    %1391 = vmatprep.subr.mxu0 0.0
    %1392 = vmatpush1.msra.mxu0 0.0
    %1393 = vmatprep.subr.mxu0 0.0
    %1394 = vmatpush1.msra.mxu0 0.0
    %1395 = vmatprep.subr.mxu0 0.0
    %1396 = vmatpush1.msra.mxu0 0.0
    %1397 = vmatprep.subr.mxu0 0.0
    %1398 = vmatpush1.msra.mxu0 0.0
    %1399 = vmatprep.subr.mxu0 0.0
    %1400 = vmatpush1.msra.mxu0 0.0
    %1401 = vmatprep.subr.mxu0 0.0
    %1402 = vmatpush1.msra.mxu0 0.0
    %1403 = vmatprep.subr.mxu0 0.0
    %1404 = vmatpush1.msra.mxu0 0.0
    %1405 = vmatprep.subr.mxu0 0.0
    %1406 = vmatpush1.msra.mxu0 0.0
    %1407 = vmatprep.subr.mxu0 0.0
    %1408 = vmatpush1.msra.mxu0 0.0
    %1409 = vmatprep.subr.mxu0 0.0
    %1410 = vmatpush1.msra.mxu0 0.0
    %1411 = vmatprep.subr.mxu0 0.0
    %1412 = vmatpush1.msra.mxu0 0.0
    %1413 = vmatprep.subr.mxu0 0.0
    %1414 = vmatpush1.msra.mxu0 0.0
    %1415 = vmatprep.subr.mxu0 0.0
    %1416 = vmatpush1.msra.mxu0 0.0
    %1417 = vmatprep.subr.mxu0 0.0
    %1418 = vmatpush1.msra.mxu0 0.0
    %1419 = vmatprep.subr.mxu0 0.0
    %1420 = vmatpush1.msra.mxu0 0.0
    %1421 = vmatprep.subr.mxu0 0.0
    %1422 = vmatpush1.msra.mxu0 0.0
    %1423 = vmatprep.mubr.f32.mxu0 0.0
    %1424 = vmatmul.mubr.f32.gmra.mrb[0].mxu0 %v1357
    %v1425 = vpop.f32.mrb[0].mxu0
    %v1426 = vadd.f32 0.0, %v1425
    %v1427 = vpop.f32.mrb[0].mxu0
    %1428 = vdwg.mxu0
    %v1429 = vadd.f32 %v1351, %v1426
    %v1430 = vmul.f32 %v1429, 0.5
    %v1431 = vtanh.pop %v1430
    %v1432 = vmul.f32 %v1431, 0.5
    %v1433 = vadd.f32 %v1432, 0.5
    %v1434 = vtanh.pop %v1429
    %v1435 = vsel %vm73, %v1434, %v1433
    %v1436 = vmul.f32 %v1435, %v1104
    %1438 = vrot.lane.b32.xlu0 %v1435, 64
    %v1439 = vpop.permute.xlu0 %1438
    %v1441 = vmul.f32 %v1435, %v1439
    %1443 = vrot.lane.b32.xlu0 %v1441, 32
    %v1444 = vpop.permute.xlu0 %1443
    %v1446 = vadd.f32 %v1436, %v1444
    %v1447 = vtanh.pop %v1446
    %1449 = vrot.lane.b32.xlu0 %v1447, 64
    %v1450 = vpop.permute.xlu0 %1449
    %v1452 = vmul.f32 %v1435, %v1450
    %1453 = vrot.lane.b32.xlu0 %v68, 96
    %v1454 = vpop.permute.xlu0 %1453
    %v1455 = vsel %vm80, %v1454, 0
    %1457 = vmatprep.subr.mxu0 0.0
    %1458 = vmatpush1.msra.mxu0 %v48
    %1459 = vmatprep.subr.mxu0 0.0
    %1460 = vmatpush1.msra.mxu0 0.0
    %1461 = vmatprep.subr.mxu0 0.0
    %1462 = vmatpush1.msra.mxu0 0.0
    %1463 = vmatprep.subr.mxu0 0.0
    %1464 = vmatpush1.msra.mxu0 0.0
    %1465 = vmatprep.subr.mxu0 0.0
    %1466 = vmatpush1.msra.mxu0 0.0
    %1467 = vmatprep.subr.mxu0 0.0
    %1468 = vmatpush1.msra.mxu0 0.0
    %1469 = vmatprep.subr.mxu0 0.0
    %1470 = vmatpush1.msra.mxu0 0.0
    %1471 = vmatprep.subr.mxu0 0.0
    %1472 = vmatpush1.msra.mxu0 0.0
    %1473 = vmatprep.subr.mxu0 0.0
    %1474 = vmatpush1.msra.mxu0 0.0
    %1475 = vmatprep.subr.mxu0 0.0
    %1476 = vmatpush1.msra.mxu0 0.0
    %1477 = vmatprep.subr.mxu0 0.0
    %1478 = vmatpush1.msra.mxu0 0.0
    %1479 = vmatprep.subr.mxu0 0.0
    %1480 = vmatpush1.msra.mxu0 0.0
    %1481 = vmatprep.subr.mxu0 0.0
    %1482 = vmatpush1.msra.mxu0 0.0
    %1483 = vmatprep.subr.mxu0 0.0
    %1484 = vmatpush1.msra.mxu0 0.0
    %1485 = vmatprep.subr.mxu0 0.0
    %1486 = vmatpush1.msra.mxu0 0.0
    %1487 = vmatprep.subr.mxu0 0.0
    %1488 = vmatpush1.msra.mxu0 0.0
    %1489 = vmatprep.subr.mxu0 0.0
    %1490 = vmatpush1.msra.mxu0 0.0
    %1491 = vmatprep.subr.mxu0 0.0
    %1492 = vmatpush1.msra.mxu0 0.0
    %1493 = vmatprep.subr.mxu0 0.0
    %1494 = vmatpush1.msra.mxu0 0.0
    %1495 = vmatprep.subr.mxu0 0.0
    %1496 = vmatpush1.msra.mxu0 0.0
    %1497 = vmatprep.subr.mxu0 0.0
    %1498 = vmatpush1.msra.mxu0 0.0
    %1499 = vmatprep.subr.mxu0 0.0
    %1500 = vmatpush1.msra.mxu0 0.0
    %1501 = vmatprep.subr.mxu0 0.0
    %1502 = vmatpush1.msra.mxu0 0.0
    %1503 = vmatprep.subr.mxu0 0.0
    %1504 = vmatpush1.msra.mxu0 0.0
    %1505 = vmatprep.subr.mxu0 0.0
    %1506 = vmatpush1.msra.mxu0 0.0
    %1507 = vmatprep.subr.mxu0 0.0
    %1508 = vmatpush1.msra.mxu0 0.0
    %1509 = vmatprep.subr.mxu0 0.0
    %1510 = vmatpush1.msra.mxu0 0.0
    %1511 = vmatprep.subr.mxu0 0.0
    %1512 = vmatpush1.msra.mxu0 0.0
    %1513 = vmatprep.subr.mxu0 0.0
    %1514 = vmatpush1.msra.mxu0 0.0
    %1515 = vmatprep.subr.mxu0 0.0
    %1516 = vmatpush1.msra.mxu0 0.0
    %1517 = vmatprep.subr.mxu0 0.0
    %1518 = vmatpush1.msra.mxu0 0.0
    %1519 = vmatprep.subr.mxu0 0.0
    %1520 = vmatpush1.msra.mxu0 0.0
    %1521 = vmatprep.mubr.f32.mxu0 0.0
    %1522 = vmatmul.mubr.f32.gmra.mrb[0].mxu0 %v1455
    %v1523 = vpop.f32.mrb[0].mxu0
    %v1524 = vadd.f32 %v78, %v1523
    %v1525 = vpop.f32.mrb[0].mxu0
    %1526 = vdwg.mxu0
    %1527 = vmatprep.subr.mxu0 0.0
    %1528 = vmatpush1.msra.mxu0 %v49
    %1529 = vmatprep.subr.mxu0 0.0
    %1530 = vmatpush1.msra.mxu0 %v50
    %1531 = vmatprep.subr.mxu0 0.0
    %1532 = vmatpush1.msra.mxu0 %v51
    %1533 = vmatprep.subr.mxu0 0.0
    %1534 = vmatpush1.msra.mxu0 %v52
    %1535 = vmatprep.subr.mxu0 0.0
    %1536 = vmatpush1.msra.mxu0 0.0
    %1537 = vmatprep.subr.mxu0 0.0
    %1538 = vmatpush1.msra.mxu0 0.0
    %1539 = vmatprep.subr.mxu0 0.0
    %1540 = vmatpush1.msra.mxu0 0.0
    %1541 = vmatprep.subr.mxu0 0.0
    %1542 = vmatpush1.msra.mxu0 0.0
    %1543 = vmatprep.subr.mxu0 0.0
    %1544 = vmatpush1.msra.mxu0 0.0
    %1545 = vmatprep.subr.mxu0 0.0
    %1546 = vmatpush1.msra.mxu0 0.0
    %1547 = vmatprep.subr.mxu0 0.0
    %1548 = vmatpush1.msra.mxu0 0.0
    %1549 = vmatprep.subr.mxu0 0.0
    %1550 = vmatpush1.msra.mxu0 0.0
    %1551 = vmatprep.subr.mxu0 0.0
    %1552 = vmatpush1.msra.mxu0 0.0
    %1553 = vmatprep.subr.mxu0 0.0
    %1554 = vmatpush1.msra.mxu0 0.0
    %1555 = vmatprep.subr.mxu0 0.0
    %1556 = vmatpush1.msra.mxu0 0.0
    %1557 = vmatprep.subr.mxu0 0.0
    %1558 = vmatpush1.msra.mxu0 0.0
    %1559 = vmatprep.subr.mxu0 0.0
    %1560 = vmatpush1.msra.mxu0 0.0
    %1561 = vmatprep.subr.mxu0 0.0
    %1562 = vmatpush1.msra.mxu0 0.0
    %1563 = vmatprep.subr.mxu0 0.0
    %1564 = vmatpush1.msra.mxu0 0.0
    %1565 = vmatprep.subr.mxu0 0.0
    %1566 = vmatpush1.msra.mxu0 0.0
    %1567 = vmatprep.subr.mxu0 0.0
    %1568 = vmatpush1.msra.mxu0 0.0
    %1569 = vmatprep.subr.mxu0 0.0
    %1570 = vmatpush1.msra.mxu0 0.0
    %1571 = vmatprep.subr.mxu0 0.0
    %1572 = vmatpush1.msra.mxu0 0.0
    %1573 = vmatprep.subr.mxu0 0.0
    %1574 = vmatpush1.msra.mxu0 0.0
    %1575 = vmatprep.subr.mxu0 0.0
    %1576 = vmatpush1.msra.mxu0 0.0
    %1577 = vmatprep.subr.mxu0 0.0
    %1578 = vmatpush1.msra.mxu0 0.0
    %1579 = vmatprep.subr.mxu0 0.0
    %1580 = vmatpush1.msra.mxu0 0.0
    %1581 = vmatprep.subr.mxu0 0.0
    %1582 = vmatpush1.msra.mxu0 0.0
    %1583 = vmatprep.subr.mxu0 0.0
    %1584 = vmatpush1.msra.mxu0 0.0
    %1585 = vmatprep.subr.mxu0 0.0
    %1586 = vmatpush1.msra.mxu0 0.0
    %1587 = vmatprep.subr.mxu0 0.0
    %1588 = vmatpush1.msra.mxu0 0.0
    %1589 = vmatprep.subr.mxu0 0.0
    %1590 = vmatpush1.msra.mxu0 0.0
    %1591 = vmatprep.mubr.f32.mxu0 0.0
    %1592 = vmatmul.mubr.f32.gmra.mrb[0].mxu0 %v1282
    %v1593 = vpop.f32.mrb[0].mxu0
    %v1594 = vadd.f32 0.0, %v1593
    %v1595 = vpop.f32.mrb[0].mxu0
    %1596 = vdwg.mxu0
    %v1597 = vadd.f32 %v1524, %v1594
    %v1598 = vmul.f32 %v1597, 0.5
    %v1599 = vtanh.pop %v1598
    %v1600 = vmul.f32 %v1599, 0.5
    %v1601 = vadd.f32 %v1600, 0.5
    %v1602 = vtanh.pop %v1597
    %v1603 = vsel %vm73, %v1602, %v1601
    %v1604 = vmul.f32 %v1603, %v1272
    %1606 = vrot.lane.b32.xlu0 %v1603, 64
    %v1607 = vpop.permute.xlu0 %1606
    %v1609 = vmul.f32 %v1603, %v1607
    %1611 = vrot.lane.b32.xlu0 %v1609, 32
    %v1612 = vpop.permute.xlu0 %1611
    %v1614 = vadd.f32 %v1604, %v1612
    %v1615 = vtanh.pop %v1614
    %1617 = vrot.lane.b32.xlu0 %v1615, 64
    %v1618 = vpop.permute.xlu0 %1617
    %v1620 = vmul.f32 %v1603, %v1618
    %1622 = vrot.lane.b32.xlu0 %v1620, 32
    %v1623 = vpop.permute.xlu0 %1622
    %v1624 = vsel %vm154, %v1623, 0
    %1626 = vmatprep.subr.mxu0 0.0
    %1627 = vmatpush1.msra.mxu0 %v54
    %1628 = vmatprep.subr.mxu0 0.0
    %1629 = vmatpush1.msra.mxu0 %v55
    %1630 = vmatprep.subr.mxu0 0.0
    %1631 = vmatpush1.msra.mxu0 %v56
    %1632 = vmatprep.subr.mxu0 0.0
    %1633 = vmatpush1.msra.mxu0 %v57
    %1634 = vmatprep.subr.mxu0 0.0
    %1635 = vmatpush1.msra.mxu0 0.0
    %1636 = vmatprep.subr.mxu0 0.0
    %1637 = vmatpush1.msra.mxu0 0.0
    %1638 = vmatprep.subr.mxu0 0.0
    %1639 = vmatpush1.msra.mxu0 0.0
    %1640 = vmatprep.subr.mxu0 0.0
    %1641 = vmatpush1.msra.mxu0 0.0
    %1642 = vmatprep.subr.mxu0 0.0
    %1643 = vmatpush1.msra.mxu0 0.0
    %1644 = vmatprep.subr.mxu0 0.0
    %1645 = vmatpush1.msra.mxu0 0.0
    %1646 = vmatprep.subr.mxu0 0.0
    %1647 = vmatpush1.msra.mxu0 0.0
    %1648 = vmatprep.subr.mxu0 0.0
    %1649 = vmatpush1.msra.mxu0 0.0
    %1650 = vmatprep.subr.mxu0 0.0
    %1651 = vmatpush1.msra.mxu0 0.0
    %1652 = vmatprep.subr.mxu0 0.0
    %1653 = vmatpush1.msra.mxu0 0.0
    %1654 = vmatprep.subr.mxu0 0.0
    %1655 = vmatpush1.msra.mxu0 0.0
    %1656 = vmatprep.subr.mxu0 0.0
    %1657 = vmatpush1.msra.mxu0 0.0
    %1658 = vmatprep.subr.mxu0 0.0
    %1659 = vmatpush1.msra.mxu0 0.0
    %1660 = vmatprep.subr.mxu0 0.0
    %1661 = vmatpush1.msra.mxu0 0.0
    %1662 = vmatprep.subr.mxu0 0.0
    %1663 = vmatpush1.msra.mxu0 0.0
    %1664 = vmatprep.subr.mxu0 0.0
    %1665 = vmatpush1.msra.mxu0 0.0
    %1666 = vmatprep.subr.mxu0 0.0
    %1667 = vmatpush1.msra.mxu0 0.0
    %1668 = vmatprep.subr.mxu0 0.0
    %1669 = vmatpush1.msra.mxu0 0.0
    %1670 = vmatprep.subr.mxu0 0.0
    %1671 = vmatpush1.msra.mxu0 0.0
    %1672 = vmatprep.subr.mxu0 0.0
    %1673 = vmatpush1.msra.mxu0 0.0
    %1674 = vmatprep.subr.mxu0 0.0
    %1675 = vmatpush1.msra.mxu0 0.0
    %1676 = vmatprep.subr.mxu0 0.0
    %1677 = vmatpush1.msra.mxu0 0.0
    %1678 = vmatprep.subr.mxu0 0.0
    %1679 = vmatpush1.msra.mxu0 0.0
    %1680 = vmatprep.subr.mxu0 0.0
    %1681 = vmatpush1.msra.mxu0 0.0
    %1682 = vmatprep.subr.mxu0 0.0
    %1683 = vmatpush1.msra.mxu0 0.0
    %1684 = vmatprep.subr.mxu0 0.0
    %1685 = vmatpush1.msra.mxu0 0.0
    %1686 = vmatprep.subr.mxu0 0.0
    %1687 = vmatpush1.msra.mxu0 0.0
    %1688 = vmatprep.subr.mxu0 0.0
    %1689 = vmatpush1.msra.mxu0 0.0
    %1690 = vmatprep.mubr.f32.mxu0 0.0
    %1691 = vmatmul.mubr.f32.gmra.mrb[0].mxu0 %v1624
    %v1692 = vpop.f32.mrb[0].mxu0
    %v1693 = vadd.f32 %v256, %v1692
    %v1694 = vpop.f32.mrb[0].mxu0
    %1695 = vdwg.mxu0
    %1697 = vrot.lane.b32.xlu0 %v1452, 32
    %v1698 = vpop.permute.xlu0 %1697
    %v1699 = vsel %vm154, %v1698, 0
    %1701 = vmatprep.subr.mxu0 0.0
    %1702 = vmatpush1.msra.mxu0 %v58
    %1703 = vmatprep.subr.mxu0 0.0
    %1704 = vmatpush1.msra.mxu0 %v59
    %1705 = vmatprep.subr.mxu0 0.0
    %1706 = vmatpush1.msra.mxu0 %v60
    %1707 = vmatprep.subr.mxu0 0.0
    %1708 = vmatpush1.msra.mxu0 %v61
    %1709 = vmatprep.subr.mxu0 0.0
    %1710 = vmatpush1.msra.mxu0 0.0
    %1711 = vmatprep.subr.mxu0 0.0
    %1712 = vmatpush1.msra.mxu0 0.0
    %1713 = vmatprep.subr.mxu0 0.0
    %1714 = vmatpush1.msra.mxu0 0.0
    %1715 = vmatprep.subr.mxu0 0.0
    %1716 = vmatpush1.msra.mxu0 0.0
    %1717 = vmatprep.subr.mxu0 0.0
    %1718 = vmatpush1.msra.mxu0 0.0
    %1719 = vmatprep.subr.mxu0 0.0
    %1720 = vmatpush1.msra.mxu0 0.0
    %1721 = vmatprep.subr.mxu0 0.0
    %1722 = vmatpush1.msra.mxu0 0.0
    %1723 = vmatprep.subr.mxu0 0.0
    %1724 = vmatpush1.msra.mxu0 0.0
    %1725 = vmatprep.subr.mxu0 0.0
    %1726 = vmatpush1.msra.mxu0 0.0
    %1727 = vmatprep.subr.mxu0 0.0
    %1728 = vmatpush1.msra.mxu0 0.0
    %1729 = vmatprep.subr.mxu0 0.0
    %1730 = vmatpush1.msra.mxu0 0.0
    %1731 = vmatprep.subr.mxu0 0.0
    %1732 = vmatpush1.msra.mxu0 0.0
    %1733 = vmatprep.subr.mxu0 0.0
    %1734 = vmatpush1.msra.mxu0 0.0
    %1735 = vmatprep.subr.mxu0 0.0
    %1736 = vmatpush1.msra.mxu0 0.0
    %1737 = vmatprep.subr.mxu0 0.0
    %1738 = vmatpush1.msra.mxu0 0.0
    %1739 = vmatprep.subr.mxu0 0.0
    %1740 = vmatpush1.msra.mxu0 0.0
    %1741 = vmatprep.subr.mxu0 0.0
    %1742 = vmatpush1.msra.mxu0 0.0
    %1743 = vmatprep.subr.mxu0 0.0
    %1744 = vmatpush1.msra.mxu0 0.0
    %1745 = vmatprep.subr.mxu0 0.0
    %1746 = vmatpush1.msra.mxu0 0.0
    %1747 = vmatprep.subr.mxu0 0.0
    %1748 = vmatpush1.msra.mxu0 0.0
    %1749 = vmatprep.subr.mxu0 0.0
    %1750 = vmatpush1.msra.mxu0 0.0
    %1751 = vmatprep.subr.mxu0 0.0
    %1752 = vmatpush1.msra.mxu0 0.0
    %1753 = vmatprep.subr.mxu0 0.0
    %1754 = vmatpush1.msra.mxu0 0.0
    %1755 = vmatprep.subr.mxu0 0.0
    %1756 = vmatpush1.msra.mxu0 0.0
    %1757 = vmatprep.subr.mxu0 0.0
    %1758 = vmatpush1.msra.mxu0 0.0
    %1759 = vmatprep.subr.mxu0 0.0
    %1760 = vmatpush1.msra.mxu0 0.0
    %1761 = vmatprep.subr.mxu0 0.0
    %1762 = vmatpush1.msra.mxu0 0.0
    %1763 = vmatprep.subr.mxu0 0.0
    %1764 = vmatpush1.msra.mxu0 0.0
    %1765 = vmatprep.mubr.f32.mxu0 0.0
    %1766 = vmatmul.mubr.f32.gmra.mrb[0].mxu0 %v1699
    %v1767 = vpop.f32.mrb[0].mxu0
    %v1768 = vadd.f32 0.0, %v1767
    %v1769 = vpop.f32.mrb[0].mxu0
    %1770 = vdwg.mxu0
    %v1771 = vadd.f32 %v1693, %v1768
    %v1772 = vmul.f32 %v1771, 0.5
    %v1773 = vtanh.pop %v1772
    %v1774 = vmul.f32 %v1773, 0.5
    %v1775 = vadd.f32 %v1774, 0.5
    %v1776 = vtanh.pop %v1771
    %v1777 = vsel %vm73, %v1776, %v1775
    %v1778 = vmul.f32 %v1777, %v1446
    %1780 = vrot.lane.b32.xlu0 %v1777, 64
    %v1781 = vpop.permute.xlu0 %1780
    %v1783 = vmul.f32 %v1777, %v1781
    %1785 = vrot.lane.b32.xlu0 %v1783, 32
    %v1786 = vpop.permute.xlu0 %1785
    %v1788 = vadd.f32 %v1778, %v1786
    %v1789 = vtanh.pop %v1788
    %1791 = vrot.lane.b32.xlu0 %v1789, 64
    %v1792 = vpop.permute.xlu0 %1791
    %v1794 = vmul.f32 %v1777, %v1792
    %1795 = vrot.lane.b32.xlu0 %v68, 88
    %v1796 = vpop.permute.xlu0 %1795
    %v1797 = vsel %vm80, %v1796, 0
    %1799 = vmatprep.subr.mxu0 0.0
    %1800 = vmatpush1.msra.mxu0 %v48
    %1801 = vmatprep.subr.mxu0 0.0
    %1802 = vmatpush1.msra.mxu0 0.0
    %1803 = vmatprep.subr.mxu0 0.0
    %1804 = vmatpush1.msra.mxu0 0.0
    %1805 = vmatprep.subr.mxu0 0.0
    %1806 = vmatpush1.msra.mxu0 0.0
    %1807 = vmatprep.subr.mxu0 0.0
    %1808 = vmatpush1.msra.mxu0 0.0
    %1809 = vmatprep.subr.mxu0 0.0
    %1810 = vmatpush1.msra.mxu0 0.0
    %1811 = vmatprep.subr.mxu0 0.0
    %1812 = vmatpush1.msra.mxu0 0.0
    %1813 = vmatprep.subr.mxu0 0.0
    %1814 = vmatpush1.msra.mxu0 0.0
    %1815 = vmatprep.subr.mxu0 0.0
    %1816 = vmatpush1.msra.mxu0 0.0
    %1817 = vmatprep.subr.mxu0 0.0
    %1818 = vmatpush1.msra.mxu0 0.0
    %1819 = vmatprep.subr.mxu0 0.0
    %1820 = vmatpush1.msra.mxu0 0.0
    %1821 = vmatprep.subr.mxu0 0.0
    %1822 = vmatpush1.msra.mxu0 0.0
    %1823 = vmatprep.subr.mxu0 0.0
    %1824 = vmatpush1.msra.mxu0 0.0
    %1825 = vmatprep.subr.mxu0 0.0
    %1826 = vmatpush1.msra.mxu0 0.0
    %1827 = vmatprep.subr.mxu0 0.0
    %1828 = vmatpush1.msra.mxu0 0.0
    %1829 = vmatprep.subr.mxu0 0.0
    %1830 = vmatpush1.msra.mxu0 0.0
    %1831 = vmatprep.subr.mxu0 0.0
    %1832 = vmatpush1.msra.mxu0 0.0
    %1833 = vmatprep.subr.mxu0 0.0
    %1834 = vmatpush1.msra.mxu0 0.0
    %1835 = vmatprep.subr.mxu0 0.0
    %1836 = vmatpush1.msra.mxu0 0.0
    %1837 = vmatprep.subr.mxu0 0.0
    %1838 = vmatpush1.msra.mxu0 0.0
    %1839 = vmatprep.subr.mxu0 0.0
    %1840 = vmatpush1.msra.mxu0 0.0
    %1841 = vmatprep.subr.mxu0 0.0
    %1842 = vmatpush1.msra.mxu0 0.0
    %1843 = vmatprep.subr.mxu0 0.0
    %1844 = vmatpush1.msra.mxu0 0.0
    %1845 = vmatprep.subr.mxu0 0.0
    %1846 = vmatpush1.msra.mxu0 0.0
    %1847 = vmatprep.subr.mxu0 0.0
    %1848 = vmatpush1.msra.mxu0 0.0
    %1849 = vmatprep.subr.mxu0 0.0
    %1850 = vmatpush1.msra.mxu0 0.0
    %1851 = vmatprep.subr.mxu0 0.0
    %1852 = vmatpush1.msra.mxu0 0.0
    %1853 = vmatprep.subr.mxu0 0.0
    %1854 = vmatpush1.msra.mxu0 0.0
    %1855 = vmatprep.subr.mxu0 0.0
    %1856 = vmatpush1.msra.mxu0 0.0
    %1857 = vmatprep.subr.mxu0 0.0
    %1858 = vmatpush1.msra.mxu0 0.0
    %1859 = vmatprep.subr.mxu0 0.0
    %1860 = vmatpush1.msra.mxu0 0.0
    %1861 = vmatprep.subr.mxu0 0.0
    %1862 = vmatpush1.msra.mxu0 0.0
    %1863 = vmatprep.mubr.f32.mxu0 0.0
    %1864 = vmatmul.mubr.f32.gmra.mrb[0].mxu0 %v1797
    %v1865 = vpop.f32.mrb[0].mxu0
    %v1866 = vadd.f32 %v78, %v1865
    %v1867 = vpop.f32.mrb[0].mxu0
    %1868 = vdwg.mxu0
    %1869 = vmatprep.subr.mxu0 0.0
    %1870 = vmatpush1.msra.mxu0 %v49
    %1871 = vmatprep.subr.mxu0 0.0
    %1872 = vmatpush1.msra.mxu0 %v50
    %1873 = vmatprep.subr.mxu0 0.0
    %1874 = vmatpush1.msra.mxu0 %v51
    %1875 = vmatprep.subr.mxu0 0.0
    %1876 = vmatpush1.msra.mxu0 %v52
    %1877 = vmatprep.subr.mxu0 0.0
    %1878 = vmatpush1.msra.mxu0 0.0
    %1879 = vmatprep.subr.mxu0 0.0
    %1880 = vmatpush1.msra.mxu0 0.0
    %1881 = vmatprep.subr.mxu0 0.0
    %1882 = vmatpush1.msra.mxu0 0.0
    %1883 = vmatprep.subr.mxu0 0.0
    %1884 = vmatpush1.msra.mxu0 0.0
    %1885 = vmatprep.subr.mxu0 0.0
    %1886 = vmatpush1.msra.mxu0 0.0
    %1887 = vmatprep.subr.mxu0 0.0
    %1888 = vmatpush1.msra.mxu0 0.0
    %1889 = vmatprep.subr.mxu0 0.0
    %1890 = vmatpush1.msra.mxu0 0.0
    %1891 = vmatprep.subr.mxu0 0.0
    %1892 = vmatpush1.msra.mxu0 0.0
    %1893 = vmatprep.subr.mxu0 0.0
    %1894 = vmatpush1.msra.mxu0 0.0
    %1895 = vmatprep.subr.mxu0 0.0
    %1896 = vmatpush1.msra.mxu0 0.0
    %1897 = vmatprep.subr.mxu0 0.0
    %1898 = vmatpush1.msra.mxu0 0.0
    %1899 = vmatprep.subr.mxu0 0.0
    %1900 = vmatpush1.msra.mxu0 0.0
    %1901 = vmatprep.subr.mxu0 0.0
    %1902 = vmatpush1.msra.mxu0 0.0
    %1903 = vmatprep.subr.mxu0 0.0
    %1904 = vmatpush1.msra.mxu0 0.0
    %1905 = vmatprep.subr.mxu0 0.0
    %1906 = vmatpush1.msra.mxu0 0.0
    %1907 = vmatprep.subr.mxu0 0.0
    %1908 = vmatpush1.msra.mxu0 0.0
    %1909 = vmatprep.subr.mxu0 0.0
    %1910 = vmatpush1.msra.mxu0 0.0
    %1911 = vmatprep.subr.mxu0 0.0
    %1912 = vmatpush1.msra.mxu0 0.0
    %1913 = vmatprep.subr.mxu0 0.0
    %1914 = vmatpush1.msra.mxu0 0.0
    %1915 = vmatprep.subr.mxu0 0.0
    %1916 = vmatpush1.msra.mxu0 0.0
    %1917 = vmatprep.subr.mxu0 0.0
    %1918 = vmatpush1.msra.mxu0 0.0
    %1919 = vmatprep.subr.mxu0 0.0
    %1920 = vmatpush1.msra.mxu0 0.0
    %1921 = vmatprep.subr.mxu0 0.0
    %1922 = vmatpush1.msra.mxu0 0.0
    %1923 = vmatprep.subr.mxu0 0.0
    %1924 = vmatpush1.msra.mxu0 0.0
    %1925 = vmatprep.subr.mxu0 0.0
    %1926 = vmatpush1.msra.mxu0 0.0
    %1927 = vmatprep.subr.mxu0 0.0
    %1928 = vmatpush1.msra.mxu0 0.0
    %1929 = vmatprep.subr.mxu0 0.0
    %1930 = vmatpush1.msra.mxu0 0.0
    %1931 = vmatprep.subr.mxu0 0.0
    %1932 = vmatpush1.msra.mxu0 0.0
    %1933 = vmatprep.mubr.f32.mxu0 0.0
    %1934 = vmatmul.mubr.f32.gmra.mrb[0].mxu0 %v1624
    %v1935 = vpop.f32.mrb[0].mxu0
    %v1936 = vadd.f32 0.0, %v1935
    %v1937 = vpop.f32.mrb[0].mxu0
    %1938 = vdwg.mxu0
    %v1939 = vadd.f32 %v1866, %v1936
    %v1940 = vmul.f32 %v1939, 0.5
    %v1941 = vtanh.pop %v1940
    %v1942 = vmul.f32 %v1941, 0.5
    %v1943 = vadd.f32 %v1942, 0.5
    %v1944 = vtanh.pop %v1939
    %v1945 = vsel %vm73, %v1944, %v1943
    %v1946 = vmul.f32 %v1945, %v1614
    %1948 = vrot.lane.b32.xlu0 %v1945, 64
    %v1949 = vpop.permute.xlu0 %1948
    %v1951 = vmul.f32 %v1945, %v1949
    %1953 = vrot.lane.b32.xlu0 %v1951, 32
    %v1954 = vpop.permute.xlu0 %1953
    %v1956 = vadd.f32 %v1946, %v1954
    %v1957 = vtanh.pop %v1956
    %1959 = vrot.lane.b32.xlu0 %v1957, 64
    %v1960 = vpop.permute.xlu0 %1959
    %v1962 = vmul.f32 %v1945, %v1960
    %1964 = vrot.lane.b32.xlu0 %v1962, 32
    %v1965 = vpop.permute.xlu0 %1964
    %v1966 = vsel %vm154, %v1965, 0
    %1968 = vmatprep.subr.mxu0 0.0
    %1969 = vmatpush1.msra.mxu0 %v54
    %1970 = vmatprep.subr.mxu0 0.0
    %1971 = vmatpush1.msra.mxu0 %v55
    %1972 = vmatprep.subr.mxu0 0.0
    %1973 = vmatpush1.msra.mxu0 %v56
    %1974 = vmatprep.subr.mxu0 0.0
    %1975 = vmatpush1.msra.mxu0 %v57
    %1976 = vmatprep.subr.mxu0 0.0
    %1977 = vmatpush1.msra.mxu0 0.0
    %1978 = vmatprep.subr.mxu0 0.0
    %1979 = vmatpush1.msra.mxu0 0.0
    %1980 = vmatprep.subr.mxu0 0.0
    %1981 = vmatpush1.msra.mxu0 0.0
    %1982 = vmatprep.subr.mxu0 0.0
    %1983 = vmatpush1.msra.mxu0 0.0
    %1984 = vmatprep.subr.mxu0 0.0
    %1985 = vmatpush1.msra.mxu0 0.0
    %1986 = vmatprep.subr.mxu0 0.0
    %1987 = vmatpush1.msra.mxu0 0.0
    %1988 = vmatprep.subr.mxu0 0.0
    %1989 = vmatpush1.msra.mxu0 0.0
    %1990 = vmatprep.subr.mxu0 0.0
    %1991 = vmatpush1.msra.mxu0 0.0
    %1992 = vmatprep.subr.mxu0 0.0
    %1993 = vmatpush1.msra.mxu0 0.0
    %1994 = vmatprep.subr.mxu0 0.0
    %1995 = vmatpush1.msra.mxu0 0.0
    %1996 = vmatprep.subr.mxu0 0.0
    %1997 = vmatpush1.msra.mxu0 0.0
    %1998 = vmatprep.subr.mxu0 0.0
    %1999 = vmatpush1.msra.mxu0 0.0
    %2000 = vmatprep.subr.mxu0 0.0
    %2001 = vmatpush1.msra.mxu0 0.0
    %2002 = vmatprep.subr.mxu0 0.0
    %2003 = vmatpush1.msra.mxu0 0.0
    %2004 = vmatprep.subr.mxu0 0.0
    %2005 = vmatpush1.msra.mxu0 0.0
    %2006 = vmatprep.subr.mxu0 0.0
    %2007 = vmatpush1.msra.mxu0 0.0
    %2008 = vmatprep.subr.mxu0 0.0
    %2009 = vmatpush1.msra.mxu0 0.0
    %2010 = vmatprep.subr.mxu0 0.0
    %2011 = vmatpush1.msra.mxu0 0.0
    %2012 = vmatprep.subr.mxu0 0.0
    %2013 = vmatpush1.msra.mxu0 0.0
    %2014 = vmatprep.subr.mxu0 0.0
    %2015 = vmatpush1.msra.mxu0 0.0
    %2016 = vmatprep.subr.mxu0 0.0
    %2017 = vmatpush1.msra.mxu0 0.0
    %2018 = vmatprep.subr.mxu0 0.0
    %2019 = vmatpush1.msra.mxu0 0.0
    %2020 = vmatprep.subr.mxu0 0.0
    %2021 = vmatpush1.msra.mxu0 0.0
    %2022 = vmatprep.subr.mxu0 0.0
    %2023 = vmatpush1.msra.mxu0 0.0
    %2024 = vmatprep.subr.mxu0 0.0
    %2025 = vmatpush1.msra.mxu0 0.0
    %2026 = vmatprep.subr.mxu0 0.0
    %2027 = vmatpush1.msra.mxu0 0.0
    %2028 = vmatprep.subr.mxu0 0.0
    %2029 = vmatpush1.msra.mxu0 0.0
    %2030 = vmatprep.subr.mxu0 0.0
    %2031 = vmatpush1.msra.mxu0 0.0
    %2032 = vmatprep.mubr.f32.mxu0 0.0
    %2033 = vmatmul.mubr.f32.gmra.mrb[0].mxu0 %v1966
    %v2034 = vpop.f32.mrb[0].mxu0
    %v2035 = vadd.f32 %v256, %v2034
    %v2036 = vpop.f32.mrb[0].mxu0
    %2037 = vdwg.mxu0
    %2039 = vrot.lane.b32.xlu0 %v1794, 32
    %v2040 = vpop.permute.xlu0 %2039
    %v2041 = vsel %vm154, %v2040, 0
    %2043 = vmatprep.subr.mxu0 0.0
    %2044 = vmatpush1.msra.mxu0 %v58
    %2045 = vmatprep.subr.mxu0 0.0
    %2046 = vmatpush1.msra.mxu0 %v59
    %2047 = vmatprep.subr.mxu0 0.0
    %2048 = vmatpush1.msra.mxu0 %v60
    %2049 = vmatprep.subr.mxu0 0.0
    %2050 = vmatpush1.msra.mxu0 %v61
    %2051 = vmatprep.subr.mxu0 0.0
    %2052 = vmatpush1.msra.mxu0 0.0
    %2053 = vmatprep.subr.mxu0 0.0
    %2054 = vmatpush1.msra.mxu0 0.0
    %2055 = vmatprep.subr.mxu0 0.0
    %2056 = vmatpush1.msra.mxu0 0.0
    %2057 = vmatprep.subr.mxu0 0.0
    %2058 = vmatpush1.msra.mxu0 0.0
    %2059 = vmatprep.subr.mxu0 0.0
    %2060 = vmatpush1.msra.mxu0 0.0
    %2061 = vmatprep.subr.mxu0 0.0
    %2062 = vmatpush1.msra.mxu0 0.0
    %2063 = vmatprep.subr.mxu0 0.0
    %2064 = vmatpush1.msra.mxu0 0.0
    %2065 = vmatprep.subr.mxu0 0.0
    %2066 = vmatpush1.msra.mxu0 0.0
    %2067 = vmatprep.subr.mxu0 0.0
    %2068 = vmatpush1.msra.mxu0 0.0
    %2069 = vmatprep.subr.mxu0 0.0
    %2070 = vmatpush1.msra.mxu0 0.0
    %2071 = vmatprep.subr.mxu0 0.0
    %2072 = vmatpush1.msra.mxu0 0.0
    %2073 = vmatprep.subr.mxu0 0.0
    %2074 = vmatpush1.msra.mxu0 0.0
    %2075 = vmatprep.subr.mxu0 0.0
    %2076 = vmatpush1.msra.mxu0 0.0
    %2077 = vmatprep.subr.mxu0 0.0
    %2078 = vmatpush1.msra.mxu0 0.0
    %2079 = vmatprep.subr.mxu0 0.0
    %2080 = vmatpush1.msra.mxu0 0.0
    %2081 = vmatprep.subr.mxu0 0.0
    %2082 = vmatpush1.msra.mxu0 0.0
    %2083 = vmatprep.subr.mxu0 0.0
    %2084 = vmatpush1.msra.mxu0 0.0
    %2085 = vmatprep.subr.mxu0 0.0
    %2086 = vmatpush1.msra.mxu0 0.0
    %2087 = vmatprep.subr.mxu0 0.0
    %2088 = vmatpush1.msra.mxu0 0.0
    %2089 = vmatprep.subr.mxu0 0.0
    %2090 = vmatpush1.msra.mxu0 0.0
    %2091 = vmatprep.subr.mxu0 0.0
    %2092 = vmatpush1.msra.mxu0 0.0
    %2093 = vmatprep.subr.mxu0 0.0
    %2094 = vmatpush1.msra.mxu0 0.0
    %2095 = vmatprep.subr.mxu0 0.0
    %2096 = vmatpush1.msra.mxu0 0.0
    %2097 = vmatprep.subr.mxu0 0.0
    %2098 = vmatpush1.msra.mxu0 0.0
    %2099 = vmatprep.subr.mxu0 0.0
    %2100 = vmatpush1.msra.mxu0 0.0
    %2101 = vmatprep.subr.mxu0 0.0
    %2102 = vmatpush1.msra.mxu0 0.0
    %2103 = vmatprep.subr.mxu0 0.0
    %2104 = vmatpush1.msra.mxu0 0.0
    %2105 = vmatprep.subr.mxu0 0.0
    %2106 = vmatpush1.msra.mxu0 0.0
    %2107 = vmatprep.mubr.f32.mxu0 0.0
    %2108 = vmatmul.mubr.f32.gmra.mrb[0].mxu0 %v2041
    %v2109 = vpop.f32.mrb[0].mxu0
    %v2110 = vadd.f32 0.0, %v2109
    %v2111 = vpop.f32.mrb[0].mxu0
    %2112 = vdwg.mxu0
    %v2113 = vadd.f32 %v2035, %v2110
    %v2114 = vmul.f32 %v2113, 0.5
    %v2115 = vtanh.pop %v2114
    %v2116 = vmul.f32 %v2115, 0.5
    %v2117 = vadd.f32 %v2116, 0.5
    %v2118 = vtanh.pop %v2113
    %v2119 = vsel %vm73, %v2118, %v2117
    %v2120 = vmul.f32 %v2119, %v1788
    %2122 = vrot.lane.b32.xlu0 %v2119, 64
    %v2123 = vpop.permute.xlu0 %2122
    %v2125 = vmul.f32 %v2119, %v2123
    %2127 = vrot.lane.b32.xlu0 %v2125, 32
    %v2128 = vpop.permute.xlu0 %2127
    %v2130 = vadd.f32 %v2120, %v2128
    %v2131 = vtanh.pop %v2130
    %2133 = vrot.lane.b32.xlu0 %v2131, 64
    %v2134 = vpop.permute.xlu0 %2133
    %v2136 = vmul.f32 %v2119, %v2134
    %2137 = vrot.lane.b32.xlu0 %v68, 80
    %v2138 = vpop.permute.xlu0 %2137
    %v2139 = vsel %vm80, %v2138, 0
    %2141 = vmatprep.subr.mxu0 0.0
    %2142 = vmatpush1.msra.mxu0 %v48
    %2143 = vmatprep.subr.mxu0 0.0
    %2144 = vmatpush1.msra.mxu0 0.0
    %2145 = vmatprep.subr.mxu0 0.0
    %2146 = vmatpush1.msra.mxu0 0.0
    %2147 = vmatprep.subr.mxu0 0.0
    %2148 = vmatpush1.msra.mxu0 0.0
    %2149 = vmatprep.subr.mxu0 0.0
    %2150 = vmatpush1.msra.mxu0 0.0
    %2151 = vmatprep.subr.mxu0 0.0
    %2152 = vmatpush1.msra.mxu0 0.0
    %2153 = vmatprep.subr.mxu0 0.0
    %2154 = vmatpush1.msra.mxu0 0.0
    %2155 = vmatprep.subr.mxu0 0.0
    %2156 = vmatpush1.msra.mxu0 0.0
    %2157 = vmatprep.subr.mxu0 0.0
    %2158 = vmatpush1.msra.mxu0 0.0
    %2159 = vmatprep.subr.mxu0 0.0
    %2160 = vmatpush1.msra.mxu0 0.0
    %2161 = vmatprep.subr.mxu0 0.0
    %2162 = vmatpush1.msra.mxu0 0.0
    %2163 = vmatprep.subr.mxu0 0.0
    %2164 = vmatpush1.msra.mxu0 0.0
    %2165 = vmatprep.subr.mxu0 0.0
    %2166 = vmatpush1.msra.mxu0 0.0
    %2167 = vmatprep.subr.mxu0 0.0
    %2168 = vmatpush1.msra.mxu0 0.0
    %2169 = vmatprep.subr.mxu0 0.0
    %2170 = vmatpush1.msra.mxu0 0.0
    %2171 = vmatprep.subr.mxu0 0.0
    %2172 = vmatpush1.msra.mxu0 0.0
    %2173 = vmatprep.subr.mxu0 0.0
    %2174 = vmatpush1.msra.mxu0 0.0
    %2175 = vmatprep.subr.mxu0 0.0
    %2176 = vmatpush1.msra.mxu0 0.0
    %2177 = vmatprep.subr.mxu0 0.0
    %2178 = vmatpush1.msra.mxu0 0.0
    %2179 = vmatprep.subr.mxu0 0.0
    %2180 = vmatpush1.msra.mxu0 0.0
    %2181 = vmatprep.subr.mxu0 0.0
    %2182 = vmatpush1.msra.mxu0 0.0
    %2183 = vmatprep.subr.mxu0 0.0
    %2184 = vmatpush1.msra.mxu0 0.0
    %2185 = vmatprep.subr.mxu0 0.0
    %2186 = vmatpush1.msra.mxu0 0.0
    %2187 = vmatprep.subr.mxu0 0.0
    %2188 = vmatpush1.msra.mxu0 0.0
    %2189 = vmatprep.subr.mxu0 0.0
    %2190 = vmatpush1.msra.mxu0 0.0
    %2191 = vmatprep.subr.mxu0 0.0
    %2192 = vmatpush1.msra.mxu0 0.0
    %2193 = vmatprep.subr.mxu0 0.0
    %2194 = vmatpush1.msra.mxu0 0.0
    %2195 = vmatprep.subr.mxu0 0.0
    %2196 = vmatpush1.msra.mxu0 0.0
    %2197 = vmatprep.subr.mxu0 0.0
    %2198 = vmatpush1.msra.mxu0 0.0
    %2199 = vmatprep.subr.mxu0 0.0
    %2200 = vmatpush1.msra.mxu0 0.0
    %2201 = vmatprep.subr.mxu0 0.0
    %2202 = vmatpush1.msra.mxu0 0.0
    %2203 = vmatprep.subr.mxu0 0.0
    %2204 = vmatpush1.msra.mxu0 0.0
    %2205 = vmatprep.mubr.f32.mxu0 0.0
    %2206 = vmatmul.mubr.f32.gmra.mrb[0].mxu0 %v2139
    %v2207 = vpop.f32.mrb[0].mxu0
    %v2208 = vadd.f32 %v78, %v2207
    %v2209 = vpop.f32.mrb[0].mxu0
    %2210 = vdwg.mxu0
    %2211 = vmatprep.subr.mxu0 0.0
    %2212 = vmatpush1.msra.mxu0 %v49
    %2213 = vmatprep.subr.mxu0 0.0
    %2214 = vmatpush1.msra.mxu0 %v50
    %2215 = vmatprep.subr.mxu0 0.0
    %2216 = vmatpush1.msra.mxu0 %v51
    %2217 = vmatprep.subr.mxu0 0.0
    %2218 = vmatpush1.msra.mxu0 %v52
    %2219 = vmatprep.subr.mxu0 0.0
    %2220 = vmatpush1.msra.mxu0 0.0
    %2221 = vmatprep.subr.mxu0 0.0
    %2222 = vmatpush1.msra.mxu0 0.0
    %2223 = vmatprep.subr.mxu0 0.0
    %2224 = vmatpush1.msra.mxu0 0.0
    %2225 = vmatprep.subr.mxu0 0.0
    %2226 = vmatpush1.msra.mxu0 0.0
    %2227 = vmatprep.subr.mxu0 0.0
    %2228 = vmatpush1.msra.mxu0 0.0
    %2229 = vmatprep.subr.mxu0 0.0
    %2230 = vmatpush1.msra.mxu0 0.0
    %2231 = vmatprep.subr.mxu0 0.0
    %2232 = vmatpush1.msra.mxu0 0.0
    %2233 = vmatprep.subr.mxu0 0.0
    %2234 = vmatpush1.msra.mxu0 0.0
    %2235 = vmatprep.subr.mxu0 0.0
    %2236 = vmatpush1.msra.mxu0 0.0
    %2237 = vmatprep.subr.mxu0 0.0
    %2238 = vmatpush1.msra.mxu0 0.0
    %2239 = vmatprep.subr.mxu0 0.0
    %2240 = vmatpush1.msra.mxu0 0.0
    %2241 = vmatprep.subr.mxu0 0.0
    %2242 = vmatpush1.msra.mxu0 0.0
    %2243 = vmatprep.subr.mxu0 0.0
    %2244 = vmatpush1.msra.mxu0 0.0
    %2245 = vmatprep.subr.mxu0 0.0
    %2246 = vmatpush1.msra.mxu0 0.0
    %2247 = vmatprep.subr.mxu0 0.0
    %2248 = vmatpush1.msra.mxu0 0.0
    %2249 = vmatprep.subr.mxu0 0.0
    %2250 = vmatpush1.msra.mxu0 0.0
    %2251 = vmatprep.subr.mxu0 0.0
    %2252 = vmatpush1.msra.mxu0 0.0
    %2253 = vmatprep.subr.mxu0 0.0
    %2254 = vmatpush1.msra.mxu0 0.0
    %2255 = vmatprep.subr.mxu0 0.0
    %2256 = vmatpush1.msra.mxu0 0.0
    %2257 = vmatprep.subr.mxu0 0.0
    %2258 = vmatpush1.msra.mxu0 0.0
    %2259 = vmatprep.subr.mxu0 0.0
    %2260 = vmatpush1.msra.mxu0 0.0
    %2261 = vmatprep.subr.mxu0 0.0
    %2262 = vmatpush1.msra.mxu0 0.0
    %2263 = vmatprep.subr.mxu0 0.0
    %2264 = vmatpush1.msra.mxu0 0.0
    %2265 = vmatprep.subr.mxu0 0.0
    %2266 = vmatpush1.msra.mxu0 0.0
    %2267 = vmatprep.subr.mxu0 0.0
    %2268 = vmatpush1.msra.mxu0 0.0
    %2269 = vmatprep.subr.mxu0 0.0
    %2270 = vmatpush1.msra.mxu0 0.0
    %2271 = vmatprep.subr.mxu0 0.0
    %2272 = vmatpush1.msra.mxu0 0.0
    %2273 = vmatprep.subr.mxu0 0.0
    %2274 = vmatpush1.msra.mxu0 0.0
    %2275 = vmatprep.mubr.f32.mxu0 0.0
    %2276 = vmatmul.mubr.f32.gmra.mrb[0].mxu0 %v1966
    %v2277 = vpop.f32.mrb[0].mxu0
    %v2278 = vadd.f32 0.0, %v2277
    %v2279 = vpop.f32.mrb[0].mxu0
    %2280 = vdwg.mxu0
    %v2281 = vadd.f32 %v2208, %v2278
    %v2282 = vmul.f32 %v2281, 0.5
    %v2283 = vtanh.pop %v2282
    %v2284 = vmul.f32 %v2283, 0.5
    %v2285 = vadd.f32 %v2284, 0.5
    %v2286 = vtanh.pop %v2281
    %v2287 = vsel %vm73, %v2286, %v2285
    %v2288 = vmul.f32 %v2287, %v1956
    %2290 = vrot.lane.b32.xlu0 %v2287, 64
    %v2291 = vpop.permute.xlu0 %2290
    %v2293 = vmul.f32 %v2287, %v2291
    %2295 = vrot.lane.b32.xlu0 %v2293, 32
    %v2296 = vpop.permute.xlu0 %2295
    %v2298 = vadd.f32 %v2288, %v2296
    %v2299 = vtanh.pop %v2298
    %2301 = vrot.lane.b32.xlu0 %v2299, 64
    %v2302 = vpop.permute.xlu0 %2301
    %v2304 = vmul.f32 %v2287, %v2302
    %2306 = vrot.lane.b32.xlu0 %v2304, 32
    %v2307 = vpop.permute.xlu0 %2306
    %v2308 = vsel %vm154, %v2307, 0
    %2310 = vmatprep.subr.mxu0 0.0
    %2311 = vmatpush1.msra.mxu0 %v54
    %2312 = vmatprep.subr.mxu0 0.0
    %2313 = vmatpush1.msra.mxu0 %v55
    %2314 = vmatprep.subr.mxu0 0.0
    %2315 = vmatpush1.msra.mxu0 %v56
    %2316 = vmatprep.subr.mxu0 0.0
    %2317 = vmatpush1.msra.mxu0 %v57
    %2318 = vmatprep.subr.mxu0 0.0
    %2319 = vmatpush1.msra.mxu0 0.0
    %2320 = vmatprep.subr.mxu0 0.0
    %2321 = vmatpush1.msra.mxu0 0.0
    %2322 = vmatprep.subr.mxu0 0.0
    %2323 = vmatpush1.msra.mxu0 0.0
    %2324 = vmatprep.subr.mxu0 0.0
    %2325 = vmatpush1.msra.mxu0 0.0
    %2326 = vmatprep.subr.mxu0 0.0
    %2327 = vmatpush1.msra.mxu0 0.0
    %2328 = vmatprep.subr.mxu0 0.0
    %2329 = vmatpush1.msra.mxu0 0.0
    %2330 = vmatprep.subr.mxu0 0.0
    %2331 = vmatpush1.msra.mxu0 0.0
    %2332 = vmatprep.subr.mxu0 0.0
    %2333 = vmatpush1.msra.mxu0 0.0
    %2334 = vmatprep.subr.mxu0 0.0
    %2335 = vmatpush1.msra.mxu0 0.0
    %2336 = vmatprep.subr.mxu0 0.0
    %2337 = vmatpush1.msra.mxu0 0.0
    %2338 = vmatprep.subr.mxu0 0.0
    %2339 = vmatpush1.msra.mxu0 0.0
    %2340 = vmatprep.subr.mxu0 0.0
    %2341 = vmatpush1.msra.mxu0 0.0
    %2342 = vmatprep.subr.mxu0 0.0
    %2343 = vmatpush1.msra.mxu0 0.0
    %2344 = vmatprep.subr.mxu0 0.0
    %2345 = vmatpush1.msra.mxu0 0.0
    %2346 = vmatprep.subr.mxu0 0.0
    %2347 = vmatpush1.msra.mxu0 0.0
    %2348 = vmatprep.subr.mxu0 0.0
    %2349 = vmatpush1.msra.mxu0 0.0
    %2350 = vmatprep.subr.mxu0 0.0
    %2351 = vmatpush1.msra.mxu0 0.0
    %2352 = vmatprep.subr.mxu0 0.0
    %2353 = vmatpush1.msra.mxu0 0.0
    %2354 = vmatprep.subr.mxu0 0.0
    %2355 = vmatpush1.msra.mxu0 0.0
    %2356 = vmatprep.subr.mxu0 0.0
    %2357 = vmatpush1.msra.mxu0 0.0
    %2358 = vmatprep.subr.mxu0 0.0
    %2359 = vmatpush1.msra.mxu0 0.0
    %2360 = vmatprep.subr.mxu0 0.0
    %2361 = vmatpush1.msra.mxu0 0.0
    %2362 = vmatprep.subr.mxu0 0.0
    %2363 = vmatpush1.msra.mxu0 0.0
    %2364 = vmatprep.subr.mxu0 0.0
    %2365 = vmatpush1.msra.mxu0 0.0
    %2366 = vmatprep.subr.mxu0 0.0
    %2367 = vmatpush1.msra.mxu0 0.0
    %2368 = vmatprep.subr.mxu0 0.0
    %2369 = vmatpush1.msra.mxu0 0.0
    %2370 = vmatprep.subr.mxu0 0.0
    %2371 = vmatpush1.msra.mxu0 0.0
    %2372 = vmatprep.subr.mxu0 0.0
    %2373 = vmatpush1.msra.mxu0 0.0
    %2374 = vmatprep.mubr.f32.mxu0 0.0
    %2375 = vmatmul.mubr.f32.gmra.mrb[0].mxu0 %v2308
    %v2376 = vpop.f32.mrb[0].mxu0
    %v2377 = vadd.f32 %v256, %v2376
    %v2378 = vpop.f32.mrb[0].mxu0
    %2379 = vdwg.mxu0
    %2381 = vrot.lane.b32.xlu0 %v2136, 32
    %v2382 = vpop.permute.xlu0 %2381
    %v2383 = vsel %vm154, %v2382, 0
    %2385 = vmatprep.subr.mxu0 0.0
    %2386 = vmatpush1.msra.mxu0 %v58
    %2387 = vmatprep.subr.mxu0 0.0
    %2388 = vmatpush1.msra.mxu0 %v59
    %2389 = vmatprep.subr.mxu0 0.0
    %2390 = vmatpush1.msra.mxu0 %v60
    %2391 = vmatprep.subr.mxu0 0.0
    %2392 = vmatpush1.msra.mxu0 %v61
    %2393 = vmatprep.subr.mxu0 0.0
    %2394 = vmatpush1.msra.mxu0 0.0
    %2395 = vmatprep.subr.mxu0 0.0
    %2396 = vmatpush1.msra.mxu0 0.0
    %2397 = vmatprep.subr.mxu0 0.0
    %2398 = vmatpush1.msra.mxu0 0.0
    %2399 = vmatprep.subr.mxu0 0.0
    %2400 = vmatpush1.msra.mxu0 0.0
    %2401 = vmatprep.subr.mxu0 0.0
    %2402 = vmatpush1.msra.mxu0 0.0
    %2403 = vmatprep.subr.mxu0 0.0
    %2404 = vmatpush1.msra.mxu0 0.0
    %2405 = vmatprep.subr.mxu0 0.0
    %2406 = vmatpush1.msra.mxu0 0.0
    %2407 = vmatprep.subr.mxu0 0.0
    %2408 = vmatpush1.msra.mxu0 0.0
    %2409 = vmatprep.subr.mxu0 0.0
    %2410 = vmatpush1.msra.mxu0 0.0
    %2411 = vmatprep.subr.mxu0 0.0
    %2412 = vmatpush1.msra.mxu0 0.0
    %2413 = vmatprep.subr.mxu0 0.0
    %2414 = vmatpush1.msra.mxu0 0.0
    %2415 = vmatprep.subr.mxu0 0.0
    %2416 = vmatpush1.msra.mxu0 0.0
    %2417 = vmatprep.subr.mxu0 0.0
    %2418 = vmatpush1.msra.mxu0 0.0
    %2419 = vmatprep.subr.mxu0 0.0
    %2420 = vmatpush1.msra.mxu0 0.0
    %2421 = vmatprep.subr.mxu0 0.0
    %2422 = vmatpush1.msra.mxu0 0.0
    %2423 = vmatprep.subr.mxu0 0.0
    %2424 = vmatpush1.msra.mxu0 0.0
    %2425 = vmatprep.subr.mxu0 0.0
    %2426 = vmatpush1.msra.mxu0 0.0
    %2427 = vmatprep.subr.mxu0 0.0
    %2428 = vmatpush1.msra.mxu0 0.0
    %2429 = vmatprep.subr.mxu0 0.0
    %2430 = vmatpush1.msra.mxu0 0.0
    %2431 = vmatprep.subr.mxu0 0.0
    %2432 = vmatpush1.msra.mxu0 0.0
    %2433 = vmatprep.subr.mxu0 0.0
    %2434 = vmatpush1.msra.mxu0 0.0
    %2435 = vmatprep.subr.mxu0 0.0
    %2436 = vmatpush1.msra.mxu0 0.0
    %2437 = vmatprep.subr.mxu0 0.0
    %2438 = vmatpush1.msra.mxu0 0.0
    %2439 = vmatprep.subr.mxu0 0.0
    %2440 = vmatpush1.msra.mxu0 0.0
    %2441 = vmatprep.subr.mxu0 0.0
    %2442 = vmatpush1.msra.mxu0 0.0
    %2443 = vmatprep.subr.mxu0 0.0
    %2444 = vmatpush1.msra.mxu0 0.0
    %2445 = vmatprep.subr.mxu0 0.0
    %2446 = vmatpush1.msra.mxu0 0.0
    %2447 = vmatprep.subr.mxu0 0.0
    %2448 = vmatpush1.msra.mxu0 0.0
    %2449 = vmatprep.mubr.f32.mxu0 0.0
    %2450 = vmatmul.mubr.f32.gmra.mrb[0].mxu0 %v2383
    %v2451 = vpop.f32.mrb[0].mxu0
    %v2452 = vadd.f32 0.0, %v2451
    %v2453 = vpop.f32.mrb[0].mxu0
    %2454 = vdwg.mxu0
    %v2455 = vadd.f32 %v2377, %v2452
    %v2456 = vmul.f32 %v2455, 0.5
    %v2457 = vtanh.pop %v2456
    %v2458 = vmul.f32 %v2457, 0.5
    %v2459 = vadd.f32 %v2458, 0.5
    %v2460 = vtanh.pop %v2455
    %v2461 = vsel %vm73, %v2460, %v2459
    %v2462 = vmul.f32 %v2461, %v2130
    %2464 = vrot.lane.b32.xlu0 %v2461, 64
    %v2465 = vpop.permute.xlu0 %2464
    %v2467 = vmul.f32 %v2461, %v2465
    %2469 = vrot.lane.b32.xlu0 %v2467, 32
    %v2470 = vpop.permute.xlu0 %2469
    %v2472 = vadd.f32 %v2462, %v2470
    %v2473 = vtanh.pop %v2472
    %2475 = vrot.lane.b32.xlu0 %v2473, 64
    %v2476 = vpop.permute.xlu0 %2475
    %v2478 = vmul.f32 %v2461, %v2476
    %2479 = vrot.lane.b32.xlu0 %v68, 72
    %v2480 = vpop.permute.xlu0 %2479
    %v2481 = vsel %vm80, %v2480, 0
    %2483 = vmatprep.subr.mxu0 0.0
    %2484 = vmatpush1.msra.mxu0 %v48
    %2485 = vmatprep.subr.mxu0 0.0
    %2486 = vmatpush1.msra.mxu0 0.0
    %2487 = vmatprep.subr.mxu0 0.0
    %2488 = vmatpush1.msra.mxu0 0.0
    %2489 = vmatprep.subr.mxu0 0.0
    %2490 = vmatpush1.msra.mxu0 0.0
    %2491 = vmatprep.subr.mxu0 0.0
    %2492 = vmatpush1.msra.mxu0 0.0
    %2493 = vmatprep.subr.mxu0 0.0
    %2494 = vmatpush1.msra.mxu0 0.0
    %2495 = vmatprep.subr.mxu0 0.0
    %2496 = vmatpush1.msra.mxu0 0.0
    %2497 = vmatprep.subr.mxu0 0.0
    %2498 = vmatpush1.msra.mxu0 0.0
    %2499 = vmatprep.subr.mxu0 0.0
    %2500 = vmatpush1.msra.mxu0 0.0
    %2501 = vmatprep.subr.mxu0 0.0
    %2502 = vmatpush1.msra.mxu0 0.0
    %2503 = vmatprep.subr.mxu0 0.0
    %2504 = vmatpush1.msra.mxu0 0.0
    %2505 = vmatprep.subr.mxu0 0.0
    %2506 = vmatpush1.msra.mxu0 0.0
    %2507 = vmatprep.subr.mxu0 0.0
    %2508 = vmatpush1.msra.mxu0 0.0
    %2509 = vmatprep.subr.mxu0 0.0
    %2510 = vmatpush1.msra.mxu0 0.0
    %2511 = vmatprep.subr.mxu0 0.0
    %2512 = vmatpush1.msra.mxu0 0.0
    %2513 = vmatprep.subr.mxu0 0.0
    %2514 = vmatpush1.msra.mxu0 0.0
    %2515 = vmatprep.subr.mxu0 0.0
    %2516 = vmatpush1.msra.mxu0 0.0
    %2517 = vmatprep.subr.mxu0 0.0
    %2518 = vmatpush1.msra.mxu0 0.0
    %2519 = vmatprep.subr.mxu0 0.0
    %2520 = vmatpush1.msra.mxu0 0.0
    %2521 = vmatprep.subr.mxu0 0.0
    %2522 = vmatpush1.msra.mxu0 0.0
    %2523 = vmatprep.subr.mxu0 0.0
    %2524 = vmatpush1.msra.mxu0 0.0
    %2525 = vmatprep.subr.mxu0 0.0
    %2526 = vmatpush1.msra.mxu0 0.0
    %2527 = vmatprep.subr.mxu0 0.0
    %2528 = vmatpush1.msra.mxu0 0.0
    %2529 = vmatprep.subr.mxu0 0.0
    %2530 = vmatpush1.msra.mxu0 0.0
    %2531 = vmatprep.subr.mxu0 0.0
    %2532 = vmatpush1.msra.mxu0 0.0
    %2533 = vmatprep.subr.mxu0 0.0
    %2534 = vmatpush1.msra.mxu0 0.0
    %2535 = vmatprep.subr.mxu0 0.0
    %2536 = vmatpush1.msra.mxu0 0.0
    %2537 = vmatprep.subr.mxu0 0.0
    %2538 = vmatpush1.msra.mxu0 0.0
    %2539 = vmatprep.subr.mxu0 0.0
    %2540 = vmatpush1.msra.mxu0 0.0
    %2541 = vmatprep.subr.mxu0 0.0
    %2542 = vmatpush1.msra.mxu0 0.0
    %2543 = vmatprep.subr.mxu0 0.0
    %2544 = vmatpush1.msra.mxu0 0.0
    %2545 = vmatprep.subr.mxu0 0.0
    %2546 = vmatpush1.msra.mxu0 0.0
    %2547 = vmatprep.mubr.f32.mxu0 0.0
    %2548 = vmatmul.mubr.f32.gmra.mrb[0].mxu0 %v2481
    %v2549 = vpop.f32.mrb[0].mxu0
    %v2550 = vadd.f32 %v78, %v2549
    %v2551 = vpop.f32.mrb[0].mxu0
    %2552 = vdwg.mxu0
    %2553 = vmatprep.subr.mxu0 0.0
    %2554 = vmatpush1.msra.mxu0 %v49
    %2555 = vmatprep.subr.mxu0 0.0
    %2556 = vmatpush1.msra.mxu0 %v50
    %2557 = vmatprep.subr.mxu0 0.0
    %2558 = vmatpush1.msra.mxu0 %v51
    %2559 = vmatprep.subr.mxu0 0.0
    %2560 = vmatpush1.msra.mxu0 %v52
    %2561 = vmatprep.subr.mxu0 0.0
    %2562 = vmatpush1.msra.mxu0 0.0
    %2563 = vmatprep.subr.mxu0 0.0
    %2564 = vmatpush1.msra.mxu0 0.0
    %2565 = vmatprep.subr.mxu0 0.0
    %2566 = vmatpush1.msra.mxu0 0.0
    %2567 = vmatprep.subr.mxu0 0.0
    %2568 = vmatpush1.msra.mxu0 0.0
    %2569 = vmatprep.subr.mxu0 0.0
    %2570 = vmatpush1.msra.mxu0 0.0
    %2571 = vmatprep.subr.mxu0 0.0
    %2572 = vmatpush1.msra.mxu0 0.0
    %2573 = vmatprep.subr.mxu0 0.0
    %2574 = vmatpush1.msra.mxu0 0.0
    %2575 = vmatprep.subr.mxu0 0.0
    %2576 = vmatpush1.msra.mxu0 0.0
    %2577 = vmatprep.subr.mxu0 0.0
    %2578 = vmatpush1.msra.mxu0 0.0
    %2579 = vmatprep.subr.mxu0 0.0
    %2580 = vmatpush1.msra.mxu0 0.0
    %2581 = vmatprep.subr.mxu0 0.0
    %2582 = vmatpush1.msra.mxu0 0.0
    %2583 = vmatprep.subr.mxu0 0.0
    %2584 = vmatpush1.msra.mxu0 0.0
    %2585 = vmatprep.subr.mxu0 0.0
    %2586 = vmatpush1.msra.mxu0 0.0
    %2587 = vmatprep.subr.mxu0 0.0
    %2588 = vmatpush1.msra.mxu0 0.0
    %2589 = vmatprep.subr.mxu0 0.0
    %2590 = vmatpush1.msra.mxu0 0.0
    %2591 = vmatprep.subr.mxu0 0.0
    %2592 = vmatpush1.msra.mxu0 0.0
    %2593 = vmatprep.subr.mxu0 0.0
    %2594 = vmatpush1.msra.mxu0 0.0
    %2595 = vmatprep.subr.mxu0 0.0
    %2596 = vmatpush1.msra.mxu0 0.0
    %2597 = vmatprep.subr.mxu0 0.0
    %2598 = vmatpush1.msra.mxu0 0.0
    %2599 = vmatprep.subr.mxu0 0.0
    %2600 = vmatpush1.msra.mxu0 0.0
    %2601 = vmatprep.subr.mxu0 0.0
    %2602 = vmatpush1.msra.mxu0 0.0
    %2603 = vmatprep.subr.mxu0 0.0
    %2604 = vmatpush1.msra.mxu0 0.0
    %2605 = vmatprep.subr.mxu0 0.0
    %2606 = vmatpush1.msra.mxu0 0.0
    %2607 = vmatprep.subr.mxu0 0.0
    %2608 = vmatpush1.msra.mxu0 0.0
    %2609 = vmatprep.subr.mxu0 0.0
    %2610 = vmatpush1.msra.mxu0 0.0
    %2611 = vmatprep.subr.mxu0 0.0
    %2612 = vmatpush1.msra.mxu0 0.0
    %2613 = vmatprep.subr.mxu0 0.0
    %2614 = vmatpush1.msra.mxu0 0.0
    %2615 = vmatprep.subr.mxu0 0.0
    %2616 = vmatpush1.msra.mxu0 0.0
    %2617 = vmatprep.mubr.f32.mxu0 0.0
    %2618 = vmatmul.mubr.f32.gmra.mrb[0].mxu0 %v2308
    %v2619 = vpop.f32.mrb[0].mxu0
    %v2620 = vadd.f32 0.0, %v2619
    %v2621 = vpop.f32.mrb[0].mxu0
    %2622 = vdwg.mxu0
    %v2623 = vadd.f32 %v2550, %v2620
    %v2624 = vmul.f32 %v2623, 0.5
    %v2625 = vtanh.pop %v2624
    %v2626 = vmul.f32 %v2625, 0.5
    %v2627 = vadd.f32 %v2626, 0.5
    %v2628 = vtanh.pop %v2623
    %v2629 = vsel %vm73, %v2628, %v2627
    %v2630 = vmul.f32 %v2629, %v2298
    %2632 = vrot.lane.b32.xlu0 %v2629, 64
    %v2633 = vpop.permute.xlu0 %2632
    %v2635 = vmul.f32 %v2629, %v2633
    %2637 = vrot.lane.b32.xlu0 %v2635, 32
    %v2638 = vpop.permute.xlu0 %2637
    %v2640 = vadd.f32 %v2630, %v2638
    %v2641 = vtanh.pop %v2640
    %2643 = vrot.lane.b32.xlu0 %v2641, 64
    %v2644 = vpop.permute.xlu0 %2643
    %v2646 = vmul.f32 %v2629, %v2644
    %2648 = vrot.lane.b32.xlu0 %v2646, 32
    %v2649 = vpop.permute.xlu0 %2648
    %v2650 = vsel %vm154, %v2649, 0
    %2652 = vmatprep.subr.mxu0 0.0
    %2653 = vmatpush1.msra.mxu0 %v54
    %2654 = vmatprep.subr.mxu0 0.0
    %2655 = vmatpush1.msra.mxu0 %v55
    %2656 = vmatprep.subr.mxu0 0.0
    %2657 = vmatpush1.msra.mxu0 %v56
    %2658 = vmatprep.subr.mxu0 0.0
    %2659 = vmatpush1.msra.mxu0 %v57
    %2660 = vmatprep.subr.mxu0 0.0
    %2661 = vmatpush1.msra.mxu0 0.0
    %2662 = vmatprep.subr.mxu0 0.0
    %2663 = vmatpush1.msra.mxu0 0.0
    %2664 = vmatprep.subr.mxu0 0.0
    %2665 = vmatpush1.msra.mxu0 0.0
    %2666 = vmatprep.subr.mxu0 0.0
    %2667 = vmatpush1.msra.mxu0 0.0
    %2668 = vmatprep.subr.mxu0 0.0
    %2669 = vmatpush1.msra.mxu0 0.0
    %2670 = vmatprep.subr.mxu0 0.0
    %2671 = vmatpush1.msra.mxu0 0.0
    %2672 = vmatprep.subr.mxu0 0.0
    %2673 = vmatpush1.msra.mxu0 0.0
    %2674 = vmatprep.subr.mxu0 0.0
    %2675 = vmatpush1.msra.mxu0 0.0
    %2676 = vmatprep.subr.mxu0 0.0
    %2677 = vmatpush1.msra.mxu0 0.0
    %2678 = vmatprep.subr.mxu0 0.0
    %2679 = vmatpush1.msra.mxu0 0.0
    %2680 = vmatprep.subr.mxu0 0.0
    %2681 = vmatpush1.msra.mxu0 0.0
    %2682 = vmatprep.subr.mxu0 0.0
    %2683 = vmatpush1.msra.mxu0 0.0
    %2684 = vmatprep.subr.mxu0 0.0
    %2685 = vmatpush1.msra.mxu0 0.0
    %2686 = vmatprep.subr.mxu0 0.0
    %2687 = vmatpush1.msra.mxu0 0.0
    %2688 = vmatprep.subr.mxu0 0.0
    %2689 = vmatpush1.msra.mxu0 0.0
    %2690 = vmatprep.subr.mxu0 0.0
    %2691 = vmatpush1.msra.mxu0 0.0
    %2692 = vmatprep.subr.mxu0 0.0
    %2693 = vmatpush1.msra.mxu0 0.0
    %2694 = vmatprep.subr.mxu0 0.0
    %2695 = vmatpush1.msra.mxu0 0.0
    %2696 = vmatprep.subr.mxu0 0.0
    %2697 = vmatpush1.msra.mxu0 0.0
    %2698 = vmatprep.subr.mxu0 0.0
    %2699 = vmatpush1.msra.mxu0 0.0
    %2700 = vmatprep.subr.mxu0 0.0
    %2701 = vmatpush1.msra.mxu0 0.0
    %2702 = vmatprep.subr.mxu0 0.0
    %2703 = vmatpush1.msra.mxu0 0.0
    %2704 = vmatprep.subr.mxu0 0.0
    %2705 = vmatpush1.msra.mxu0 0.0
    %2706 = vmatprep.subr.mxu0 0.0
    %2707 = vmatpush1.msra.mxu0 0.0
    %2708 = vmatprep.subr.mxu0 0.0
    %2709 = vmatpush1.msra.mxu0 0.0
    %2710 = vmatprep.subr.mxu0 0.0
    %2711 = vmatpush1.msra.mxu0 0.0
    %2712 = vmatprep.subr.mxu0 0.0
    %2713 = vmatpush1.msra.mxu0 0.0
    %2714 = vmatprep.subr.mxu0 0.0
    %2715 = vmatpush1.msra.mxu0 0.0
    %2716 = vmatprep.mubr.f32.mxu0 0.0
    %2717 = vmatmul.mubr.f32.gmra.mrb[0].mxu0 %v2650
    %v2718 = vpop.f32.mrb[0].mxu0
    %v2719 = vadd.f32 %v256, %v2718
    %v2720 = vpop.f32.mrb[0].mxu0
    %2721 = vdwg.mxu0
    %2723 = vrot.lane.b32.xlu0 %v2478, 32
    %v2724 = vpop.permute.xlu0 %2723
    %v2725 = vsel %vm154, %v2724, 0
    %2727 = vmatprep.subr.mxu0 0.0
    %2728 = vmatpush1.msra.mxu0 %v58
    %2729 = vmatprep.subr.mxu0 0.0
    %2730 = vmatpush1.msra.mxu0 %v59
    %2731 = vmatprep.subr.mxu0 0.0
    %2732 = vmatpush1.msra.mxu0 %v60
    %2733 = vmatprep.subr.mxu0 0.0
    %2734 = vmatpush1.msra.mxu0 %v61
    %2735 = vmatprep.subr.mxu0 0.0
    %2736 = vmatpush1.msra.mxu0 0.0
    %2737 = vmatprep.subr.mxu0 0.0
    %2738 = vmatpush1.msra.mxu0 0.0
    %2739 = vmatprep.subr.mxu0 0.0
    %2740 = vmatpush1.msra.mxu0 0.0
    %2741 = vmatprep.subr.mxu0 0.0
    %2742 = vmatpush1.msra.mxu0 0.0
    %2743 = vmatprep.subr.mxu0 0.0
    %2744 = vmatpush1.msra.mxu0 0.0
    %2745 = vmatprep.subr.mxu0 0.0
    %2746 = vmatpush1.msra.mxu0 0.0
    %2747 = vmatprep.subr.mxu0 0.0
    %2748 = vmatpush1.msra.mxu0 0.0
    %2749 = vmatprep.subr.mxu0 0.0
    %2750 = vmatpush1.msra.mxu0 0.0
    %2751 = vmatprep.subr.mxu0 0.0
    %2752 = vmatpush1.msra.mxu0 0.0
    %2753 = vmatprep.subr.mxu0 0.0
    %2754 = vmatpush1.msra.mxu0 0.0
    %2755 = vmatprep.subr.mxu0 0.0
    %2756 = vmatpush1.msra.mxu0 0.0
    %2757 = vmatprep.subr.mxu0 0.0
    %2758 = vmatpush1.msra.mxu0 0.0
    %2759 = vmatprep.subr.mxu0 0.0
    %2760 = vmatpush1.msra.mxu0 0.0
    %2761 = vmatprep.subr.mxu0 0.0
    %2762 = vmatpush1.msra.mxu0 0.0
    %2763 = vmatprep.subr.mxu0 0.0
    %2764 = vmatpush1.msra.mxu0 0.0
    %2765 = vmatprep.subr.mxu0 0.0
    %2766 = vmatpush1.msra.mxu0 0.0
    %2767 = vmatprep.subr.mxu0 0.0
    %2768 = vmatpush1.msra.mxu0 0.0
    %2769 = vmatprep.subr.mxu0 0.0
    %2770 = vmatpush1.msra.mxu0 0.0
    %2771 = vmatprep.subr.mxu0 0.0
    %2772 = vmatpush1.msra.mxu0 0.0
    %2773 = vmatprep.subr.mxu0 0.0
    %2774 = vmatpush1.msra.mxu0 0.0
    %2775 = vmatprep.subr.mxu0 0.0
    %2776 = vmatpush1.msra.mxu0 0.0
    %2777 = vmatprep.subr.mxu0 0.0
    %2778 = vmatpush1.msra.mxu0 0.0
    %2779 = vmatprep.subr.mxu0 0.0
    %2780 = vmatpush1.msra.mxu0 0.0
    %2781 = vmatprep.subr.mxu0 0.0
    %2782 = vmatpush1.msra.mxu0 0.0
    %2783 = vmatprep.subr.mxu0 0.0
    %2784 = vmatpush1.msra.mxu0 0.0
    %2785 = vmatprep.subr.mxu0 0.0
    %2786 = vmatpush1.msra.mxu0 0.0
    %2787 = vmatprep.subr.mxu0 0.0
    %2788 = vmatpush1.msra.mxu0 0.0
    %2789 = vmatprep.subr.mxu0 0.0
    %2790 = vmatpush1.msra.mxu0 0.0
    %2791 = vmatprep.mubr.f32.mxu0 0.0
    %2792 = vmatmul.mubr.f32.gmra.mrb[0].mxu0 %v2725
    %v2793 = vpop.f32.mrb[0].mxu0
    %v2794 = vadd.f32 0.0, %v2793
    %v2795 = vpop.f32.mrb[0].mxu0
    %2796 = vdwg.mxu0
    %v2797 = vadd.f32 %v2719, %v2794
    %v2798 = vmul.f32 %v2797, 0.5
    %v2799 = vtanh.pop %v2798
    %v2800 = vmul.f32 %v2799, 0.5
    %v2801 = vadd.f32 %v2800, 0.5
    %v2802 = vtanh.pop %v2797
    %v2803 = vsel %vm73, %v2802, %v2801
    %v2804 = vmul.f32 %v2803, %v2472
    %2806 = vrot.lane.b32.xlu0 %v2803, 64
    %v2807 = vpop.permute.xlu0 %2806
    %v2809 = vmul.f32 %v2803, %v2807
    %2811 = vrot.lane.b32.xlu0 %v2809, 32
    %v2812 = vpop.permute.xlu0 %2811
    %v2814 = vadd.f32 %v2804, %v2812
    %v2815 = vtanh.pop %v2814
    %2817 = vrot.lane.b32.xlu0 %v2815, 64
    %v2818 = vpop.permute.xlu0 %2817
    %v2820 = vmul.f32 %v2803, %v2818
    %v2822 = vlaneseq
    %v2823 = vshrl.u32 %v2822, 7
    %v2824 = vsub.s32 0, %v2823
    %v2825 = vrot.slane %v67, %v2824
    %2828 = vrot.lane.b32.xlu0 %v2820, 32
    %v2829 = vpop.permute.xlu0 %2828
    %v2830 = vsel %vm154, %v2829, 0
    %2832 = vmatprep.subr.mxu0 0.0
    %2833 = vmatpush1.msra.mxu0 %v63
    %2834 = vmatprep.subr.mxu0 0.0
    %2835 = vmatpush1.msra.mxu0 %v64
    %2836 = vmatprep.subr.mxu0 0.0
    %2837 = vmatpush1.msra.mxu0 %v65
    %2838 = vmatprep.subr.mxu0 0.0
    %2839 = vmatpush1.msra.mxu0 %v66
    %2840 = vmatprep.subr.mxu0 0.0
    %2841 = vmatpush1.msra.mxu0 0.0
    %2842 = vmatprep.subr.mxu0 0.0
    %2843 = vmatpush1.msra.mxu0 0.0
    %2844 = vmatprep.subr.mxu0 0.0
    %2845 = vmatpush1.msra.mxu0 0.0
    %2846 = vmatprep.subr.mxu0 0.0
    %2847 = vmatpush1.msra.mxu0 0.0
    %2848 = vmatprep.subr.mxu0 0.0
    %2849 = vmatpush1.msra.mxu0 0.0
    %2850 = vmatprep.subr.mxu0 0.0
    %2851 = vmatpush1.msra.mxu0 0.0
    %2852 = vmatprep.subr.mxu0 0.0
    %2853 = vmatpush1.msra.mxu0 0.0
    %2854 = vmatprep.subr.mxu0 0.0
    %2855 = vmatpush1.msra.mxu0 0.0
    %2856 = vmatprep.subr.mxu0 0.0
    %2857 = vmatpush1.msra.mxu0 0.0
    %2858 = vmatprep.subr.mxu0 0.0
    %2859 = vmatpush1.msra.mxu0 0.0
    %2860 = vmatprep.subr.mxu0 0.0
    %2861 = vmatpush1.msra.mxu0 0.0
    %2862 = vmatprep.subr.mxu0 0.0
    %2863 = vmatpush1.msra.mxu0 0.0
    %2864 = vmatprep.subr.mxu0 0.0
    %2865 = vmatpush1.msra.mxu0 0.0
    %2866 = vmatprep.subr.mxu0 0.0
    %2867 = vmatpush1.msra.mxu0 0.0
    %2868 = vmatprep.subr.mxu0 0.0
    %2869 = vmatpush1.msra.mxu0 0.0
    %2870 = vmatprep.subr.mxu0 0.0
    %2871 = vmatpush1.msra.mxu0 0.0
    %2872 = vmatprep.subr.mxu0 0.0
    %2873 = vmatpush1.msra.mxu0 0.0
    %2874 = vmatprep.subr.mxu0 0.0
    %2875 = vmatpush1.msra.mxu0 0.0
    %2876 = vmatprep.subr.mxu0 0.0
    %2877 = vmatpush1.msra.mxu0 0.0
    %2878 = vmatprep.subr.mxu0 0.0
    %2879 = vmatpush1.msra.mxu0 0.0
    %2880 = vmatprep.subr.mxu0 0.0
    %2881 = vmatpush1.msra.mxu0 0.0
    %2882 = vmatprep.subr.mxu0 0.0
    %2883 = vmatpush1.msra.mxu0 0.0
    %2884 = vmatprep.subr.mxu0 0.0
    %2885 = vmatpush1.msra.mxu0 0.0
    %2886 = vmatprep.subr.mxu0 0.0
    %2887 = vmatpush1.msra.mxu0 0.0
    %2888 = vmatprep.subr.mxu0 0.0
    %2889 = vmatpush1.msra.mxu0 0.0
    %2890 = vmatprep.subr.mxu0 0.0
    %2891 = vmatpush1.msra.mxu0 0.0
    %2892 = vmatprep.subr.mxu0 0.0
    %2893 = vmatpush1.msra.mxu0 0.0
    %2894 = vmatprep.subr.mxu0 0.0
    %2895 = vmatpush1.msra.mxu0 0.0
    %2896 = vmatprep.mubr.f32.mxu0 0.0
    %2897 = vmatmul.mubr.f32.gmra.mrb[0].mxu0 %v2830
    %v2898 = vpop.f32.mrb[0].mxu0
    %v2899 = vadd.f32 %v2825, %v2898
    %v2900 = vpop.f32.mrb[0].mxu0
    %2901 = vdwg.mxu0
    %vm2902 = vcmask 3072
    %2903 = vst.msk [vmem:[%s9] sm:$0xf] %vm2902, %v2899
    // Predicated region
    $region42: #{lstm_model_forward.1} parent=1 // pred_check
      _
    $region43: #{lstm_model_forward.1} parent=1 // pred_check_branch
      %2905 = sbr.rel (0) target = $region45
    $region44: #{lstm_model_forward.1} parent=1 // pred_region
      _
    $region45: #{lstm_model_forward.1} parent=1 // pred_fallthru
      _
    // Predicated region
    $region46: #{lstm_model_forward.1} parent=1 // pred_check
      _
    $region47: #{lstm_model_forward.1} parent=1 // pred_check_branch
      %2907 = sbr.rel (0) target = $region49
    $region48: #{lstm_model_forward.1} parent=1 // pred_region
      _
    $region49: #{lstm_model_forward.1} parent=1 // pred_fallthru
      _
    %2908 = vsyncpa [#allocation4], 1

</llo_original>
